<compile_context>
chip_gen: v6e
topology: v6e:2x2x1
jax: 0.10.0
libtpu: 0.0.40
codegen_flags: <defaults>
</compile_context>

<pallas_src>
import functools

import jax
import jax.numpy as jnp
from jax.experimental import pallas as pl
from jax.experimental.pallas import tpu as pltpu

F32 = jnp.float32
BF16 = jnp.bfloat16
NEG_INF = -1e10
LN_EPS = 1e-5
VMEM_LIMIT = 48 * 1024 * 1024   # conservative across v5e/v6e/v7x

ENC_KEYS = ("wqkv", "bqkv", "wo", "bo", "ln1_g", "ln1_b",
            "w1", "b1", "w2", "b2", "ln2_g", "ln2_b")
DEC_KEYS = ("s_wqkv", "s_bqkv", "s_wo", "s_bo", "ln1_g", "ln1_b",
            "c_wq", "c_bq", "c_wkv", "c_bkv", "c_wo", "c_bo", "ln2_g", "ln2_b",
            "w1", "b1", "w2", "b2", "ln3_g", "ln3_b")


# ----------------------------- in-kernel helpers ---------------------------- #

def _layernorm(x, g, b):
    mean = jnp.mean(x, axis=-1, keepdims=True)
    var = jnp.mean(jnp.square(x - mean), axis=-1, keepdims=True)
    return (x - mean) * jax.lax.rsqrt(var + LN_EPS) * g + b


def _split_heads(x2d, n_heads):
    """(L, D) bf16 -> (H, L, Dh) bf16 via static lane slices stacked on a new
    leading (major) axis (no in-kernel minor-dim reshape/transpose)."""
    L, D = x2d.shape
    dh = D // n_heads
    return jnp.stack([x2d[:, h * dh:(h + 1) * dh] for h in range(n_heads)], axis=0)


def _merge_heads(x3d):
    """(H, L, Dh) -> (L, H*Dh) by lane-concatenating heads."""
    return jnp.concatenate([x3d[h] for h in range(x3d.shape[0])], axis=-1)


def _attention(q3, k3, v3, bias, wo, bo, attn_ref=None, store_pred=None):
    """Head-batched attention.
    q3:(H,Lq,Dh) bf16 (1/sqrt(Dh) pre-folded into q weights), k3/v3:(H,Lk,Dh) bf16,
    bias:(Lq,Lk) f32 additive mask (0 keep / NEG_INF mask).
    Returns (Lq, D) f32 = concat_h(softmax(q k^T + bias) v) @ wo + bo.
    Optionally stores exact f32 probabilities to attn_ref[0] when store_pred."""
    s = jnp.einsum('hqd,hkd->hqk', q3, k3, preferred_element_type=F32)
    s = s + bias[None, :, :]
    m = jnp.max(s, axis=-1, keepdims=True)
    p = jnp.exp(s - m)
    denom = jnp.sum(p, axis=-1, keepdims=True)
    if attn_ref is not None:
        @pl.when(store_pred)
        def _():
            attn_ref[0] = (p / denom).astype(attn_ref.dtype)   # exact for returned probs
    attn = p * pl.reciprocal(denom, approx=True)                # EUP slot
    ctx = jnp.einsum('hqk,hkd->hqd', attn.astype(BF16), v3,
                     preferred_element_type=F32)
    ctx2 = _merge_heads(ctx).astype(BF16)                       # (Lq, D)
    return jnp.dot(ctx2, wo, preferred_element_type=F32) + bo


def _ffn(x, w1, b1, w2, b2):
    h = jnp.dot(x.astype(BF16), w1, preferred_element_type=F32) + b1
    h = jnp.maximum(h, 0.0)
    return jnp.dot(h.astype(BF16), w2, preferred_element_type=F32) + b2


# ------------------------------ fused stack kernels -------------------------- #

def _encoder_stack_kernel(x_ref, mb_ref,
                          wqkv, bqkv, wo, bo, ln1g, ln1b,
                          w1, b1, w2, b2, ln2g, ln2b,
                          o_ref, act_ref, *, n_heads):
    l = pl.program_id(1)

    @pl.when(l == 0)
    def _():
        act_ref[...] = x_ref[0]                          # load embeddings once per batch

    x = act_ref[...]                                     # (L, D) f32, VMEM-resident
    L, D = x.shape
    bias = jnp.broadcast_to(mb_ref[0], (L, L))           # (L, L) additive pad mask

    # fused QKV projection (one full-width matmul; q-scale pre-folded host-side)
    qkv = jnp.dot(x.astype(BF16), wqkv[0], preferred_element_type=F32) + bqkv[0]
    q3 = _split_heads(qkv[:, :D].astype(BF16), n_heads)
    k3 = _split_heads(qkv[:, D:2 * D].astype(BF16), n_heads)
    v3 = _split_heads(qkv[:, 2 * D:].astype(BF16), n_heads)

    sa = _attention(q3, k3, v3, bias, wo[0], bo[0])
    x = _layernorm(x + sa, ln1g[0], ln1b[0])

    ff = _ffn(x, w1[0], b1[0], w2[0], b2[0])
    x = _layernorm(x + ff, ln2g[0], ln2b[0])

    act_ref[...] = x
    o_ref[0] = x.astype(o_ref.dtype)                     # flushed to HBM once per batch


def _decoder_stack_kernel(trg_ref, enc_ref, tb_ref, sb_ref,
                          s_wqkv, s_bqkv, s_wo, s_bo, ln1g, ln1b,
                          c_wq, c_bq, c_wkv, c_bkv, c_wo, c_bo, ln2g, ln2b,
                          w1, b1, w2, b2, ln3g, ln3b,
                          o_ref, attn_ref, act_ref, *, n_heads):
    l = pl.program_id(1)
    is_last = l == pl.num_programs(1) - 1

    @pl.when(l == 0)
    def _():
        act_ref[...] = trg_ref[0]

    x = act_ref[...]                                     # (Lt, D) f32, VMEM-resident
    enc = enc_ref[0]                                     # (Ls, D) bf16 (fetched once per b)
    Lt, D = x.shape
    Ls = enc.shape[0]

    # additive masks: causal + target-pad for self-attn; source-pad for cross-attn
    rows = jax.lax.broadcasted_iota(jnp.int32, (Lt, Lt), 0)
    cols = jax.lax.broadcasted_iota(jnp.int32, (Lt, Lt), 1)
    causal = jnp.where(cols <= rows, 0.0, NEG_INF).astype(F32)
    trg_bias = causal + jnp.broadcast_to(tb_ref[0], (Lt, Lt))
    src_bias = jnp.broadcast_to(sb_ref[0], (Lt, Ls))

    # --- masked self-attention (fused QKV) + residual LN ---
    qkv = jnp.dot(x.astype(BF16), s_wqkv[0], preferred_element_type=F32) + s_bqkv[0]
    q3 = _split_heads(qkv[:, :D].astype(BF16), n_heads)
    k3 = _split_heads(qkv[:, D:2 * D].astype(BF16), n_heads)
    v3 = _split_heads(qkv[:, 2 * D:].astype(BF16), n_heads)
    sa = _attention(q3, k3, v3, trg_bias, s_wo[0], s_bo[0])
    x = _layernorm(x + sa, ln1g[0], ln1b[0])

    # --- cross-attention (fused KV); probs stored only for the last layer ---
    qc = jnp.dot(x.astype(BF16), c_wq[0], preferred_element_type=F32) + c_bq[0]
    kv = jnp.dot(enc, c_wkv[0], preferred_element_type=F32) + c_bkv[0]
    q3c = _split_heads(qc.astype(BF16), n_heads)
    k3c = _split_heads(kv[:, :D].astype(BF16), n_heads)
    v3c = _split_heads(kv[:, D:].astype(BF16), n_heads)
    ca = _attention(q3c, k3c, v3c, src_bias, c_wo[0], c_bo[0],
                    attn_ref=attn_ref, store_pred=is_last)
    x = _layernorm(x + ca, ln2g[0], ln2b[0])

    # --- position-wise FFN + residual LN ---
    ff = _ffn(x, w1[0], b1[0], w2[0], b2[0])
    x = _layernorm(x + ff, ln3g[0], ln3b[0])

    act_ref[...] = x
    o_ref[0] = x.astype(o_ref.dtype)


def _out_proj_kernel(x_ref, w_ref, b_ref, o_ref):
    y = jnp.dot(x_ref[...], w_ref[...], preferred_element_type=F32) + b_ref[...]
    o_ref[...] = y.astype(o_ref.dtype)


# ------------------------------- pallas wrappers ----------------------------- #

def _w_spec(w):
    return pl.BlockSpec((1,) + tuple(w.shape[1:]),
                        lambda b, l: (l,) + (0,) * (w.ndim - 1))


def encoder_stack(p, x, src_bias, n_heads):
    B, Ls, D = x.shape
    n_layers = p["wqkv"].shape[0]
    weights = [p[k] for k in ENC_KEYS]
    return pl.pallas_call(
        functools.partial(_encoder_stack_kernel, n_heads=n_heads),
        out_shape=jax.ShapeDtypeStruct((B, Ls, D), BF16),
        grid=(B, n_layers),
        in_specs=[pl.BlockSpec((1, Ls, D), lambda b, l: (b, 0, 0)),
                  pl.BlockSpec((1, 1, Ls), lambda b, l: (b, 0, 0))]
                 + [_w_spec(w) for w in weights],
        out_specs=pl.BlockSpec((1, Ls, D), lambda b, l: (b, 0, 0)),
        scratch_shapes=[pltpu.VMEM((Ls, D), F32)],
        compiler_params=pltpu.CompilerParams(
            dimension_semantics=("parallel", "arbitrary"),
            vmem_limit_bytes=VMEM_LIMIT),
    )(x, src_bias, *weights)


def decoder_stack(p, trg_emb, enc_src, trg_bias, src_bias, n_heads):
    B, Lt, D = trg_emb.shape
    Ls = enc_src.shape[1]
    n_layers = p["s_wqkv"].shape[0]
    H = n_heads
    weights = [p[k] for k in DEC_KEYS]
    y, attn = pl.pallas_call(
        functools.partial(_decoder_stack_kernel, n_heads=n_heads),
        out_shape=(jax.ShapeDtypeStruct((B, Lt, D), BF16),
                   jax.ShapeDtypeStruct((B, H, Lt, Ls), F32)),
        grid=(B, n_layers),
        in_specs=[pl.BlockSpec((1, Lt, D), lambda b, l: (b, 0, 0)),
                  pl.BlockSpec((1, Ls, D), lambda b, l: (b, 0, 0)),
                  pl.BlockSpec((1, 1, Lt), lambda b, l: (b, 0, 0)),
                  pl.BlockSpec((1, 1, Ls), lambda b, l: (b, 0, 0))]
                 + [_w_spec(w) for w in weights],
        out_specs=(pl.BlockSpec((1, Lt, D), lambda b, l: (b, 0, 0)),
                   pl.BlockSpec((1, H, Lt, Ls), lambda b, l: (b, 0, 0, 0))),
        scratch_shapes=[pltpu.VMEM((Lt, D), F32)],
        compiler_params=pltpu.CompilerParams(
            dimension_semantics=("parallel", "arbitrary"),
            vmem_limit_bytes=VMEM_LIMIT),
    )(trg_emb, enc_src, trg_bias, src_bias, *weights)
    return y, attn


def final_linear(x_bf16, w_bf16, b_row, tm=256, tn=512):
    """(M,K) bf16 @ (K,N) bf16 + (1,N) -> (M,N) f32, tiled over (M, N)."""
    M, K = x_bf16.shape
    N = w_bf16.shape[1]
    tm = min(tm, M)
    tn = min(tn, N)
    return pl.pallas_call(
        _out_proj_kernel,
        out_shape=jax.ShapeDtypeStruct((M, N), F32),
        grid=(pl.cdiv(M, tm), pl.cdiv(N, tn)),
        in_specs=[pl.BlockSpec((tm, K), lambda i, j: (i, 0)),
                  pl.BlockSpec((K, tn), lambda i, j: (0, j)),
                  pl.BlockSpec((1, tn), lambda i, j: (0, j))],
        out_specs=pl.BlockSpec((tm, tn), lambda i, j: (i, j)),
        compiler_params=pltpu.CompilerParams(
            dimension_semantics=("parallel", "parallel"),
            vmem_limit_bytes=VMEM_LIMIT),
    )(x_bf16, w_bf16, b_row)


# ------------------------------ model orchestration -------------------------- #

def seq2seq_forward(params, src, trg, src_pad_idx, trg_pad_idx):
    B, Ls = src.shape
    Lt = trg.shape[1]
    # compact additive pad-mask biases (0 keep / -1e10 mask); causal part in-kernel
    src_bias = jnp.where(src != src_pad_idx, 0.0, NEG_INF).astype(F32)[:, None, :]
    trg_bias = jnp.where(trg != trg_pad_idx, 0.0, NEG_INF).astype(F32)[:, None, :]

    # --- encoder (embeddings + positional in plain JAX, dropout = eval identity) ---
    enc_p = params["encoder"]
    x = jnp.take(enc_p["tok_emb"], src, axis=0) * enc_p["scale"] \
        + jnp.take(enc_p["pos_emb"], jnp.arange(Ls), axis=0)[None]
    enc_src = encoder_stack(enc_p["stack"], x.astype(F32), src_bias, enc_p["n_heads"])

    # --- decoder ---
    dec_p = params["decoder"]
    y = jnp.take(dec_p["tok_emb"], trg, axis=0) * dec_p["scale"] \
        + jnp.take(dec_p["pos_emb"], jnp.arange(Lt), axis=0)[None]
    y, attention = decoder_stack(dec_p["stack"], y.astype(F32), enc_src,
                                 trg_bias, src_bias, dec_p["n_heads"])

    D = y.shape[-1]
    logits = final_linear(y.reshape(B * Lt, D), dec_p["w_out"], dec_p["b_out"])
    return logits.reshape(B, Lt, -1), attention


# --------------------------- parameter init & packing ------------------------ #

def init_params(key, input_dim, output_dim, hid_dim, n_layers, n_heads, pf_dim, max_len):
    keys = iter(jax.random.split(key, 256))

    def dense(din, dout):
        kw, kb = jax.random.split(next(keys))
        lim = 1.0 / (din ** 0.5)
        w = jax.random.uniform(kw, (din, dout), F32, -lim, lim)
        b = jax.random.uniform(kb, (dout,), F32, -lim, lim)
        return w, b

    def attn_params():
        p = {}
        for name in ("q", "k", "v", "o"):
            w, b = dense(hid_dim, hid_dim)
            p["w" + name] = w
            p["b" + name] = b
        return p

    def ff_params():
        w1, b1 = dense(hid_dim, pf_dim)
        w2, b2 = dense(pf_dim, hid_dim)
        return {"w1": w1, "b1": b1, "w2": w2, "b2": b2}

    ones = jnp.ones((hid_dim,), F32)
    zeros = jnp.zeros((hid_dim,), F32)

    enc_layers = [{"attn": attn_params(), "ff": ff_params(),
                   "ln1_g": ones, "ln1_b": zeros, "ln2_g": ones, "ln2_b": zeros}
                  for _ in range(n_layers)]
    dec_layers = [{"self_attn": attn_params(), "enc_attn": attn_params(), "ff": ff_params(),
                   "ln1_g": ones, "ln1_b": zeros, "ln2_g": ones, "ln2_b": zeros,
                   "ln3_g": ones, "ln3_b": zeros}
                  for _ in range(n_layers)]
    w_out, b_out = dense(hid_dim, output_dim)

    enc = {"tok_emb": jax.random.normal(next(keys), (input_dim, hid_dim), F32) * 0.02,
           "pos_emb": jax.random.normal(next(keys), (max_len, hid_dim), F32) * 0.02,
           "scale": float(hid_dim) ** 0.5, "layers": enc_layers}
    dec = {"tok_emb": jax.random.normal(next(keys), (output_dim, hid_dim), F32) * 0.02,
           "pos_emb": jax.random.normal(next(keys), (max_len, hid_dim), F32) * 0.02,
           "scale": float(hid_dim) ** 0.5, "layers": dec_layers,
           "w_out": w_out, "b_out": b_out}
    return {"encoder": enc, "decoder": dec}


def prep_params(params, n_heads):
    """Pack params for the fused stack kernels: QKV / KV weight fusion with the
    1/sqrt(Dh) scale folded into the q projection, bf16 matmul weights, f32
    (1,N)-shaped biases / LN params, all stacked on a leading layer axis."""
    hid = params["encoder"]["tok_emb"].shape[1]
    q_scale = 1.0 / float(hid // n_heads) ** 0.5

    def row(v):
        return v.reshape(1, -1).astype(F32)

    def enc_layer(lp):
        a, f = lp["attn"], lp["ff"]
        return dict(
            wqkv=jnp.concatenate([a["wq"] * q_scale, a["wk"], a["wv"]], axis=1).astype(BF16),
            bqkv=row(jnp.concatenate([a["bq"] * q_scale, a["bk"], a["bv"]])),
            wo=a["wo"].astype(BF16), bo=row(a["bo"]),
            ln1_g=row(lp["ln1_g"]), ln1_b=row(lp["ln1_b"]),
            w1=f["w1"].astype(BF16), b1=row(f["b1"]),
            w2=f["w2"].astype(BF16), b2=row(f["b2"]),
            ln2_g=row(lp["ln2_g"]), ln2_b=row(lp["ln2_b"]))

    def dec_layer(lp):
        sa, ca, f = lp["self_attn"], lp["enc_attn"], lp["ff"]
        return dict(
            s_wqkv=jnp.concatenate([sa["wq"] * q_scale, sa["wk"], sa["wv"]], axis=1).astype(BF16),
            s_bqkv=row(jnp.concatenate([sa["bq"] * q_scale, sa["bk"], sa["bv"]])),
            s_wo=sa["wo"].astype(BF16), s_bo=row(sa["bo"]),
            c_wq=(ca["wq"] * q_scale).astype(BF16), c_bq=row(ca["bq"] * q_scale),
            c_wkv=jnp.concatenate([ca["wk"], ca["wv"]], axis=1).astype(BF16),
            c_bkv=row(jnp.concatenate([ca["bk"], ca["bv"]])),
            c_wo=ca["wo"].astype(BF16), c_bo=row(ca["bo"]),
            ln1_g=row(lp["ln1_g"]), ln1_b=row(lp["ln1_b"]),
            ln2_g=row(lp["ln2_g"]), ln2_b=row(lp["ln2_b"]),
            ln3_g=row(lp["ln3_g"]), ln3_b=row(lp["ln3_b"]),
            w1=f["w1"].astype(BF16), b1=row(f["b1"]),
            w2=f["w2"].astype(BF16), b2=row(f["b2"]))

    def stack(layer_dicts, keys):
        return {k: jnp.stack([d[k] for d in layer_dicts], axis=0) for k in keys}

    enc, dec = params["encoder"], params["decoder"]
    enc_stacked = stack([enc_layer(lp) for lp in enc["layers"]], ENC_KEYS)
    dec_stacked = stack([dec_layer(lp) for lp in dec["layers"]], DEC_KEYS)

    return dict(
        encoder=dict(tok_emb=enc["tok_emb"], pos_emb=enc["pos_emb"],
                     scale=enc["scale"], n_heads=n_heads, stack=enc_stacked),
        decoder=dict(tok_emb=dec["tok_emb"], pos_emb=dec["pos_emb"],
                     scale=dec["scale"], n_heads=n_heads, stack=dec_stacked,
                     w_out=dec["w_out"].astype(BF16), b_out=row(dec["b_out"])))


# ----------------------------------- main ------------------------------------ #

if __name__ == "__main__":
    B, Ls, Lt = 2, 8, 8
    INPUT_DIM, OUTPUT_DIM = 16, 16          # src / trg vocab sizes
    HID, N_LAYERS, N_HEADS, PF_DIM, MAX_LEN = 32, 2, 4, 64, 32
    SRC_PAD_IDX, TRG_PAD_IDX = 0, 0

    key = jax.random.PRNGKey(0)
    kp, ks, kt = jax.random.split(key, 3)
    params = prep_params(
        init_params(kp, INPUT_DIM, OUTPUT_DIM, HID, N_LAYERS, N_HEADS, PF_DIM, MAX_LEN),
        N_HEADS)

    src = jax.random.randint(ks, (B, Ls), 1, INPUT_DIM)
    trg = jax.random.randint(kt, (B, Lt), 1, OUTPUT_DIM)
    # add some padding tokens to exercise the masks
    src = src.at[1, -2:].set(SRC_PAD_IDX)
    trg = trg.at[1, -3:].set(TRG_PAD_IDX)

    fwd = jax.jit(lambda s, t: seq2seq_forward(params, s, t, SRC_PAD_IDX, TRG_PAD_IDX))
    output, attention = fwd(src, trg)
    jax.block_until_ready((output, attention))

    assert output.shape == (B, Lt, OUTPUT_DIM)
    assert attention.shape == (B, N_HEADS, Lt, Ls)
    assert bool(jnp.all(jnp.isfinite(output))) and bool(jnp.all(jnp.isfinite(attention)))
    # exact-divide stored attention: rows sum to ~1 tightly
    assert bool(jnp.allclose(jnp.sum(attention, axis=-1), 1.0, atol=1e-3))
    print("KERNEL_OK")
</pallas_src>

<mosaic_0001>
module attributes {stable_mosaic.version = 11 : i64} {
  func.func @_out_proj_kernel(%arg0: i32, %arg1: i32, %arg2: memref<16x32xbf16, #tpu.memory_space<vmem>>, %arg3: memref<32x16xbf16, #tpu.memory_space<vmem>>, %arg4: memref<1x16xf32, #tpu.memory_space<vmem>>, %arg5: memref<16x16xf32, #tpu.memory_space<vmem>>) attributes {dimension_semantics = [#tpu.dimension_semantics<parallel>, #tpu.dimension_semantics<parallel>], iteration_bounds = array<i64: 1, 1>, scalar_prefetch = 0 : i64, scratch_operands = 0 : i64, tpu.core_type = #tpu.core_type<tc>, window_params = [{transform_indices = @transform_0, window_bounds = array<i64: 16, 32>}, {transform_indices = @transform_1, window_bounds = array<i64: 32, 16>}, {transform_indices = @transform_2, window_bounds = array<i64: 1, 16>}, {transform_indices = @transform_3, window_bounds = array<i64: 16, 16>}]} {
    %c0 = arith.constant 0 : index
    %c0_0 = arith.constant 0 : index
    %0 = vector.load %arg2[%c0, %c0_0] : memref<16x32xbf16, #tpu.memory_space<vmem>>, vector<16x32xbf16>
    %c0_1 = arith.constant 0 : index
    %c0_2 = arith.constant 0 : index
    %1 = vector.load %arg3[%c0_1, %c0_2] : memref<32x16xbf16, #tpu.memory_space<vmem>>, vector<32x16xbf16>
    %cst = arith.constant dense<0.000000e+00> : vector<16x16xf32>
    %2 = tpu.matmul %0, %1, %cst {dimension_numbers = #tpu.dot_dimension_numbers<[1], [0], [0], [1], [0, 0, 1, 1], [], []>} : vector<16x32xbf16>, vector<32x16xbf16>, vector<16x16xf32> -> vector<16x16xf32>
    %c0_3 = arith.constant 0 : index
    %c0_4 = arith.constant 0 : index
    %3 = vector.load %arg4[%c0_3, %c0_4] : memref<1x16xf32, #tpu.memory_space<vmem>>, vector<1x16xf32>
    %4 = vector.broadcast %3 : vector<1x16xf32> to vector<16x16xf32>
    %5 = arith.addf %2, %4 : vector<16x16xf32>
    %c0_5 = arith.constant 0 : index
    %c0_6 = arith.constant 0 : index
    %6 = vector.load %arg5[%c0_5, %c0_6] : memref<16x16xf32, #tpu.memory_space<vmem>>, vector<16x16xf32>
    tpu.vector_store %arg5[%c0_5, %c0_6], %5 {strides = array<i32>} : memref<16x16xf32, #tpu.memory_space<vmem>>, vector<16x16xf32>,
    return
  }
  func.func @transform_0(%arg0: i32, %arg1: i32) -> (i32, i32) {
    %c0_i32 = arith.constant 0 : i32
    %c0_i32_0 = arith.constant 0 : i32
    return %arg0, %c0_i32 : i32, i32
  }
  func.func @transform_1(%arg0: i32, %arg1: i32) -> (i32, i32) {
    %c0_i32 = arith.constant 0 : i32
    %c0_i32_0 = arith.constant 0 : i32
    return %c0_i32, %arg1 : i32, i32
  }
  func.func @transform_2(%arg0: i32, %arg1: i32) -> (i32, i32) {
    %c0_i32 = arith.constant 0 : i32
    %c0_i32_0 = arith.constant 0 : i32
    return %c0_i32, %arg1 : i32, i32
  }
  func.func @transform_3(%arg0: i32, %arg1: i32) -> (i32, i32) {
    %c0_i32 = arith.constant 0 : i32
    return %arg0, %arg1 : i32, i32
  }
}

module attributes {stable_mosaic.version = 11 : i64} {
  func.func @_encoder_stack_kernel(%arg0: i32, %arg1: i32, %arg2: memref<1x8x32xf32, #tpu.memory_space<vmem>>, %arg3: memref<1x1x8xf32, #tpu.memory_space<vmem>>, %arg4: memref<1x32x96xbf16, #tpu.memory_space<vmem>>, %arg5: memref<1x1x96xf32, #tpu.memory_space<vmem>>, %arg6: memref<1x32x32xbf16, #tpu.memory_space<vmem>>, %arg7: memref<1x1x32xf32, #tpu.memory_space<vmem>>, %arg8: memref<1x1x32xf32, #tpu.memory_space<vmem>>, %arg9: memref<1x1x32xf32, #tpu.memory_space<vmem>>, %arg10: memref<1x32x64xbf16, #tpu.memory_space<vmem>>, %arg11: memref<1x1x64xf32, #tpu.memory_space<vmem>>, %arg12: memref<1x64x32xbf16, #tpu.memory_space<vmem>>, %arg13: memref<1x1x32xf32, #tpu.memory_space<vmem>>, %arg14: memref<1x1x32xf32, #tpu.memory_space<vmem>>, %arg15: memref<1x1x32xf32, #tpu.memory_space<vmem>>, %arg16: memref<1x8x32xbf16, #tpu.memory_space<vmem>>, %arg17: memref<8x32xf32, #tpu.memory_space<vmem>>) attributes {dimension_semantics = [#tpu.dimension_semantics<parallel>, #tpu.dimension_semantics<arbitrary>], iteration_bounds = array<i64: 2, 2>, scalar_prefetch = 0 : i64, scratch_operands = 1 : i64, tpu.core_type = #tpu.core_type<tc>, window_params = [{transform_indices = @transform_0, window_bounds = array<i64: 1, 8, 32>}, {transform_indices = @transform_1, window_bounds = array<i64: 1, 1, 8>}, {transform_indices = @transform_2, window_bounds = array<i64: 1, 32, 96>}, {transform_indices = @transform_3, window_bounds = array<i64: 1, 1, 96>}, {transform_indices = @transform_4, window_bounds = array<i64: 1, 32, 32>}, {transform_indices = @transform_5, window_bounds = array<i64: 1, 1, 32>}, {transform_indices = @transform_6, window_bounds = array<i64: 1, 1, 32>}, {transform_indices = @transform_7, window_bounds = array<i64: 1, 1, 32>}, {transform_indices = @transform_8, window_bounds = array<i64: 1, 32, 64>}, {transform_indices = @transform_9, window_bounds = array<i64: 1, 1, 64>}, {transform_indices = @transform_10, window_bounds = array<i64: 1, 64, 32>}, {transform_indices = @transform_11, window_bounds = array<i64: 1, 1, 32>}, {transform_indices = @transform_12, window_bounds = array<i64: 1, 1, 32>}, {transform_indices = @transform_13, window_bounds = array<i64: 1, 1, 32>}, {transform_indices = @transform_14, window_bounds = array<i64: 1, 8, 32>}]} {
    %c0_i32 = arith.constant 0 : i32
    %0 = arith.cmpi eq, %arg1, %c0_i32 : i32
    %1 = arith.extui %0 : i1 to i32
    %c0_i32_0 = arith.constant 0 : i32
    %2 = arith.cmpi ne, %1, %c0_i32_0 : i32
    scf.if %2 {
      %c0_64 = arith.constant 0 : index
      %c0_65 = arith.constant 0 : index
      %c0_66 = arith.constant 0 : index
      %159 = vector.load %arg2[%c0_64, %c0_65, %c0_66] : memref<1x8x32xf32, #tpu.memory_space<vmem>>, vector<1x8x32xf32>
      %160 = vector.shape_cast %159 : vector<1x8x32xf32> to vector<8x32xf32>
      %c0_67 = arith.constant 0 : index
      %c0_68 = arith.constant 0 : index
      %161 = vector.load %arg17[%c0_67, %c0_68] : memref<8x32xf32, #tpu.memory_space<vmem>>, vector<8x32xf32>
      tpu.vector_store %arg17[%c0_67, %c0_68], %160 {strides = array<i32>} : memref<8x32xf32, #tpu.memory_space<vmem>>, vector<8x32xf32>,
    } else {
    }
    %c0 = arith.constant 0 : index
    %c0_1 = arith.constant 0 : index
    %3 = vector.load %arg17[%c0, %c0_1] : memref<8x32xf32, #tpu.memory_space<vmem>>, vector<8x32xf32>
    %c0_2 = arith.constant 0 : index
    %c0_3 = arith.constant 0 : index
    %c0_4 = arith.constant 0 : index
    %4 = vector.load %arg3[%c0_2, %c0_3, %c0_4] : memref<1x1x8xf32, #tpu.memory_space<vmem>>, vector<1x1x8xf32>
    %5 = vector.shape_cast %4 : vector<1x1x8xf32> to vector<1x8xf32>
    %6 = vector.shape_cast %5 : vector<1x8xf32> to vector<1x8xf32>
    %7 = vector.broadcast %6 : vector<1x8xf32> to vector<8x8xf32>
    %8 = arith.truncf %3 : vector<8x32xf32> to vector<8x32xbf16>
    %c0_5 = arith.constant 0 : index
    %c0_6 = arith.constant 0 : index
    %c0_7 = arith.constant 0 : index
    %9 = vector.load %arg4[%c0_5, %c0_6, %c0_7] : memref<1x32x96xbf16, #tpu.memory_space<vmem>>, vector<1x32x96xbf16>
    %10 = vector.shape_cast %9 : vector<1x32x96xbf16> to vector<32x96xbf16>
    %cst = arith.constant dense<0.000000e+00> : vector<8x96xf32>
    %11 = tpu.matmul %8, %10, %cst {dimension_numbers = #tpu.dot_dimension_numbers<[1], [0], [0], [1], [0, 0, 1, 1], [], []>} : vector<8x32xbf16>, vector<32x96xbf16>, vector<8x96xf32> -> vector<8x96xf32>
    %c0_8 = arith.constant 0 : index
    %c0_9 = arith.constant 0 : index
    %c0_10 = arith.constant 0 : index
    %12 = vector.load %arg5[%c0_8, %c0_9, %c0_10] : memref<1x1x96xf32, #tpu.memory_space<vmem>>, vector<1x1x96xf32>
    %13 = vector.shape_cast %12 : vector<1x1x96xf32> to vector<1x96xf32>
    %14 = vector.broadcast %13 : vector<1x96xf32> to vector<8x96xf32>
    %15 = arith.addf %11, %14 : vector<8x96xf32>
    %16 = vector.extract_strided_slice %15 {offsets = [0, 0], sizes = [8, 32], strides = [1, 1]} : vector<8x96xf32> to vector<8x32xf32>
    %17 = arith.truncf %16 : vector<8x32xf32> to vector<8x32xbf16>
    %18 = vector.extract_strided_slice %17 {offsets = [0, 0], sizes = [8, 8], strides = [1, 1]} : vector<8x32xbf16> to vector<8x8xbf16>
    %19 = vector.extract_strided_slice %17 {offsets = [0, 8], sizes = [8, 8], strides = [1, 1]} : vector<8x32xbf16> to vector<8x8xbf16>
    %20 = vector.extract_strided_slice %17 {offsets = [0, 16], sizes = [8, 8], strides = [1, 1]} : vector<8x32xbf16> to vector<8x8xbf16>
    %21 = vector.extract_strided_slice %17 {offsets = [0, 24], sizes = [8, 8], strides = [1, 1]} : vector<8x32xbf16> to vector<8x8xbf16>
    %22 = vector.shape_cast %18 : vector<8x8xbf16> to vector<1x8x8xbf16>
    %23 = vector.shape_cast %19 : vector<8x8xbf16> to vector<1x8x8xbf16>
    %24 = vector.shape_cast %20 : vector<8x8xbf16> to vector<1x8x8xbf16>
    %25 = vector.shape_cast %21 : vector<8x8xbf16> to vector<1x8x8xbf16>
    %26 = tpu.concatenate %22, %23, %24, %25 in 0 : vector<1x8x8xbf16>, vector<1x8x8xbf16>, vector<1x8x8xbf16>, vector<1x8x8xbf16> -> vector<4x8x8xbf16>
    %27 = vector.extract_strided_slice %15 {offsets = [0, 32], sizes = [8, 32], strides = [1, 1]} : vector<8x96xf32> to vector<8x32xf32>
    %28 = arith.truncf %27 : vector<8x32xf32> to vector<8x32xbf16>
    %29 = vector.extract_strided_slice %28 {offsets = [0, 0], sizes = [8, 8], strides = [1, 1]} : vector<8x32xbf16> to vector<8x8xbf16>
    %30 = vector.extract_strided_slice %28 {offsets = [0, 8], sizes = [8, 8], strides = [1, 1]} : vector<8x32xbf16> to vector<8x8xbf16>
    %31 = vector.extract_strided_slice %28 {offsets = [0, 16], sizes = [8, 8], strides = [1, 1]} : vector<8x32xbf16> to vector<8x8xbf16>
    %32 = vector.extract_strided_slice %28 {offsets = [0, 24], sizes = [8, 8], strides = [1, 1]} : vector<8x32xbf16> to vector<8x8xbf16>
    %33 = vector.shape_cast %29 : vector<8x8xbf16> to vector<1x8x8xbf16>
    %34 = vector.shape_cast %30 : vector<8x8xbf16> to vector<1x8x8xbf16>
    %35 = vector.shape_cast %31 : vector<8x8xbf16> to vector<1x8x8xbf16>
    %36 = vector.shape_cast %32 : vector<8x8xbf16> to vector<1x8x8xbf16>
    %37 = tpu.concatenate %33, %34, %35, %36 in 0 : vector<1x8x8xbf16>, vector<1x8x8xbf16>, vector<1x8x8xbf16>, vector<1x8x8xbf16> -> vector<4x8x8xbf16>
    %38 = vector.extract_strided_slice %15 {offsets = [0, 64], sizes = [8, 32], strides = [1, 1]} : vector<8x96xf32> to vector<8x32xf32>
    %39 = arith.truncf %38 : vector<8x32xf32> to vector<8x32xbf16>
    %40 = vector.extract_strided_slice %39 {offsets = [0, 0], sizes = [8, 8], strides = [1, 1]} : vector<8x32xbf16> to vector<8x8xbf16>
    %41 = vector.extract_strided_slice %39 {offsets = [0, 8], sizes = [8, 8], strides = [1, 1]} : vector<8x32xbf16> to vector<8x8xbf16>
    %42 = vector.extract_strided_slice %39 {offsets = [0, 16], sizes = [8, 8], strides = [1, 1]} : vector<8x32xbf16> to vector<8x8xbf16>
    %43 = vector.extract_strided_slice %39 {offsets = [0, 24], sizes = [8, 8], strides = [1, 1]} : vector<8x32xbf16> to vector<8x8xbf16>
    %44 = vector.shape_cast %40 : vector<8x8xbf16> to vector<1x8x8xbf16>
    %45 = vector.shape_cast %41 : vector<8x8xbf16> to vector<1x8x8xbf16>
    %46 = vector.shape_cast %42 : vector<8x8xbf16> to vector<1x8x8xbf16>
    %47 = vector.shape_cast %43 : vector<8x8xbf16> to vector<1x8x8xbf16>
    %48 = tpu.concatenate %44, %45, %46, %47 in 0 : vector<1x8x8xbf16>, vector<1x8x8xbf16>, vector<1x8x8xbf16>, vector<1x8x8xbf16> -> vector<4x8x8xbf16>
    %c0_11 = arith.constant 0 : index
    %c0_12 = arith.constant 0 : index
    %c0_13 = arith.constant 0 : index
    %49 = vector.load %arg6[%c0_11, %c0_12, %c0_13] : memref<1x32x32xbf16, #tpu.memory_space<vmem>>, vector<1x32x32xbf16>
    %50 = vector.shape_cast %49 : vector<1x32x32xbf16> to vector<32x32xbf16>
    %c0_14 = arith.constant 0 : index
    %c0_15 = arith.constant 0 : index
    %c0_16 = arith.constant 0 : index
    %51 = vector.load %arg7[%c0_14, %c0_15, %c0_16] : memref<1x1x32xf32, #tpu.memory_space<vmem>>, vector<1x1x32xf32>
    %52 = vector.shape_cast %51 : vector<1x1x32xf32> to vector<1x32xf32>
    "tpu.trace_start"() <{level = 10 : i32, message = "hqd,hkd->hqk"}> : () -> ()
    %cst_17 = arith.constant dense<0.000000e+00> : vector<4x8x8xf32>
    %53 = tpu.matmul %26, %37, %cst_17 {dimension_numbers = #tpu.dot_dimension_numbers<[2], [2], [1], [1], [0, 0, 0, 1, 1, 1], [0], [0]>} : vector<4x8x8xbf16>, vector<4x8x8xbf16>, vector<4x8x8xf32> -> vector<4x8x8xf32>
    "tpu.trace_stop"() : () -> ()
    %54 = vector.shape_cast %7 : vector<8x8xf32> to vector<1x8x8xf32>
    %55 = vector.broadcast %54 : vector<1x8x8xf32> to vector<4x8x8xf32>
    %56 = arith.addf %53, %55 : vector<4x8x8xf32>
    %cst_18 = arith.constant dense<0xFF800000> : vector<4x8xf32>
    %57 = vector.multi_reduction <maximumf>, %56, %cst_18 [2] : vector<4x8x8xf32> to vector<4x8xf32>
    %58 = vector.shape_cast %57 : vector<4x8xf32> to vector<4x8x1xf32>
    %59 = vector.broadcast %58 : vector<4x8x1xf32> to vector<4x8x8xf32>
    %60 = arith.subf %56, %59 : vector<4x8x8xf32>
    %61 = math.exp %60 : vector<4x8x8xf32>
    %cst_19 = arith.constant dense<0.000000e+00> : vector<4x8xf32>
    %62 = vector.multi_reduction <add>, %61, %cst_19 [2] : vector<4x8x8xf32> to vector<4x8xf32>
    %63 = vector.shape_cast %62 : vector<4x8xf32> to vector<4x8x1xf32>
    %64 = tpu.reciprocal %63 {approx = true} : vector<4x8x1xf32> -> vector<4x8x1xf32>
    %65 = vector.broadcast %64 : vector<4x8x1xf32> to vector<4x8x8xf32>
    %66 = arith.mulf %61, %65 : vector<4x8x8xf32>
    %67 = arith.truncf %66 : vector<4x8x8xf32> to vector<4x8x8xbf16>
    "tpu.trace_start"() <{level = 10 : i32, message = "hqk,hkd->hqd"}> : () -> ()
    %cst_20 = arith.constant dense<0.000000e+00> : vector<4x8x8xf32>
    %68 = tpu.matmul %67, %48, %cst_20 {dimension_numbers = #tpu.dot_dimension_numbers<[2], [1], [1], [2], [0, 0, 0, 1, 1, 2], [0], [0]>} : vector<4x8x8xbf16>, vector<4x8x8xbf16>, vector<4x8x8xf32> -> vector<4x8x8xf32>
    "tpu.trace_stop"() : () -> ()
    %69 = vector.extract_strided_slice %68 {offsets = [0, 0, 0], sizes = [1, 8, 8], strides = [1, 1, 1]} : vector<4x8x8xf32> to vector<1x8x8xf32>
    %70 = vector.shape_cast %69 : vector<1x8x8xf32> to vector<8x8xf32>
    %71 = vector.extract_strided_slice %68 {offsets = [1, 0, 0], sizes = [1, 8, 8], strides = [1, 1, 1]} : vector<4x8x8xf32> to vector<1x8x8xf32>
    %72 = vector.shape_cast %71 : vector<1x8x8xf32> to vector<8x8xf32>
    %73 = vector.extract_strided_slice %68 {offsets = [2, 0, 0], sizes = [1, 8, 8], strides = [1, 1, 1]} : vector<4x8x8xf32> to vector<1x8x8xf32>
    %74 = vector.shape_cast %73 : vector<1x8x8xf32> to vector<8x8xf32>
    %75 = vector.extract_strided_slice %68 {offsets = [3, 0, 0], sizes = [1, 8, 8], strides = [1, 1, 1]} : vector<4x8x8xf32> to vector<1x8x8xf32>
    %76 = vector.shape_cast %75 : vector<1x8x8xf32> to vector<8x8xf32>
    %77 = tpu.concatenate %70, %72, %74, %76 in 1 : vector<8x8xf32>, vector<8x8xf32>, vector<8x8xf32>, vector<8x8xf32> -> vector<8x32xf32>
    %78 = arith.truncf %77 : vector<8x32xf32> to vector<8x32xbf16>
    %cst_21 = arith.constant dense<0.000000e+00> : vector<8x32xf32>
    %79 = tpu.matmul %78, %50, %cst_21 {dimension_numbers = #tpu.dot_dimension_numbers<[1], [0], [0], [1], [0, 0, 1, 1], [], []>} : vector<8x32xbf16>, vector<32x32xbf16>, vector<8x32xf32> -> vector<8x32xf32>
    %80 = vector.broadcast %52 : vector<1x32xf32> to vector<8x32xf32>
    %81 = arith.addf %79, %80 : vector<8x32xf32>
    %82 = arith.addf %3, %81 : vector<8x32xf32>
    %c0_22 = arith.constant 0 : index
    %c0_23 = arith.constant 0 : index
    %c0_24 = arith.constant 0 : index
    %83 = vector.load %arg8[%c0_22, %c0_23, %c0_24] : memref<1x1x32xf32, #tpu.memory_space<vmem>>, vector<1x1x32xf32>
    %84 = vector.shape_cast %83 : vector<1x1x32xf32> to vector<1x32xf32>
    %c0_25 = arith.constant 0 : index
    %c0_26 = arith.constant 0 : index
    %c0_27 = arith.constant 0 : index
    %85 = vector.load %arg9[%c0_25, %c0_26, %c0_27] : memref<1x1x32xf32, #tpu.memory_space<vmem>>, vector<1x1x32xf32>
    %86 = vector.shape_cast %85 : vector<1x1x32xf32> to vector<1x32xf32>
    %cst_28 = arith.constant dense<0.000000e+00> : vector<8xf32>
    %87 = vector.multi_reduction <add>, %82, %cst_28 [1] : vector<8x32xf32> to vector<8xf32>
    %88 = vector.shape_cast %87 : vector<8xf32> to vector<8x1xf32>
    %cst_29 = arith.constant 3.200000e+01 : f32
    %89 = vector.broadcast %cst_29 : f32 to vector<8x1xf32>
    %90 = arith.divf %88, %89 : vector<8x1xf32>
    %91 = vector.broadcast %90 : vector<8x1xf32> to vector<8x32xf32>
    %92 = arith.subf %82, %91 : vector<8x32xf32>
    %93 = arith.mulf %92, %92 : vector<8x32xf32>
    %cst_30 = arith.constant dense<0.000000e+00> : vector<8xf32>
    %94 = vector.multi_reduction <add>, %93, %cst_30 [1] : vector<8x32xf32> to vector<8xf32>
    %95 = vector.shape_cast %94 : vector<8xf32> to vector<8x1xf32>
    %cst_31 = arith.constant 3.200000e+01 : f32
    %96 = vector.broadcast %cst_31 : f32 to vector<8x1xf32>
    %97 = arith.divf %95, %96 : vector<8x1xf32>
    %98 = vector.broadcast %90 : vector<8x1xf32> to vector<8x32xf32>
    %99 = arith.subf %82, %98 : vector<8x32xf32>
    %cst_32 = arith.constant 9.99999974E-6 : f32
    %100 = vector.broadcast %cst_32 : f32 to vector<8x1xf32>
    %101 = arith.addf %97, %100 : vector<8x1xf32>
    %102 = math.rsqrt %101 : vector<8x1xf32>
    %103 = vector.broadcast %102 : vector<8x1xf32> to vector<8x32xf32>
    %104 = arith.mulf %99, %103 : vector<8x32xf32>
    %105 = vector.broadcast %84 : vector<1x32xf32> to vector<8x32xf32>
    %106 = arith.mulf %104, %105 : vector<8x32xf32>
    %107 = vector.broadcast %86 : vector<1x32xf32> to vector<8x32xf32>
    %108 = arith.addf %106, %107 : vector<8x32xf32>
    %c0_33 = arith.constant 0 : index
    %c0_34 = arith.constant 0 : index
    %c0_35 = arith.constant 0 : index
    %109 = vector.load %arg10[%c0_33, %c0_34, %c0_35] : memref<1x32x64xbf16, #tpu.memory_space<vmem>>, vector<1x32x64xbf16>
    %110 = vector.shape_cast %109 : vector<1x32x64xbf16> to vector<32x64xbf16>
    %c0_36 = arith.constant 0 : index
    %c0_37 = arith.constant 0 : index
    %c0_38 = arith.constant 0 : index
    %111 = vector.load %arg11[%c0_36, %c0_37, %c0_38] : memref<1x1x64xf32, #tpu.memory_space<vmem>>, vector<1x1x64xf32>
    %112 = vector.shape_cast %111 : vector<1x1x64xf32> to vector<1x64xf32>
    %c0_39 = arith.constant 0 : index
    %c0_40 = arith.constant 0 : index
    %c0_41 = arith.constant 0 : index
    %113 = vector.load %arg12[%c0_39, %c0_40, %c0_41] : memref<1x64x32xbf16, #tpu.memory_space<vmem>>, vector<1x64x32xbf16>
    %114 = vector.shape_cast %113 : vector<1x64x32xbf16> to vector<64x32xbf16>
    %c0_42 = arith.constant 0 : index
    %c0_43 = arith.constant 0 : index
    %c0_44 = arith.constant 0 : index
    %115 = vector.load %arg13[%c0_42, %c0_43, %c0_44] : memref<1x1x32xf32, #tpu.memory_space<vmem>>, vector<1x1x32xf32>
    %116 = vector.shape_cast %115 : vector<1x1x32xf32> to vector<1x32xf32>
    %117 = arith.truncf %108 : vector<8x32xf32> to vector<8x32xbf16>
    %cst_45 = arith.constant dense<0.000000e+00> : vector<8x64xf32>
    %118 = tpu.matmul %117, %110, %cst_45 {dimension_numbers = #tpu.dot_dimension_numbers<[1], [0], [0], [1], [0, 0, 1, 1], [], []>} : vector<8x32xbf16>, vector<32x64xbf16>, vector<8x64xf32> -> vector<8x64xf32>
    %119 = vector.broadcast %112 : vector<1x64xf32> to vector<8x64xf32>
    %120 = arith.addf %118, %119 : vector<8x64xf32>
    %cst_46 = arith.constant 0.000000e+00 : f32
    %121 = vector.broadcast %cst_46 : f32 to vector<8x64xf32>
    %122 = arith.maximumf %120, %121 : vector<8x64xf32>
    %123 = arith.truncf %122 : vector<8x64xf32> to vector<8x64xbf16>
    %cst_47 = arith.constant dense<0.000000e+00> : vector<8x32xf32>
    %124 = tpu.matmul %123, %114, %cst_47 {dimension_numbers = #tpu.dot_dimension_numbers<[1], [0], [0], [1], [0, 0, 1, 1], [], []>} : vector<8x64xbf16>, vector<64x32xbf16>, vector<8x32xf32> -> vector<8x32xf32>
    %125 = vector.broadcast %116 : vector<1x32xf32> to vector<8x32xf32>
    %126 = arith.addf %124, %125 : vector<8x32xf32>
    %127 = arith.addf %108, %126 : vector<8x32xf32>
    %c0_48 = arith.constant 0 : index
    %c0_49 = arith.constant 0 : index
    %c0_50 = arith.constant 0 : index
    %128 = vector.load %arg14[%c0_48, %c0_49, %c0_50] : memref<1x1x32xf32, #tpu.memory_space<vmem>>, vector<1x1x32xf32>
    %129 = vector.shape_cast %128 : vector<1x1x32xf32> to vector<1x32xf32>
    %c0_51 = arith.constant 0 : index
    %c0_52 = arith.constant 0 : index
    %c0_53 = arith.constant 0 : index
    %130 = vector.load %arg15[%c0_51, %c0_52, %c0_53] : memref<1x1x32xf32, #tpu.memory_space<vmem>>, vector<1x1x32xf32>
    %131 = vector.shape_cast %130 : vector<1x1x32xf32> to vector<1x32xf32>
    %cst_54 = arith.constant dense<0.000000e+00> : vector<8xf32>
    %132 = vector.multi_reduction <add>, %127, %cst_54 [1] : vector<8x32xf32> to vector<8xf32>
    %133 = vector.shape_cast %132 : vector<8xf32> to vector<8x1xf32>
    %cst_55 = arith.constant 3.200000e+01 : f32
    %134 = vector.broadcast %cst_55 : f32 to vector<8x1xf32>
    %135 = arith.divf %133, %134 : vector<8x1xf32>
    %136 = vector.broadcast %135 : vector<8x1xf32> to vector<8x32xf32>
    %137 = arith.subf %127, %136 : vector<8x32xf32>
    %138 = arith.mulf %137, %137 : vector<8x32xf32>
    %cst_56 = arith.constant dense<0.000000e+00> : vector<8xf32>
    %139 = vector.multi_reduction <add>, %138, %cst_56 [1] : vector<8x32xf32> to vector<8xf32>
    %140 = vector.shape_cast %139 : vector<8xf32> to vector<8x1xf32>
    %cst_57 = arith.constant 3.200000e+01 : f32
    %141 = vector.broadcast %cst_57 : f32 to vector<8x1xf32>
    %142 = arith.divf %140, %141 : vector<8x1xf32>
    %143 = vector.broadcast %135 : vector<8x1xf32> to vector<8x32xf32>
    %144 = arith.subf %127, %143 : vector<8x32xf32>
    %cst_58 = arith.constant 9.99999974E-6 : f32
    %145 = vector.broadcast %cst_58 : f32 to vector<8x1xf32>
    %146 = arith.addf %142, %145 : vector<8x1xf32>
    %147 = math.rsqrt %146 : vector<8x1xf32>
    %148 = vector.broadcast %147 : vector<8x1xf32> to vector<8x32xf32>
    %149 = arith.mulf %144, %148 : vector<8x32xf32>
    %150 = vector.broadcast %129 : vector<1x32xf32> to vector<8x32xf32>
    %151 = arith.mulf %149, %150 : vector<8x32xf32>
    %152 = vector.broadcast %131 : vector<1x32xf32> to vector<8x32xf32>
    %153 = arith.addf %151, %152 : vector<8x32xf32>
    %c0_59 = arith.constant 0 : index
    %c0_60 = arith.constant 0 : index
    %154 = vector.load %arg17[%c0_59, %c0_60] : memref<8x32xf32, #tpu.memory_space<vmem>>, vector<8x32xf32>
    tpu.vector_store %arg17[%c0_59, %c0_60], %153 {strides = array<i32>} : memref<8x32xf32, #tpu.memory_space<vmem>>, vector<8x32xf32>,
    %155 = arith.truncf %153 : vector<8x32xf32> to vector<8x32xbf16>
    %c0_61 = arith.constant 0 : index
    %c0_62 = arith.constant 0 : index
    %c0_63 = arith.constant 0 : index
    %156 = vector.load %arg16[%c0_61, %c0_62, %c0_63] : memref<1x8x32xbf16, #tpu.memory_space<vmem>>, vector<1x8x32xbf16>
    %157 = vector.shape_cast %156 : vector<1x8x32xbf16> to vector<8x32xbf16>
    %158 = vector.shape_cast %155 : vector<8x32xbf16> to vector<1x8x32xbf16>
    tpu.vector_store %arg16[%c0_61, %c0_62, %c0_63], %158 {strides = array<i32>} : memref<1x8x32xbf16, #tpu.memory_space<vmem>>, vector<1x8x32xbf16>,
    return
  }
  func.func @transform_0(%arg0: i32, %arg1: i32) -> (i32, i32, i32) {
    %c0_i32 = arith.constant 0 : i32
    %c0_i32_0 = arith.constant 0 : i32
    %c0_i32_1 = arith.constant 0 : i32
    return %arg0, %c0_i32, %c0_i32_0 : i32, i32, i32
  }
  func.func @transform_1(%arg0: i32, %arg1: i32) -> (i32, i32, i32) {
    %c0_i32 = arith.constant 0 : i32
    %c0_i32_0 = arith.constant 0 : i32
    %c0_i32_1 = arith.constant 0 : i32
    return %arg0, %c0_i32, %c0_i32_0 : i32, i32, i32
  }
  func.func @transform_2(%arg0: i32, %arg1: i32) -> (i32, i32, i32) {
    %c0_i32 = arith.constant 0 : i32
    %c0_i32_0 = arith.constant 0 : i32
    %c0_i32_1 = arith.constant 0 : i32
    return %arg1, %c0_i32, %c0_i32_0 : i32, i32, i32
  }
  func.func @transform_3(%arg0: i32, %arg1: i32) -> (i32, i32, i32) {
    %c0_i32 = arith.constant 0 : i32
    %c0_i32_0 = arith.constant 0 : i32
    %c0_i32_1 = arith.constant 0 : i32
    return %arg1, %c0_i32, %c0_i32_0 : i32, i32, i32
  }
  func.func @transform_4(%arg0: i32, %arg1: i32) -> (i32, i32, i32) {
    %c0_i32 = arith.constant 0 : i32
    %c0_i32_0 = arith.constant 0 : i32
    %c0_i32_1 = arith.constant 0 : i32
    return %arg1, %c0_i32, %c0_i32_0 : i32, i32, i32
  }
  func.func @transform_5(%arg0: i32, %arg1: i32) -> (i32, i32, i32) {
    %c0_i32 = arith.constant 0 : i32
    %c0_i32_0 = arith.constant 0 : i32
    %c0_i32_1 = arith.constant 0 : i32
    return %arg1, %c0_i32, %c0_i32_0 : i32, i32, i32
  }
  func.func @transform_6(%arg0: i32, %arg1: i32) -> (i32, i32, i32) {
    %c0_i32 = arith.constant 0 : i32
    %c0_i32_0 = arith.constant 0 : i32
    %c0_i32_1 = arith.constant 0 : i32
    return %arg1, %c0_i32, %c0_i32_0 : i32, i32, i32
  }
  func.func @transform_7(%arg0: i32, %arg1: i32) -> (i32, i32, i32) {
    %c0_i32 = arith.constant 0 : i32
    %c0_i32_0 = arith.constant 0 : i32
    %c0_i32_1 = arith.constant 0 : i32
    return %arg1, %c0_i32, %c0_i32_0 : i32, i32, i32
  }
  func.func @transform_8(%arg0: i32, %arg1: i32) -> (i32, i32, i32) {
    %c0_i32 = arith.constant 0 : i32
    %c0_i32_0 = arith.constant 0 : i32
    %c0_i32_1 = arith.constant 0 : i32
    return %arg1, %c0_i32, %c0_i32_0 : i32, i32, i32
  }
  func.func @transform_9(%arg0: i32, %arg1: i32) -> (i32, i32, i32) {
    %c0_i32 = arith.constant 0 : i32
    %c0_i32_0 = arith.constant 0 : i32
    %c0_i32_1 = arith.constant 0 : i32
    return %arg1, %c0_i32, %c0_i32_0 : i32, i32, i32
  }
  func.func @transform_10(%arg0: i32, %arg1: i32) -> (i32, i32, i32) {
    %c0_i32 = arith.constant 0 : i32
    %c0_i32_0 = arith.constant 0 : i32
    %c0_i32_1 = arith.constant 0 : i32
    return %arg1, %c0_i32, %c0_i32_0 : i32, i32, i32
  }
  func.func @transform_11(%arg0: i32, %arg1: i32) -> (i32, i32, i32) {
    %c0_i32 = arith.constant 0 : i32
    %c0_i32_0 = arith.constant 0 : i32
    %c0_i32_1 = arith.constant 0 : i32
    return %arg1, %c0_i32, %c0_i32_0 : i32, i32, i32
  }
  func.func @transform_12(%arg0: i32, %arg1: i32) -> (i32, i32, i32) {
    %c0_i32 = arith.constant 0 : i32
    %c0_i32_0 = arith.constant 0 : i32
    %c0_i32_1 = arith.constant 0 : i32
    return %arg1, %c0_i32, %c0_i32_0 : i32, i32, i32
  }
  func.func @transform_13(%arg0: i32, %arg1: i32) -> (i32, i32, i32) {
    %c0_i32 = arith.constant 0 : i32
    %c0_i32_0 = arith.constant 0 : i32
    %c0_i32_1 = arith.constant 0 : i32
    return %arg1, %c0_i32, %c0_i32_0 : i32, i32, i32
  }
  func.func @transform_14(%arg0: i32, %arg1: i32) -> (i32, i32, i32) {
    %c0_i32 = arith.constant 0 : i32
    %c0_i32_0 = arith.constant 0 : i32
    %c0_i32_1 = arith.constant 0 : i32
    return %arg0, %c0_i32, %c0_i32_0 : i32, i32, i32
  }
}

module attributes {stable_mosaic.version = 11 : i64} {
  func.func @_decoder_stack_kernel(%arg0: i32, %arg1: i32, %arg2: memref<1x8x32xf32, #tpu.memory_space<vmem>>, %arg3: memref<1x8x32xbf16, #tpu.memory_space<vmem>>, %arg4: memref<1x1x8xf32, #tpu.memory_space<vmem>>, %arg5: memref<1x1x8xf32, #tpu.memory_space<vmem>>, %arg6: memref<1x32x96xbf16, #tpu.memory_space<vmem>>, %arg7: memref<1x1x96xf32, #tpu.memory_space<vmem>>, %arg8: memref<1x32x32xbf16, #tpu.memory_space<vmem>>, %arg9: memref<1x1x32xf32, #tpu.memory_space<vmem>>, %arg10: memref<1x1x32xf32, #tpu.memory_space<vmem>>, %arg11: memref<1x1x32xf32, #tpu.memory_space<vmem>>, %arg12: memref<1x32x32xbf16, #tpu.memory_space<vmem>>, %arg13: memref<1x1x32xf32, #tpu.memory_space<vmem>>, %arg14: memref<1x32x64xbf16, #tpu.memory_space<vmem>>, %arg15: memref<1x1x64xf32, #tpu.memory_space<vmem>>, %arg16: memref<1x32x32xbf16, #tpu.memory_space<vmem>>, %arg17: memref<1x1x32xf32, #tpu.memory_space<vmem>>, %arg18: memref<1x1x32xf32, #tpu.memory_space<vmem>>, %arg19: memref<1x1x32xf32, #tpu.memory_space<vmem>>, %arg20: memref<1x32x64xbf16, #tpu.memory_space<vmem>>, %arg21: memref<1x1x64xf32, #tpu.memory_space<vmem>>, %arg22: memref<1x64x32xbf16, #tpu.memory_space<vmem>>, %arg23: memref<1x1x32xf32, #tpu.memory_space<vmem>>, %arg24: memref<1x1x32xf32, #tpu.memory_space<vmem>>, %arg25: memref<1x1x32xf32, #tpu.memory_space<vmem>>, %arg26: memref<1x8x32xbf16, #tpu.memory_space<vmem>>, %arg27: memref<1x4x8x8xf32, #tpu.memory_space<vmem>>, %arg28: memref<8x32xf32, #tpu.memory_space<vmem>>) attributes {dimension_semantics = [#tpu.dimension_semantics<parallel>, #tpu.dimension_semantics<arbitrary>], iteration_bounds = array<i64: 2, 2>, scalar_prefetch = 0 : i64, scratch_operands = 1 : i64, tpu.core_type = #tpu.core_type<tc>, window_params = [{transform_indices = @transform_0, window_bounds = array<i64: 1, 8, 32>}, {transform_indices = @transform_1, window_bounds = array<i64: 1, 8, 32>}, {transform_indices = @transform_2, window_bounds = array<i64: 1, 1, 8>}, {transform_indices = @transform_3, window_bounds = array<i64: 1, 1, 8>}, {transform_indices = @transform_4, window_bounds = array<i64: 1, 32, 96>}, {transform_indices = @transform_5, window_bounds = array<i64: 1, 1, 96>}, {transform_indices = @transform_6, window_bounds = array<i64: 1, 32, 32>}, {transform_indices = @transform_7, window_bounds = array<i64: 1, 1, 32>}, {transform_indices = @transform_8, window_bounds = array<i64: 1, 1, 32>}, {transform_indices = @transform_9, window_bounds = array<i64: 1, 1, 32>}, {transform_indices = @transform_10, window_bounds = array<i64: 1, 32, 32>}, {transform_indices = @transform_11, window_bounds = array<i64: 1, 1, 32>}, {transform_indices = @transform_12, window_bounds = array<i64: 1, 32, 64>}, {transform_indices = @transform_13, window_bounds = array<i64: 1, 1, 64>}, {transform_indices = @transform_14, window_bounds = array<i64: 1, 32, 32>}, {transform_indices = @transform_15, window_bounds = array<i64: 1, 1, 32>}, {transform_indices = @transform_16, window_bounds = array<i64: 1, 1, 32>}, {transform_indices = @transform_17, window_bounds = array<i64: 1, 1, 32>}, {transform_indices = @transform_18, window_bounds = array<i64: 1, 32, 64>}, {transform_indices = @transform_19, window_bounds = array<i64: 1, 1, 64>}, {transform_indices = @transform_20, window_bounds = array<i64: 1, 64, 32>}, {transform_indices = @transform_21, window_bounds = array<i64: 1, 1, 32>}, {transform_indices = @transform_22, window_bounds = array<i64: 1, 1, 32>}, {transform_indices = @transform_23, window_bounds = array<i64: 1, 1, 32>}, {transform_indices = @transform_24, window_bounds = array<i64: 1, 8, 32>}, {transform_indices = @transform_25, window_bounds = array<i64: 1, 4, 8, 8>}]} {
    %c1_i32 = arith.constant 1 : i32
    %0 = arith.cmpi eq, %arg1, %c1_i32 : i32
    %c0_i32 = arith.constant 0 : i32
    %1 = arith.cmpi eq, %arg1, %c0_i32 : i32
    %2 = arith.extui %1 : i1 to i32
    %c0_i32_0 = arith.constant 0 : i32
    %3 = arith.cmpi ne, %2, %c0_i32_0 : i32
    scf.if %3 {
      %c0_109 = arith.constant 0 : index
      %c0_110 = arith.constant 0 : index
      %c0_111 = arith.constant 0 : index
      %282 = vector.load %arg2[%c0_109, %c0_110, %c0_111] : memref<1x8x32xf32, #tpu.memory_space<vmem>>, vector<1x8x32xf32>
      %283 = vector.shape_cast %282 : vector<1x8x32xf32> to vector<8x32xf32>
      %c0_112 = arith.constant 0 : index
      %c0_113 = arith.constant 0 : index
      %284 = vector.load %arg28[%c0_112, %c0_113] : memref<8x32xf32, #tpu.memory_space<vmem>>, vector<8x32xf32>
      tpu.vector_store %arg28[%c0_112, %c0_113], %283 {strides = array<i32>} : memref<8x32xf32, #tpu.memory_space<vmem>>, vector<8x32xf32>,
    } else {
    }
    %c0 = arith.constant 0 : index
    %c0_1 = arith.constant 0 : index
    %4 = vector.load %arg28[%c0, %c0_1] : memref<8x32xf32, #tpu.memory_space<vmem>>, vector<8x32xf32>
    %c0_2 = arith.constant 0 : index
    %c0_3 = arith.constant 0 : index
    %c0_4 = arith.constant 0 : index
    %5 = vector.load %arg3[%c0_2, %c0_3, %c0_4] : memref<1x8x32xbf16, #tpu.memory_space<vmem>>, vector<1x8x32xbf16>
    %6 = vector.shape_cast %5 : vector<1x8x32xbf16> to vector<8x32xbf16>
    %7 = tpu.iota {dimensions = array<i32: 0>} : vector<8x8xi32>
    %8 = tpu.iota {dimensions = array<i32: 1>} : vector<8x8xi32>
    %9 = arith.cmpi sle, %8, %7 : vector<8x8xi32>
    %cst = arith.constant 0.000000e+00 : f32
    %cst_5 = arith.constant -1.000000e+10 : f32
    %10 = vector.broadcast %cst : f32 to vector<8x8xf32>
    %11 = vector.broadcast %cst_5 : f32 to vector<8x8xf32>
    %12 = arith.select %9, %10, %11 : vector<8x8xi1>, vector<8x8xf32>
    %c0_6 = arith.constant 0 : index
    %c0_7 = arith.constant 0 : index
    %c0_8 = arith.constant 0 : index
    %13 = vector.load %arg4[%c0_6, %c0_7, %c0_8] : memref<1x1x8xf32, #tpu.memory_space<vmem>>, vector<1x1x8xf32>
    %14 = vector.shape_cast %13 : vector<1x1x8xf32> to vector<1x8xf32>
    %15 = vector.shape_cast %14 : vector<1x8xf32> to vector<1x8xf32>
    %16 = vector.broadcast %15 : vector<1x8xf32> to vector<8x8xf32>
    %17 = arith.addf %12, %16 : vector<8x8xf32>
    %c0_9 = arith.constant 0 : index
    %c0_10 = arith.constant 0 : index
    %c0_11 = arith.constant 0 : index
    %18 = vector.load %arg5[%c0_9, %c0_10, %c0_11] : memref<1x1x8xf32, #tpu.memory_space<vmem>>, vector<1x1x8xf32>
    %19 = vector.shape_cast %18 : vector<1x1x8xf32> to vector<1x8xf32>
    %20 = vector.shape_cast %19 : vector<1x8xf32> to vector<1x8xf32>
    %21 = vector.broadcast %20 : vector<1x8xf32> to vector<8x8xf32>
    %22 = arith.truncf %4 : vector<8x32xf32> to vector<8x32xbf16>
    %c0_12 = arith.constant 0 : index
    %c0_13 = arith.constant 0 : index
    %c0_14 = arith.constant 0 : index
    %23 = vector.load %arg6[%c0_12, %c0_13, %c0_14] : memref<1x32x96xbf16, #tpu.memory_space<vmem>>, vector<1x32x96xbf16>
    %24 = vector.shape_cast %23 : vector<1x32x96xbf16> to vector<32x96xbf16>
    %cst_15 = arith.constant dense<0.000000e+00> : vector<8x96xf32>
    %25 = tpu.matmul %22, %24, %cst_15 {dimension_numbers = #tpu.dot_dimension_numbers<[1], [0], [0], [1], [0, 0, 1, 1], [], []>} : vector<8x32xbf16>, vector<32x96xbf16>, vector<8x96xf32> -> vector<8x96xf32>
    %c0_16 = arith.constant 0 : index
    %c0_17 = arith.constant 0 : index
    %c0_18 = arith.constant 0 : index
    %26 = vector.load %arg7[%c0_16, %c0_17, %c0_18] : memref<1x1x96xf32, #tpu.memory_space<vmem>>, vector<1x1x96xf32>
    %27 = vector.shape_cast %26 : vector<1x1x96xf32> to vector<1x96xf32>
    %28 = vector.broadcast %27 : vector<1x96xf32> to vector<8x96xf32>
    %29 = arith.addf %25, %28 : vector<8x96xf32>
    %30 = vector.extract_strided_slice %29 {offsets = [0, 0], sizes = [8, 32], strides = [1, 1]} : vector<8x96xf32> to vector<8x32xf32>
    %31 = arith.truncf %30 : vector<8x32xf32> to vector<8x32xbf16>
    %32 = vector.extract_strided_slice %31 {offsets = [0, 0], sizes = [8, 8], strides = [1, 1]} : vector<8x32xbf16> to vector<8x8xbf16>
    %33 = vector.extract_strided_slice %31 {offsets = [0, 8], sizes = [8, 8], strides = [1, 1]} : vector<8x32xbf16> to vector<8x8xbf16>
    %34 = vector.extract_strided_slice %31 {offsets = [0, 16], sizes = [8, 8], strides = [1, 1]} : vector<8x32xbf16> to vector<8x8xbf16>
    %35 = vector.extract_strided_slice %31 {offsets = [0, 24], sizes = [8, 8], strides = [1, 1]} : vector<8x32xbf16> to vector<8x8xbf16>
    %36 = vector.shape_cast %32 : vector<8x8xbf16> to vector<1x8x8xbf16>
    %37 = vector.shape_cast %33 : vector<8x8xbf16> to vector<1x8x8xbf16>
    %38 = vector.shape_cast %34 : vector<8x8xbf16> to vector<1x8x8xbf16>
    %39 = vector.shape_cast %35 : vector<8x8xbf16> to vector<1x8x8xbf16>
    %40 = tpu.concatenate %36, %37, %38, %39 in 0 : vector<1x8x8xbf16>, vector<1x8x8xbf16>, vector<1x8x8xbf16>, vector<1x8x8xbf16> -> vector<4x8x8xbf16>
    %41 = vector.extract_strided_slice %29 {offsets = [0, 32], sizes = [8, 32], strides = [1, 1]} : vector<8x96xf32> to vector<8x32xf32>
    %42 = arith.truncf %41 : vector<8x32xf32> to vector<8x32xbf16>
    %43 = vector.extract_strided_slice %42 {offsets = [0, 0], sizes = [8, 8], strides = [1, 1]} : vector<8x32xbf16> to vector<8x8xbf16>
    %44 = vector.extract_strided_slice %42 {offsets = [0, 8], sizes = [8, 8], strides = [1, 1]} : vector<8x32xbf16> to vector<8x8xbf16>
    %45 = vector.extract_strided_slice %42 {offsets = [0, 16], sizes = [8, 8], strides = [1, 1]} : vector<8x32xbf16> to vector<8x8xbf16>
    %46 = vector.extract_strided_slice %42 {offsets = [0, 24], sizes = [8, 8], strides = [1, 1]} : vector<8x32xbf16> to vector<8x8xbf16>
    %47 = vector.shape_cast %43 : vector<8x8xbf16> to vector<1x8x8xbf16>
    %48 = vector.shape_cast %44 : vector<8x8xbf16> to vector<1x8x8xbf16>
    %49 = vector.shape_cast %45 : vector<8x8xbf16> to vector<1x8x8xbf16>
    %50 = vector.shape_cast %46 : vector<8x8xbf16> to vector<1x8x8xbf16>
    %51 = tpu.concatenate %47, %48, %49, %50 in 0 : vector<1x8x8xbf16>, vector<1x8x8xbf16>, vector<1x8x8xbf16>, vector<1x8x8xbf16> -> vector<4x8x8xbf16>
    %52 = vector.extract_strided_slice %29 {offsets = [0, 64], sizes = [8, 32], strides = [1, 1]} : vector<8x96xf32> to vector<8x32xf32>
    %53 = arith.truncf %52 : vector<8x32xf32> to vector<8x32xbf16>
    %54 = vector.extract_strided_slice %53 {offsets = [0, 0], sizes = [8, 8], strides = [1, 1]} : vector<8x32xbf16> to vector<8x8xbf16>
    %55 = vector.extract_strided_slice %53 {offsets = [0, 8], sizes = [8, 8], strides = [1, 1]} : vector<8x32xbf16> to vector<8x8xbf16>
    %56 = vector.extract_strided_slice %53 {offsets = [0, 16], sizes = [8, 8], strides = [1, 1]} : vector<8x32xbf16> to vector<8x8xbf16>
    %57 = vector.extract_strided_slice %53 {offsets = [0, 24], sizes = [8, 8], strides = [1, 1]} : vector<8x32xbf16> to vector<8x8xbf16>
    %58 = vector.shape_cast %54 : vector<8x8xbf16> to vector<1x8x8xbf16>
    %59 = vector.shape_cast %55 : vector<8x8xbf16> to vector<1x8x8xbf16>
    %60 = vector.shape_cast %56 : vector<8x8xbf16> to vector<1x8x8xbf16>
    %61 = vector.shape_cast %57 : vector<8x8xbf16> to vector<1x8x8xbf16>
    %62 = tpu.concatenate %58, %59, %60, %61 in 0 : vector<1x8x8xbf16>, vector<1x8x8xbf16>, vector<1x8x8xbf16>, vector<1x8x8xbf16> -> vector<4x8x8xbf16>
    %c0_19 = arith.constant 0 : index
    %c0_20 = arith.constant 0 : index
    %c0_21 = arith.constant 0 : index
    %63 = vector.load %arg8[%c0_19, %c0_20, %c0_21] : memref<1x32x32xbf16, #tpu.memory_space<vmem>>, vector<1x32x32xbf16>
    %64 = vector.shape_cast %63 : vector<1x32x32xbf16> to vector<32x32xbf16>
    %c0_22 = arith.constant 0 : index
    %c0_23 = arith.constant 0 : index
    %c0_24 = arith.constant 0 : index
    %65 = vector.load %arg9[%c0_22, %c0_23, %c0_24] : memref<1x1x32xf32, #tpu.memory_space<vmem>>, vector<1x1x32xf32>
    %66 = vector.shape_cast %65 : vector<1x1x32xf32> to vector<1x32xf32>
    "tpu.trace_start"() <{level = 10 : i32, message = "hqd,hkd->hqk"}> : () -> ()
    %cst_25 = arith.constant dense<0.000000e+00> : vector<4x8x8xf32>
    %67 = tpu.matmul %40, %51, %cst_25 {dimension_numbers = #tpu.dot_dimension_numbers<[2], [2], [1], [1], [0, 0, 0, 1, 1, 1], [0], [0]>} : vector<4x8x8xbf16>, vector<4x8x8xbf16>, vector<4x8x8xf32> -> vector<4x8x8xf32>
    "tpu.trace_stop"() : () -> ()
    %68 = vector.shape_cast %17 : vector<8x8xf32> to vector<1x8x8xf32>
    %69 = vector.broadcast %68 : vector<1x8x8xf32> to vector<4x8x8xf32>
    %70 = arith.addf %67, %69 : vector<4x8x8xf32>
    %cst_26 = arith.constant dense<0xFF800000> : vector<4x8xf32>
    %71 = vector.multi_reduction <maximumf>, %70, %cst_26 [2] : vector<4x8x8xf32> to vector<4x8xf32>
    %72 = vector.shape_cast %71 : vector<4x8xf32> to vector<4x8x1xf32>
    %73 = vector.broadcast %72 : vector<4x8x1xf32> to vector<4x8x8xf32>
    %74 = arith.subf %70, %73 : vector<4x8x8xf32>
    %75 = math.exp %74 : vector<4x8x8xf32>
    %cst_27 = arith.constant dense<0.000000e+00> : vector<4x8xf32>
    %76 = vector.multi_reduction <add>, %75, %cst_27 [2] : vector<4x8x8xf32> to vector<4x8xf32>
    %77 = vector.shape_cast %76 : vector<4x8xf32> to vector<4x8x1xf32>
    %78 = tpu.reciprocal %77 {approx = true} : vector<4x8x1xf32> -> vector<4x8x1xf32>
    %79 = vector.broadcast %78 : vector<4x8x1xf32> to vector<4x8x8xf32>
    %80 = arith.mulf %75, %79 : vector<4x8x8xf32>
    %81 = arith.truncf %80 : vector<4x8x8xf32> to vector<4x8x8xbf16>
    "tpu.trace_start"() <{level = 10 : i32, message = "hqk,hkd->hqd"}> : () -> ()
    %cst_28 = arith.constant dense<0.000000e+00> : vector<4x8x8xf32>
    %82 = tpu.matmul %81, %62, %cst_28 {dimension_numbers = #tpu.dot_dimension_numbers<[2], [1], [1], [2], [0, 0, 0, 1, 1, 2], [0], [0]>} : vector<4x8x8xbf16>, vector<4x8x8xbf16>, vector<4x8x8xf32> -> vector<4x8x8xf32>
    "tpu.trace_stop"() : () -> ()
    %83 = vector.extract_strided_slice %82 {offsets = [0, 0, 0], sizes = [1, 8, 8], strides = [1, 1, 1]} : vector<4x8x8xf32> to vector<1x8x8xf32>
    %84 = vector.shape_cast %83 : vector<1x8x8xf32> to vector<8x8xf32>
    %85 = vector.extract_strided_slice %82 {offsets = [1, 0, 0], sizes = [1, 8, 8], strides = [1, 1, 1]} : vector<4x8x8xf32> to vector<1x8x8xf32>
    %86 = vector.shape_cast %85 : vector<1x8x8xf32> to vector<8x8xf32>
    %87 = vector.extract_strided_slice %82 {offsets = [2, 0, 0], sizes = [1, 8, 8], strides = [1, 1, 1]} : vector<4x8x8xf32> to vector<1x8x8xf32>
    %88 = vector.shape_cast %87 : vector<1x8x8xf32> to vector<8x8xf32>
    %89 = vector.extract_strided_slice %82 {offsets = [3, 0, 0], sizes = [1, 8, 8], strides = [1, 1, 1]} : vector<4x8x8xf32> to vector<1x8x8xf32>
    %90 = vector.shape_cast %89 : vector<1x8x8xf32> to vector<8x8xf32>
    %91 = tpu.concatenate %84, %86, %88, %90 in 1 : vector<8x8xf32>, vector<8x8xf32>, vector<8x8xf32>, vector<8x8xf32> -> vector<8x32xf32>
    %92 = arith.truncf %91 : vector<8x32xf32> to vector<8x32xbf16>
    %cst_29 = arith.constant dense<0.000000e+00> : vector<8x32xf32>
    %93 = tpu.matmul %92, %64, %cst_29 {dimension_numbers = #tpu.dot_dimension_numbers<[1], [0], [0], [1], [0, 0, 1, 1], [], []>} : vector<8x32xbf16>, vector<32x32xbf16>, vector<8x32xf32> -> vector<8x32xf32>
    %94 = vector.broadcast %66 : vector<1x32xf32> to vector<8x32xf32>
    %95 = arith.addf %93, %94 : vector<8x32xf32>
    %96 = arith.addf %4, %95 : vector<8x32xf32>
    %c0_30 = arith.constant 0 : index
    %c0_31 = arith.constant 0 : index
    %c0_32 = arith.constant 0 : index
    %97 = vector.load %arg10[%c0_30, %c0_31, %c0_32] : memref<1x1x32xf32, #tpu.memory_space<vmem>>, vector<1x1x32xf32>
    %98 = vector.shape_cast %97 : vector<1x1x32xf32> to vector<1x32xf32>
    %c0_33 = arith.constant 0 : index
    %c0_34 = arith.constant 0 : index
    %c0_35 = arith.constant 0 : index
    %99 = vector.load %arg11[%c0_33, %c0_34, %c0_35] : memref<1x1x32xf32, #tpu.memory_space<vmem>>, vector<1x1x32xf32>
    %100 = vector.shape_cast %99 : vector<1x1x32xf32> to vector<1x32xf32>
    %cst_36 = arith.constant dense<0.000000e+00> : vector<8xf32>
    %101 = vector.multi_reduction <add>, %96, %cst_36 [1] : vector<8x32xf32> to vector<8xf32>
    %102 = vector.shape_cast %101 : vector<8xf32> to vector<8x1xf32>
    %cst_37 = arith.constant 3.200000e+01 : f32
    %103 = vector.broadcast %cst_37 : f32 to vector<8x1xf32>
    %104 = arith.divf %102, %103 : vector<8x1xf32>
    %105 = vector.broadcast %104 : vector<8x1xf32> to vector<8x32xf32>
    %106 = arith.subf %96, %105 : vector<8x32xf32>
    %107 = arith.mulf %106, %106 : vector<8x32xf32>
    %cst_38 = arith.constant dense<0.000000e+00> : vector<8xf32>
    %108 = vector.multi_reduction <add>, %107, %cst_38 [1] : vector<8x32xf32> to vector<8xf32>
    %109 = vector.shape_cast %108 : vector<8xf32> to vector<8x1xf32>
    %cst_39 = arith.constant 3.200000e+01 : f32
    %110 = vector.broadcast %cst_39 : f32 to vector<8x1xf32>
    %111 = arith.divf %109, %110 : vector<8x1xf32>
    %112 = vector.broadcast %104 : vector<8x1xf32> to vector<8x32xf32>
    %113 = arith.subf %96, %112 : vector<8x32xf32>
    %cst_40 = arith.constant 9.99999974E-6 : f32
    %114 = vector.broadcast %cst_40 : f32 to vector<8x1xf32>
    %115 = arith.addf %111, %114 : vector<8x1xf32>
    %116 = math.rsqrt %115 : vector<8x1xf32>
    %117 = vector.broadcast %116 : vector<8x1xf32> to vector<8x32xf32>
    %118 = arith.mulf %113, %117 : vector<8x32xf32>
    %119 = vector.broadcast %98 : vector<1x32xf32> to vector<8x32xf32>
    %120 = arith.mulf %118, %119 : vector<8x32xf32>
    %121 = vector.broadcast %100 : vector<1x32xf32> to vector<8x32xf32>
    %122 = arith.addf %120, %121 : vector<8x32xf32>
    %123 = arith.truncf %122 : vector<8x32xf32> to vector<8x32xbf16>
    %c0_41 = arith.constant 0 : index
    %c0_42 = arith.constant 0 : index
    %c0_43 = arith.constant 0 : index
    %124 = vector.load %arg12[%c0_41, %c0_42, %c0_43] : memref<1x32x32xbf16, #tpu.memory_space<vmem>>, vector<1x32x32xbf16>
    %125 = vector.shape_cast %124 : vector<1x32x32xbf16> to vector<32x32xbf16>
    %cst_44 = arith.constant dense<0.000000e+00> : vector<8x32xf32>
    %126 = tpu.matmul %123, %125, %cst_44 {dimension_numbers = #tpu.dot_dimension_numbers<[1], [0], [0], [1], [0, 0, 1, 1], [], []>} : vector<8x32xbf16>, vector<32x32xbf16>, vector<8x32xf32> -> vector<8x32xf32>
    %c0_45 = arith.constant 0 : index
    %c0_46 = arith.constant 0 : index
    %c0_47 = arith.constant 0 : index
    %127 = vector.load %arg13[%c0_45, %c0_46, %c0_47] : memref<1x1x32xf32, #tpu.memory_space<vmem>>, vector<1x1x32xf32>
    %128 = vector.shape_cast %127 : vector<1x1x32xf32> to vector<1x32xf32>
    %129 = vector.broadcast %128 : vector<1x32xf32> to vector<8x32xf32>
    %130 = arith.addf %126, %129 : vector<8x32xf32>
    %c0_48 = arith.constant 0 : index
    %c0_49 = arith.constant 0 : index
    %c0_50 = arith.constant 0 : index
    %131 = vector.load %arg14[%c0_48, %c0_49, %c0_50] : memref<1x32x64xbf16, #tpu.memory_space<vmem>>, vector<1x32x64xbf16>
    %132 = vector.shape_cast %131 : vector<1x32x64xbf16> to vector<32x64xbf16>
    %cst_51 = arith.constant dense<0.000000e+00> : vector<8x64xf32>
    %133 = tpu.matmul %6, %132, %cst_51 {dimension_numbers = #tpu.dot_dimension_numbers<[1], [0], [0], [1], [0, 0, 1, 1], [], []>} : vector<8x32xbf16>, vector<32x64xbf16>, vector<8x64xf32> -> vector<8x64xf32>
    %c0_52 = arith.constant 0 : index
    %c0_53 = arith.constant 0 : index
    %c0_54 = arith.constant 0 : index
    %134 = vector.load %arg15[%c0_52, %c0_53, %c0_54] : memref<1x1x64xf32, #tpu.memory_space<vmem>>, vector<1x1x64xf32>
    %135 = vector.shape_cast %134 : vector<1x1x64xf32> to vector<1x64xf32>
    %136 = vector.broadcast %135 : vector<1x64xf32> to vector<8x64xf32>
    %137 = arith.addf %133, %136 : vector<8x64xf32>
    %138 = arith.truncf %130 : vector<8x32xf32> to vector<8x32xbf16>
    %139 = vector.extract_strided_slice %138 {offsets = [0, 0], sizes = [8, 8], strides = [1, 1]} : vector<8x32xbf16> to vector<8x8xbf16>
    %140 = vector.extract_strided_slice %138 {offsets = [0, 8], sizes = [8, 8], strides = [1, 1]} : vector<8x32xbf16> to vector<8x8xbf16>
    %141 = vector.extract_strided_slice %138 {offsets = [0, 16], sizes = [8, 8], strides = [1, 1]} : vector<8x32xbf16> to vector<8x8xbf16>
    %142 = vector.extract_strided_slice %138 {offsets = [0, 24], sizes = [8, 8], strides = [1, 1]} : vector<8x32xbf16> to vector<8x8xbf16>
    %143 = vector.shape_cast %139 : vector<8x8xbf16> to vector<1x8x8xbf16>
    %144 = vector.shape_cast %140 : vector<8x8xbf16> to vector<1x8x8xbf16>
    %145 = vector.shape_cast %141 : vector<8x8xbf16> to vector<1x8x8xbf16>
    %146 = vector.shape_cast %142 : vector<8x8xbf16> to vector<1x8x8xbf16>
    %147 = tpu.concatenate %143, %144, %145, %146 in 0 : vector<1x8x8xbf16>, vector<1x8x8xbf16>, vector<1x8x8xbf16>, vector<1x8x8xbf16> -> vector<4x8x8xbf16>
    %148 = vector.extract_strided_slice %137 {offsets = [0, 0], sizes = [8, 32], strides = [1, 1]} : vector<8x64xf32> to vector<8x32xf32>
    %149 = arith.truncf %148 : vector<8x32xf32> to vector<8x32xbf16>
    %150 = vector.extract_strided_slice %149 {offsets = [0, 0], sizes = [8, 8], strides = [1, 1]} : vector<8x32xbf16> to vector<8x8xbf16>
    %151 = vector.extract_strided_slice %149 {offsets = [0, 8], sizes = [8, 8], strides = [1, 1]} : vector<8x32xbf16> to vector<8x8xbf16>
    %152 = vector.extract_strided_slice %149 {offsets = [0, 16], sizes = [8, 8], strides = [1, 1]} : vector<8x32xbf16> to vector<8x8xbf16>
    %153 = vector.extract_strided_slice %149 {offsets = [0, 24], sizes = [8, 8], strides = [1, 1]} : vector<8x32xbf16> to vector<8x8xbf16>
    %154 = vector.shape_cast %150 : vector<8x8xbf16> to vector<1x8x8xbf16>
    %155 = vector.shape_cast %151 : vector<8x8xbf16> to vector<1x8x8xbf16>
    %156 = vector.shape_cast %152 : vector<8x8xbf16> to vector<1x8x8xbf16>
    %157 = vector.shape_cast %153 : vector<8x8xbf16> to vector<1x8x8xbf16>
    %158 = tpu.concatenate %154, %155, %156, %157 in 0 : vector<1x8x8xbf16>, vector<1x8x8xbf16>, vector<1x8x8xbf16>, vector<1x8x8xbf16> -> vector<4x8x8xbf16>
    %159 = vector.extract_strided_slice %137 {offsets = [0, 32], sizes = [8, 32], strides = [1, 1]} : vector<8x64xf32> to vector<8x32xf32>
    %160 = arith.truncf %159 : vector<8x32xf32> to vector<8x32xbf16>
    %161 = vector.extract_strided_slice %160 {offsets = [0, 0], sizes = [8, 8], strides = [1, 1]} : vector<8x32xbf16> to vector<8x8xbf16>
    %162 = vector.extract_strided_slice %160 {offsets = [0, 8], sizes = [8, 8], strides = [1, 1]} : vector<8x32xbf16> to vector<8x8xbf16>
    %163 = vector.extract_strided_slice %160 {offsets = [0, 16], sizes = [8, 8], strides = [1, 1]} : vector<8x32xbf16> to vector<8x8xbf16>
    %164 = vector.extract_strided_slice %160 {offsets = [0, 24], sizes = [8, 8], strides = [1, 1]} : vector<8x32xbf16> to vector<8x8xbf16>
    %165 = vector.shape_cast %161 : vector<8x8xbf16> to vector<1x8x8xbf16>
    %166 = vector.shape_cast %162 : vector<8x8xbf16> to vector<1x8x8xbf16>
    %167 = vector.shape_cast %163 : vector<8x8xbf16> to vector<1x8x8xbf16>
    %168 = vector.shape_cast %164 : vector<8x8xbf16> to vector<1x8x8xbf16>
    %169 = tpu.concatenate %165, %166, %167, %168 in 0 : vector<1x8x8xbf16>, vector<1x8x8xbf16>, vector<1x8x8xbf16>, vector<1x8x8xbf16> -> vector<4x8x8xbf16>
    %c0_55 = arith.constant 0 : index
    %c0_56 = arith.constant 0 : index
    %c0_57 = arith.constant 0 : index
    %170 = vector.load %arg16[%c0_55, %c0_56, %c0_57] : memref<1x32x32xbf16, #tpu.memory_space<vmem>>, vector<1x32x32xbf16>
    %171 = vector.shape_cast %170 : vector<1x32x32xbf16> to vector<32x32xbf16>
    %c0_58 = arith.constant 0 : index
    %c0_59 = arith.constant 0 : index
    %c0_60 = arith.constant 0 : index
    %172 = vector.load %arg17[%c0_58, %c0_59, %c0_60] : memref<1x1x32xf32, #tpu.memory_space<vmem>>, vector<1x1x32xf32>
    %173 = vector.shape_cast %172 : vector<1x1x32xf32> to vector<1x32xf32>
    "tpu.trace_start"() <{level = 10 : i32, message = "hqd,hkd->hqk"}> : () -> ()
    %cst_61 = arith.constant dense<0.000000e+00> : vector<4x8x8xf32>
    %174 = tpu.matmul %147, %158, %cst_61 {dimension_numbers = #tpu.dot_dimension_numbers<[2], [2], [1], [1], [0, 0, 0, 1, 1, 1], [0], [0]>} : vector<4x8x8xbf16>, vector<4x8x8xbf16>, vector<4x8x8xf32> -> vector<4x8x8xf32>
    "tpu.trace_stop"() : () -> ()
    %175 = vector.shape_cast %21 : vector<8x8xf32> to vector<1x8x8xf32>
    %176 = vector.broadcast %175 : vector<1x8x8xf32> to vector<4x8x8xf32>
    %177 = arith.addf %174, %176 : vector<4x8x8xf32>
    %cst_62 = arith.constant dense<0xFF800000> : vector<4x8xf32>
    %178 = vector.multi_reduction <maximumf>, %177, %cst_62 [2] : vector<4x8x8xf32> to vector<4x8xf32>
    %179 = vector.shape_cast %178 : vector<4x8xf32> to vector<4x8x1xf32>
    %180 = vector.broadcast %179 : vector<4x8x1xf32> to vector<4x8x8xf32>
    %181 = arith.subf %177, %180 : vector<4x8x8xf32>
    %182 = math.exp %181 : vector<4x8x8xf32>
    %cst_63 = arith.constant dense<0.000000e+00> : vector<4x8xf32>
    %183 = vector.multi_reduction <add>, %182, %cst_63 [2] : vector<4x8x8xf32> to vector<4x8xf32>
    %184 = vector.shape_cast %183 : vector<4x8xf32> to vector<4x8x1xf32>
    %185 = arith.extui %0 : i1 to i32
    %c0_i32_64 = arith.constant 0 : i32
    %186 = arith.cmpi ne, %185, %c0_i32_64 : i32
    scf.if %186 {
      %282 = vector.broadcast %184 : vector<4x8x1xf32> to vector<4x8x8xf32>
      %283 = arith.divf %182, %282 : vector<4x8x8xf32>
      %c0_109 = arith.constant 0 : index
      %c0_110 = arith.constant 0 : index
      %c0_111 = arith.constant 0 : index
      %c0_112 = arith.constant 0 : index
      %284 = vector.load %arg27[%c0_109, %c0_110, %c0_111, %c0_112] : memref<1x4x8x8xf32, #tpu.memory_space<vmem>>, vector<1x4x8x8xf32>
      %285 = vector.shape_cast %284 : vector<1x4x8x8xf32> to vector<4x8x8xf32>
      %286 = vector.shape_cast %283 : vector<4x8x8xf32> to vector<1x4x8x8xf32>
      tpu.vector_store %arg27[%c0_109, %c0_110, %c0_111, %c0_112], %286 {strides = array<i32>} : memref<1x4x8x8xf32, #tpu.memory_space<vmem>>, vector<1x4x8x8xf32>,
    } else {
    }
    %187 = tpu.reciprocal %184 {approx = true} : vector<4x8x1xf32> -> vector<4x8x1xf32>
    %188 = vector.broadcast %187 : vector<4x8x1xf32> to vector<4x8x8xf32>
    %189 = arith.mulf %182, %188 : vector<4x8x8xf32>
    %190 = arith.truncf %189 : vector<4x8x8xf32> to vector<4x8x8xbf16>
    "tpu.trace_start"() <{level = 10 : i32, message = "hqk,hkd->hqd"}> : () -> ()
    %cst_65 = arith.constant dense<0.000000e+00> : vector<4x8x8xf32>
    %191 = tpu.matmul %190, %169, %cst_65 {dimension_numbers = #tpu.dot_dimension_numbers<[2], [1], [1], [2], [0, 0, 0, 1, 1, 2], [0], [0]>} : vector<4x8x8xbf16>, vector<4x8x8xbf16>, vector<4x8x8xf32> -> vector<4x8x8xf32>
    "tpu.trace_stop"() : () -> ()
    %192 = vector.extract_strided_slice %191 {offsets = [0, 0, 0], sizes = [1, 8, 8], strides = [1, 1, 1]} : vector<4x8x8xf32> to vector<1x8x8xf32>
    %193 = vector.shape_cast %192 : vector<1x8x8xf32> to vector<8x8xf32>
    %194 = vector.extract_strided_slice %191 {offsets = [1, 0, 0], sizes = [1, 8, 8], strides = [1, 1, 1]} : vector<4x8x8xf32> to vector<1x8x8xf32>
    %195 = vector.shape_cast %194 : vector<1x8x8xf32> to vector<8x8xf32>
    %196 = vector.extract_strided_slice %191 {offsets = [2, 0, 0], sizes = [1, 8, 8], strides = [1, 1, 1]} : vector<4x8x8xf32> to vector<1x8x8xf32>
    %197 = vector.shape_cast %196 : vector<1x8x8xf32> to vector<8x8xf32>
    %198 = vector.extract_strided_slice %191 {offsets = [3, 0, 0], sizes = [1, 8, 8], strides = [1, 1, 1]} : vector<4x8x8xf32> to vector<1x8x8xf32>
    %199 = vector.shape_cast %198 : vector<1x8x8xf32> to vector<8x8xf32>
    %200 = tpu.concatenate %193, %195, %197, %199 in 1 : vector<8x8xf32>, vector<8x8xf32>, vector<8x8xf32>, vector<8x8xf32> -> vector<8x32xf32>
    %201 = arith.truncf %200 : vector<8x32xf32> to vector<8x32xbf16>
    %cst_66 = arith.constant dense<0.000000e+00> : vector<8x32xf32>
    %202 = tpu.matmul %201, %171, %cst_66 {dimension_numbers = #tpu.dot_dimension_numbers<[1], [0], [0], [1], [0, 0, 1, 1], [], []>} : vector<8x32xbf16>, vector<32x32xbf16>, vector<8x32xf32> -> vector<8x32xf32>
    %203 = vector.broadcast %173 : vector<1x32xf32> to vector<8x32xf32>
    %204 = arith.addf %202, %203 : vector<8x32xf32>
    %205 = arith.addf %122, %204 : vector<8x32xf32>
    %c0_67 = arith.constant 0 : index
    %c0_68 = arith.constant 0 : index
    %c0_69 = arith.constant 0 : index
    %206 = vector.load %arg18[%c0_67, %c0_68, %c0_69] : memref<1x1x32xf32, #tpu.memory_space<vmem>>, vector<1x1x32xf32>
    %207 = vector.shape_cast %206 : vector<1x1x32xf32> to vector<1x32xf32>
    %c0_70 = arith.constant 0 : index
    %c0_71 = arith.constant 0 : index
    %c0_72 = arith.constant 0 : index
    %208 = vector.load %arg19[%c0_70, %c0_71, %c0_72] : memref<1x1x32xf32, #tpu.memory_space<vmem>>, vector<1x1x32xf32>
    %209 = vector.shape_cast %208 : vector<1x1x32xf32> to vector<1x32xf32>
    %cst_73 = arith.constant dense<0.000000e+00> : vector<8xf32>
    %210 = vector.multi_reduction <add>, %205, %cst_73 [1] : vector<8x32xf32> to vector<8xf32>
    %211 = vector.shape_cast %210 : vector<8xf32> to vector<8x1xf32>
    %cst_74 = arith.constant 3.200000e+01 : f32
    %212 = vector.broadcast %cst_74 : f32 to vector<8x1xf32>
    %213 = arith.divf %211, %212 : vector<8x1xf32>
    %214 = vector.broadcast %213 : vector<8x1xf32> to vector<8x32xf32>
    %215 = arith.subf %205, %214 : vector<8x32xf32>
    %216 = arith.mulf %215, %215 : vector<8x32xf32>
    %cst_75 = arith.constant dense<0.000000e+00> : vector<8xf32>
    %217 = vector.multi_reduction <add>, %216, %cst_75 [1] : vector<8x32xf32> to vector<8xf32>
    %218 = vector.shape_cast %217 : vector<8xf32> to vector<8x1xf32>
    %cst_76 = arith.constant 3.200000e+01 : f32
    %219 = vector.broadcast %cst_76 : f32 to vector<8x1xf32>
    %220 = arith.divf %218, %219 : vector<8x1xf32>
    %221 = vector.broadcast %213 : vector<8x1xf32> to vector<8x32xf32>
    %222 = arith.subf %205, %221 : vector<8x32xf32>
    %cst_77 = arith.constant 9.99999974E-6 : f32
    %223 = vector.broadcast %cst_77 : f32 to vector<8x1xf32>
    %224 = arith.addf %220, %223 : vector<8x1xf32>
    %225 = math.rsqrt %224 : vector<8x1xf32>
    %226 = vector.broadcast %225 : vector<8x1xf32> to vector<8x32xf32>
    %227 = arith.mulf %222, %226 : vector<8x32xf32>
    %228 = vector.broadcast %207 : vector<1x32xf32> to vector<8x32xf32>
    %229 = arith.mulf %227, %228 : vector<8x32xf32>
    %230 = vector.broadcast %209 : vector<1x32xf32> to vector<8x32xf32>
    %231 = arith.addf %229, %230 : vector<8x32xf32>
    %c0_78 = arith.constant 0 : index
    %c0_79 = arith.constant 0 : index
    %c0_80 = arith.constant 0 : index
    %232 = vector.load %arg20[%c0_78, %c0_79, %c0_80] : memref<1x32x64xbf16, #tpu.memory_space<vmem>>, vector<1x32x64xbf16>
    %233 = vector.shape_cast %232 : vector<1x32x64xbf16> to vector<32x64xbf16>
    %c0_81 = arith.constant 0 : index
    %c0_82 = arith.constant 0 : index
    %c0_83 = arith.constant 0 : index
    %234 = vector.load %arg21[%c0_81, %c0_82, %c0_83] : memref<1x1x64xf32, #tpu.memory_space<vmem>>, vector<1x1x64xf32>
    %235 = vector.shape_cast %234 : vector<1x1x64xf32> to vector<1x64xf32>
    %c0_84 = arith.constant 0 : index
    %c0_85 = arith.constant 0 : index
    %c0_86 = arith.constant 0 : index
    %236 = vector.load %arg22[%c0_84, %c0_85, %c0_86] : memref<1x64x32xbf16, #tpu.memory_space<vmem>>, vector<1x64x32xbf16>
    %237 = vector.shape_cast %236 : vector<1x64x32xbf16> to vector<64x32xbf16>
    %c0_87 = arith.constant 0 : index
    %c0_88 = arith.constant 0 : index
    %c0_89 = arith.constant 0 : index
    %238 = vector.load %arg23[%c0_87, %c0_88, %c0_89] : memref<1x1x32xf32, #tpu.memory_space<vmem>>, vector<1x1x32xf32>
    %239 = vector.shape_cast %238 : vector<1x1x32xf32> to vector<1x32xf32>
    %240 = arith.truncf %231 : vector<8x32xf32> to vector<8x32xbf16>
    %cst_90 = arith.constant dense<0.000000e+00> : vector<8x64xf32>
    %241 = tpu.matmul %240, %233, %cst_90 {dimension_numbers = #tpu.dot_dimension_numbers<[1], [0], [0], [1], [0, 0, 1, 1], [], []>} : vector<8x32xbf16>, vector<32x64xbf16>, vector<8x64xf32> -> vector<8x64xf32>
    %242 = vector.broadcast %235 : vector<1x64xf32> to vector<8x64xf32>
    %243 = arith.addf %241, %242 : vector<8x64xf32>
    %cst_91 = arith.constant 0.000000e+00 : f32
    %244 = vector.broadcast %cst_91 : f32 to vector<8x64xf32>
    %245 = arith.maximumf %243, %244 : vector<8x64xf32>
    %246 = arith.truncf %245 : vector<8x64xf32> to vector<8x64xbf16>
    %cst_92 = arith.constant dense<0.000000e+00> : vector<8x32xf32>
    %247 = tpu.matmul %246, %237, %cst_92 {dimension_numbers = #tpu.dot_dimension_numbers<[1], [0], [0], [1], [0, 0, 1, 1], [], []>} : vector<8x64xbf16>, vector<64x32xbf16>, vector<8x32xf32> -> vector<8x32xf32>
    %248 = vector.broadcast %239 : vector<1x32xf32> to vector<8x32xf32>
    %249 = arith.addf %247, %248 : vector<8x32xf32>
    %250 = arith.addf %231, %249 : vector<8x32xf32>
    %c0_93 = arith.constant 0 : index
    %c0_94 = arith.constant 0 : index
    %c0_95 = arith.constant 0 : index
    %251 = vector.load %arg24[%c0_93, %c0_94, %c0_95] : memref<1x1x32xf32, #tpu.memory_space<vmem>>, vector<1x1x32xf32>
    %252 = vector.shape_cast %251 : vector<1x1x32xf32> to vector<1x32xf32>
    %c0_96 = arith.constant 0 : index
    %c0_97 = arith.constant 0 : index
    %c0_98 = arith.constant 0 : index
    %253 = vector.load %arg25[%c0_96, %c0_97, %c0_98] : memref<1x1x32xf32, #tpu.memory_space<vmem>>, vector<1x1x32xf32>
    %254 = vector.shape_cast %253 : vector<1x1x32xf32> to vector<1x32xf32>
    %cst_99 = arith.constant dense<0.000000e+00> : vector<8xf32>
    %255 = vector.multi_reduction <add>, %250, %cst_99 [1] : vector<8x32xf32> to vector<8xf32>
    %256 = vector.shape_cast %255 : vector<8xf32> to vector<8x1xf32>
    %cst_100 = arith.constant 3.200000e+01 : f32
    %257 = vector.broadcast %cst_100 : f32 to vector<8x1xf32>
    %258 = arith.divf %256, %257 : vector<8x1xf32>
    %259 = vector.broadcast %258 : vector<8x1xf32> to vector<8x32xf32>
    %260 = arith.subf %250, %259 : vector<8x32xf32>
    %261 = arith.mulf %260, %260 : vector<8x32xf32>
    %cst_101 = arith.constant dense<0.000000e+00> : vector<8xf32>
    %262 = vector.multi_reduction <add>, %261, %cst_101 [1] : vector<8x32xf32> to vector<8xf32>
    %263 = vector.shape_cast %262 : vector<8xf32> to vector<8x1xf32>
    %cst_102 = arith.constant 3.200000e+01 : f32
    %264 = vector.broadcast %cst_102 : f32 to vector<8x1xf32>
    %265 = arith.divf %263, %264 : vector<8x1xf32>
    %266 = vector.broadcast %258 : vector<8x1xf32> to vector<8x32xf32>
    %267 = arith.subf %250, %266 : vector<8x32xf32>
    %cst_103 = arith.constant 9.99999974E-6 : f32
    %268 = vector.broadcast %cst_103 : f32 to vector<8x1xf32>
    %269 = arith.addf %265, %268 : vector<8x1xf32>
    %270 = math.rsqrt %269 : vector<8x1xf32>
    %271 = vector.broadcast %270 : vector<8x1xf32> to vector<8x32xf32>
    %272 = arith.mulf %267, %271 : vector<8x32xf32>
    %273 = vector.broadcast %252 : vector<1x32xf32> to vector<8x32xf32>
    %274 = arith.mulf %272, %273 : vector<8x32xf32>
    %275 = vector.broadcast %254 : vector<1x32xf32> to vector<8x32xf32>
    %276 = arith.addf %274, %275 : vector<8x32xf32>
    %c0_104 = arith.constant 0 : index
    %c0_105 = arith.constant 0 : index
    %277 = vector.load %arg28[%c0_104, %c0_105] : memref<8x32xf32, #tpu.memory_space<vmem>>, vector<8x32xf32>
    tpu.vector_store %arg28[%c0_104, %c0_105], %276 {strides = array<i32>} : memref<8x32xf32, #tpu.memory_space<vmem>>, vector<8x32xf32>,
    %278 = arith.truncf %276 : vector<8x32xf32> to vector<8x32xbf16>
    %c0_106 = arith.constant 0 : index
    %c0_107 = arith.constant 0 : index
    %c0_108 = arith.constant 0 : index
    %279 = vector.load %arg26[%c0_106, %c0_107, %c0_108] : memref<1x8x32xbf16, #tpu.memory_space<vmem>>, vector<1x8x32xbf16>
    %280 = vector.shape_cast %279 : vector<1x8x32xbf16> to vector<8x32xbf16>
    %281 = vector.shape_cast %278 : vector<8x32xbf16> to vector<1x8x32xbf16>
    tpu.vector_store %arg26[%c0_106, %c0_107, %c0_108], %281 {strides = array<i32>} : memref<1x8x32xbf16, #tpu.memory_space<vmem>>, vector<1x8x32xbf16>,
    return
  }
  func.func @transform_0(%arg0: i32, %arg1: i32) -> (i32, i32, i32) {
    %c0_i32 = arith.constant 0 : i32
    %c0_i32_0 = arith.constant 0 : i32
    %c0_i32_1 = arith.constant 0 : i32
    return %arg0, %c0_i32, %c0_i32_0 : i32, i32, i32
  }
  func.func @transform_1(%arg0: i32, %arg1: i32) -> (i32, i32, i32) {
    %c0_i32 = arith.constant 0 : i32
    %c0_i32_0 = arith.constant 0 : i32
    %c0_i32_1 = arith.constant 0 : i32
    return %arg0, %c0_i32, %c0_i32_0 : i32, i32, i32
  }
  func.func @transform_2(%arg0: i32, %arg1: i32) -> (i32, i32, i32) {
    %c0_i32 = arith.constant 0 : i32
    %c0_i32_0 = arith.constant 0 : i32
    %c0_i32_1 = arith.constant 0 : i32
    return %arg0, %c0_i32, %c0_i32_0 : i32, i32, i32
  }
  func.func @transform_3(%arg0: i32, %arg1: i32) -> (i32, i32, i32) {
    %c0_i32 = arith.constant 0 : i32
    %c0_i32_0 = arith.constant 0 : i32
    %c0_i32_1 = arith.constant 0 : i32
    return %arg0, %c0_i32, %c0_i32_0 : i32, i32, i32
  }
  func.func @transform_4(%arg0: i32, %arg1: i32) -> (i32, i32, i32) {
    %c0_i32 = arith.constant 0 : i32
    %c0_i32_0 = arith.constant 0 : i32
    %c0_i32_1 = arith.constant 0 : i32
    return %arg1, %c0_i32, %c0_i32_0 : i32, i32, i32
  }
  func.func @transform_5(%arg0: i32, %arg1: i32) -> (i32, i32, i32) {
    %c0_i32 = arith.constant 0 : i32
    %c0_i32_0 = arith.constant 0 : i32
    %c0_i32_1 = arith.constant 0 : i32
    return %arg1, %c0_i32, %c0_i32_0 : i32, i32, i32
  }
  func.func @transform_6(%arg0: i32, %arg1: i32) -> (i32, i32, i32) {
    %c0_i32 = arith.constant 0 : i32
    %c0_i32_0 = arith.constant 0 : i32
    %c0_i32_1 = arith.constant 0 : i32
    return %arg1, %c0_i32, %c0_i32_0 : i32, i32, i32
  }
  func.func @transform_7(%arg0: i32, %arg1: i32) -> (i32, i32, i32) {
    %c0_i32 = arith.constant 0 : i32
    %c0_i32_0 = arith.constant 0 : i32
    %c0_i32_1 = arith.constant 0 : i32
    return %arg1, %c0_i32, %c0_i32_0 : i32, i32, i32
  }
  func.func @transform_8(%arg0: i32, %arg1: i32) -> (i32, i32, i32) {
    %c0_i32 = arith.constant 0 : i32
    %c0_i32_0 = arith.constant 0 : i32
    %c0_i32_1 = arith.constant 0 : i32
    return %arg1, %c0_i32, %c0_i32_0 : i32, i32, i32
  }
  func.func @transform_9(%arg0: i32, %arg1: i32) -> (i32, i32, i32) {
    %c0_i32 = arith.constant 0 : i32
    %c0_i32_0 = arith.constant 0 : i32
    %c0_i32_1 = arith.constant 0 : i32
    return %arg1, %c0_i32, %c0_i32_0 : i32, i32, i32
  }
  func.func @transform_10(%arg0: i32, %arg1: i32) -> (i32, i32, i32) {
    %c0_i32 = arith.constant 0 : i32
    %c0_i32_0 = arith.constant 0 : i32
    %c0_i32_1 = arith.constant 0 : i32
    return %arg1, %c0_i32, %c0_i32_0 : i32, i32, i32
  }
  func.func @transform_11(%arg0: i32, %arg1: i32) -> (i32, i32, i32) {
    %c0_i32 = arith.constant 0 : i32
    %c0_i32_0 = arith.constant 0 : i32
    %c0_i32_1 = arith.constant 0 : i32
    return %arg1, %c0_i32, %c0_i32_0 : i32, i32, i32
  }
  func.func @transform_12(%arg0: i32, %arg1: i32) -> (i32, i32, i32) {
    %c0_i32 = arith.constant 0 : i32
    %c0_i32_0 = arith.constant 0 : i32
    %c0_i32_1 = arith.constant 0 : i32
    return %arg1, %c0_i32, %c0_i32_0 : i32, i32, i32
  }
  func.func @transform_13(%arg0: i32, %arg1: i32) -> (i32, i32, i32) {
    %c0_i32 = arith.constant 0 : i32
    %c0_i32_0 = arith.constant 0 : i32
    %c0_i32_1 = arith.constant 0 : i32
    return %arg1, %c0_i32, %c0_i32_0 : i32, i32, i32
  }
  func.func @transform_14(%arg0: i32, %arg1: i32) -> (i32, i32, i32) {
    %c0_i32 = arith.constant 0 : i32
    %c0_i32_0 = arith.constant 0 : i32
    %c0_i32_1 = arith.constant 0 : i32
    return %arg1, %c0_i32, %c0_i32_0 : i32, i32, i32
  }
  func.func @transform_15(%arg0: i32, %arg1: i32) -> (i32, i32, i32) {
    %c0_i32 = arith.constant 0 : i32
    %c0_i32_0 = arith.constant 0 : i32
    %c0_i32_1 = arith.constant 0 : i32
    return %arg1, %c0_i32, %c0_i32_0 : i32, i32, i32
  }
  func.func @transform_16(%arg0: i32, %arg1: i32) -> (i32, i32, i32) {
    %c0_i32 = arith.constant 0 : i32
    %c0_i32_0 = arith.constant 0 : i32
    %c0_i32_1 = arith.constant 0 : i32
    return %arg1, %c0_i32, %c0_i32_0 : i32, i32, i32
  }
  func.func @transform_17(%arg0: i32, %arg1: i32) -> (i32, i32, i32) {
    %c0_i32 = arith.constant 0 : i32
    %c0_i32_0 = arith.constant 0 : i32
    %c0_i32_1 = arith.constant 0 : i32
    return %arg1, %c0_i32, %c0_i32_0 : i32, i32, i32
  }
  func.func @transform_18(%arg0: i32, %arg1: i32) -> (i32, i32, i32) {
    %c0_i32 = arith.constant 0 : i32
    %c0_i32_0 = arith.constant 0 : i32
    %c0_i32_1 = arith.constant 0 : i32
    return %arg1, %c0_i32, %c0_i32_0 : i32, i32, i32
  }
  func.func @transform_19(%arg0: i32, %arg1: i32) -> (i32, i32, i32) {
    %c0_i32 = arith.constant 0 : i32
    %c0_i32_0 = arith.constant 0 : i32
    %c0_i32_1 = arith.constant 0 : i32
    return %arg1, %c0_i32, %c0_i32_0 : i32, i32, i32
  }
  func.func @transform_20(%arg0: i32, %arg1: i32) -> (i32, i32, i32) {
    %c0_i32 = arith.constant 0 : i32
    %c0_i32_0 = arith.constant 0 : i32
    %c0_i32_1 = arith.constant 0 : i32
    return %arg1, %c0_i32, %c0_i32_0 : i32, i32, i32
  }
  func.func @transform_21(%arg0: i32, %arg1: i32) -> (i32, i32, i32) {
    %c0_i32 = arith.constant 0 : i32
    %c0_i32_0 = arith.constant 0 : i32
    %c0_i32_1 = arith.constant 0 : i32
    return %arg1, %c0_i32, %c0_i32_0 : i32, i32, i32
  }
  func.func @transform_22(%arg0: i32, %arg1: i32) -> (i32, i32, i32) {
    %c0_i32 = arith.constant 0 : i32
    %c0_i32_0 = arith.constant 0 : i32
    %c0_i32_1 = arith.constant 0 : i32
    return %arg1, %c0_i32, %c0_i32_0 : i32, i32, i32
  }
  func.func @transform_23(%arg0: i32, %arg1: i32) -> (i32, i32, i32) {
    %c0_i32 = arith.constant 0 : i32
    %c0_i32_0 = arith.constant 0 : i32
    %c0_i32_1 = arith.constant 0 : i32
    return %arg1, %c0_i32, %c0_i32_0 : i32, i32, i32
  }
  func.func @transform_24(%arg0: i32, %arg1: i32) -> (i32, i32, i32) {
    %c0_i32 = arith.constant 0 : i32
    %c0_i32_0 = arith.constant 0 : i32
    %c0_i32_1 = arith.constant 0 : i32
    return %arg0, %c0_i32, %c0_i32_0 : i32, i32, i32
  }
  func.func @transform_25(%arg0: i32, %arg1: i32) -> (i32, i32, i32, i32) {
    %c0_i32 = arith.constant 0 : i32
    %c0_i32_0 = arith.constant 0 : i32
    %c0_i32_1 = arith.constant 0 : i32
    %c0_i32_2 = arith.constant 0 : i32
    return %arg0, %c0_i32, %c0_i32_0, %c0_i32_1 : i32, i32, i32, i32
  }
}

</mosaic_0001>

<llo_original>
// kernel: _lambda_.5
$region0: #{_lambda_.5}
  #allocation0 [shape = 'u32[]', space=smem, size = 0x4, offset = 0x4, fixed_abs, tag = 'smem constant byte address 0x4 - core index']
  #allocation1 [shape = 'u32[144,128]{1,0:T(1,128)}', space=vmem, size = 0x12000, scoped, tag = 'internal scratch']
  %s0 = inlined_call_operand.vmem [shape: bf16[16,32], index: 0, kind: input, shape index: {}]
  %s1 = inlined_call_operand.vmem [shape: bf16[32,16], index: 1, kind: input, shape index: {}]
  %s2 = inlined_call_operand.vmem [shape: f32[1,16], index: 2, kind: input, shape index: {}]
  %s3 = inlined_call_operand.hbm [shape: f32[16,16], index: 3, kind: output, shape index: {}]
  %s4 = sld [smem:[#allocation0]]
  $region22: #{_lambda_.5} parent=0
    _
  %s6 = ssub.s32 1, %s4
  %s7 = scalar_select 0, %s6, %s4
  $region1: #{_lambda_.5} parent=0
    #allocation2 [shape = 'u8[8192]{0}', space=vmem, size = 0x2000, scoped, tag = 'output window, operand 0, single buffered']
    #allocation3 [shape = 's32[1]{0}', space=sflag, size = 0x4, scoped, tag = 'scoped memory for _lambda_.5']
    %8 = vsyncpa [#allocation3], 0
    // Predicated region
    $region2: #{_lambda_.5} parent=1 // pred_check
      _
    $region3: #{_lambda_.5} parent=1 // pred_check_branch
      %10 = sbr.rel (0) target = $region5
    $region4: #{_lambda_.5} parent=1 // pred_region
      _
    $region5: #{_lambda_.5} parent=1 // pred_fallthru
      _
    // Predicated region
    $region6: #{_lambda_.5} parent=1 // pred_check
      _
    $region7: #{_lambda_.5} parent=1 // pred_check_branch
      %12 = sbr.rel (0) target = $region9
    $region8: #{_lambda_.5} parent=1 // pred_region
      _
    $region9: #{_lambda_.5} parent=1 // pred_fallthru
      _
    // Predicated region
    $region10: #{_lambda_.5} parent=1 // pred_check
      _
    $region11: #{_lambda_.5} parent=1 // pred_check_branch
      %14 = sbr.rel (0) target = $region13
    $region12: #{_lambda_.5} parent=1 // pred_region
      _
    $region13: #{_lambda_.5} parent=1 // pred_fallthru
      _
    %v16 = vld [vmem:[%s0] sm:$0xf]
    %v17 = vld [vmem:[%s0 + $0x4] sm:$0xf]
    %v18 = vld [vmem:[%s1] sm:$0xf]
    %v19 = vld [vmem:[%s1 + $0x4] sm:$0xf]
    %v20 = vld [vmem:[%s1 + $0x8] sm:$0xf]
    %v21 = vld [vmem:[%s1 + $0xc] sm:$0xf]
    %v22 = vld [vmem:[%s2] sm:$0x1]
    %v24 = vlaneseq
    %v25 = vshrl.u32 %v24, 7
    %v26 = vsub.s32 0, %v25
    %v27 = vrot.slane %v22, %v26
    %v31 = vunpack.c.l.b16 %v16
    %v32 = vunpack.c.l.b16 %v17
    %v33 = vpack.c.b16 %v32, %v31
    %v38 = vunpack.c.l.b16 %v18
    %v39 = vunpack.c.l.b16 %v19
    %v40 = vunpack.c.l.b16 %v20
    %v41 = vunpack.c.l.b16 %v21
    %v42 = vpack.c.b16 %v39, %v38
    %v43 = vpack.c.b16 %v41, %v40
    %vm46 = vcmask 261120
    %v48 = vsel %vm46, %v33, 0
    %50 = vmatprep.subr.bf16.mxu0 0
    %51 = vmatpush1.bf16.msra.mxu0 0
    %52 = vmatprep.subr.bf16.mxu0 0
    %53 = vmatpush1.bf16.msra.mxu0 0
    %54 = vmatprep.subr.bf16.mxu0 0
    %55 = vmatpush1.bf16.msra.mxu0 0
    %56 = vmatprep.subr.bf16.mxu0 0
    %57 = vmatpush1.bf16.msra.mxu0 0
    %58 = vmatprep.subr.bf16.mxu0 0
    %59 = vmatpush1.bf16.msra.mxu0 0
    %60 = vmatprep.subr.bf16.mxu0 0
    %61 = vmatpush1.bf16.msra.mxu0 0
    %62 = vmatprep.subr.bf16.mxu0 0
    %63 = vmatpush1.bf16.msra.mxu0 %v43
    %64 = vmatprep.subr.bf16.mxu0 0
    %65 = vmatpush1.bf16.msra.mxu0 %v42
    %66 = vmatprep.subr.bf16.mxu0 0
    %67 = vmatpush2.bf16.msra.mxu0 0
    %68 = vmatprep.subr.bf16.mxu0 0
    %69 = vmatpush2.bf16.msra.mxu0 0
    %70 = vmatprep.subr.bf16.mxu0 0
    %71 = vmatpush2.bf16.msra.mxu0 0
    %72 = vmatprep.subr.bf16.mxu0 0
    %73 = vmatpush2.bf16.msra.mxu0 0
    %74 = vmatprep.subr.bf16.mxu0 0
    %75 = vmatpush2.bf16.msra.mxu0 0
    %76 = vmatprep.subr.bf16.mxu0 0
    %77 = vmatpush2.bf16.msra.mxu0 0
    %78 = vmatprep.subr.bf16.mxu0 0
    %79 = vmatpush2.bf16.msra.mxu0 0
    %80 = vmatprep.subr.bf16.mxu0 0
    %81 = vmatpush2.bf16.msra.mxu0 0
    %82 = vmatprep.mubr.bf16.mxu0 0
    %83 = vmatmul.mubr.bf16.gmra.mxu0 %v48
    %v84 = vpop.f32.mrf.mxu0
    %v85 = vadd.f32 %v27, %v84
    %v86 = vpop.f32.mrf.mxu0
    %v87 = vpop.f32.mrf.mxu0
    %v88 = vadd.f32 %v27, %v87
    %v89 = vpop.f32.mrf.mxu0
    %90 = vdwg.mxu0
    %vm91 = vcmask 130048
    %92 = vst.msk [vmem:[#allocation2] sm:$0xff] %vm91, %v85
    %93 = vst.msk [vmem:[#allocation2 + $0x8] sm:$0xff] %vm91, %v88
    // Predicated region
    $region14: #{_lambda_.5} parent=1 // pred_check
      _
    $region15: #{_lambda_.5} parent=1 // pred_check_branch
      %95 = sbr.rel (0) target = $region17
    $region16: #{_lambda_.5} parent=1 // pred_region
      %s97 = ssub.s32 256, 256
      %98 = vsyncadd [#allocation3], %s97
      %s99 = sshll.u32 [#allocation2], 4
      %s100 = int_to_ptr.vmem [resolvable:$true] %s99
      %105 = dma.vmem_to_hbm [thread:$0]  %s100, 256, %s3, [#allocation3], 128, 128, 8
    $region17: #{_lambda_.5} parent=1 // pred_fallthru
      _
    // Predicated region
    $region18: #{_lambda_.5} parent=1 // pred_check
      _
    $region19: #{_lambda_.5} parent=1 // pred_check_branch
      %107 = sbr.rel (0) target = $region21
    $region20: #{_lambda_.5} parent=1 // pred_region
      %108 = dma.done [#allocation3], 256
    $region21: #{_lambda_.5} parent=1 // pred_fallthru
      _
    %109 = vsyncpa [#allocation3], 1

// kernel: _lambda_.3
$region0: #{_lambda_.3}
  #allocation0 [shape = 'u32[]', space=smem, size = 0x4, offset = 0x4, fixed_abs, tag = 'smem constant byte address 0x4 - core index']
  #allocation1 [shape = 'u32[144,128]{1,0:T(1,128)}', space=vmem, size = 0x12000, scoped, tag = 'internal scratch']
  #allocation2 [shape = 'f32[8,32]{1,0:T(8,128)}', space=vmem, size = 0x1000, scoped, tag = 'scratch operand']
  %s0 = inlined_call_operand.vmem [shape: f32[2,8,32], index: 0, kind: input, shape index: {}]
  %s1 = inlined_call_operand.vmem [shape: f32[2,1,8], index: 1, kind: input, shape index: {}]
  %s2 = inlined_call_operand.vmem [shape: bf16[2,32,96], index: 2, kind: input, shape index: {}]
  %s3 = inlined_call_operand.vmem [shape: f32[2,1,96], index: 3, kind: input, shape index: {}]
  %s4 = inlined_call_operand.vmem [shape: bf16[2,32,32], index: 4, kind: input, shape index: {}]
  %s5 = inlined_call_operand.vmem [shape: f32[2,1,32], index: 5, kind: input, shape index: {}]
  %s6 = inlined_call_operand.vmem [shape: f32[2,1,32], index: 6, kind: input, shape index: {}, may-alias: {6,12}]
  %s7 = inlined_call_operand.vmem [shape: f32[2,1,32], index: 7, kind: input, shape index: {}, may-alias: {7,13}]
  %s8 = inlined_call_operand.vmem [shape: bf16[2,32,64], index: 8, kind: input, shape index: {}]
  %s9 = inlined_call_operand.vmem [shape: f32[2,1,64], index: 9, kind: input, shape index: {}]
  %s10 = inlined_call_operand.vmem [shape: bf16[2,64,32], index: 10, kind: input, shape index: {}]
  %s11 = inlined_call_operand.vmem [shape: f32[2,1,32], index: 11, kind: input, shape index: {}]
  %s12 = inlined_call_operand.vmem [shape: f32[2,1,32], index: 12, kind: input, shape index: {}, may-alias: {6,12}]
  %s13 = inlined_call_operand.vmem [shape: f32[2,1,32], index: 13, kind: input, shape index: {}, may-alias: {7,13}]
  %s14 = inlined_call_operand.vmem [shape: bf16[2,8,32], index: 14, kind: output, shape index: {}]
  %s15 = sld [smem:[#allocation0]]
  $region93: #{_lambda_.3} parent=0
    _
  %s17 = ssub.s32 1, %s15
  %s18 = scalar_select 0, %s17, %s15
  loop: start=0, step=1, limit=6
  $region2: #{_lambda_.3} parent=0 // loop_pre_header
    _
  $region3: #{_lambda_.3} parent=0 // loop_header
    %s20 = sphi 0, %s24
    %p21 = scmp.ge.s32.totalorder %s20, 6
    %s27 = sphi 0, %s39
    %s28 = sphi 0, %s35
    %s29 = sphi 0, %s27
    %s30 = sphi 0, %s28
    %s31 = sphi 0, %s29
    %s32 = sphi 0, %s30
    %s42 = sphi 0, %s44
    %s45 = sphi 0, %s42
    %s46 = sphi 0, %s45
    %s62 = sphi 0, %s46
    %s68 = sphi 0, %s70
    %s71 = sphi 0, %s68
    %s72 = sphi 0, %s71
    %s88 = sphi 0, %s72
    %s94 = sphi 0, %s96
    %s97 = sphi 0, %s94
    %s98 = sphi 0, %s97
    %s114 = sphi 0, %s98
    %s120 = sphi 0, %s122
    %s123 = sphi 0, %s120
    %s124 = sphi 0, %s123
    %s140 = sphi 0, %s124
    %s146 = sphi 0, %s148
    %s149 = sphi 0, %s146
    %s150 = sphi 0, %s149
    %s166 = sphi 0, %s150
    %s172 = sphi 0, %s174
    %s175 = sphi 0, %s172
    %s176 = sphi 0, %s175
    %s192 = sphi 0, %s176
    %s198 = sphi 0, %s200
    %s201 = sphi 0, %s198
    %s202 = sphi 0, %s201
    %s218 = sphi 0, %s202
    %s224 = sphi 0, %s226
    %s227 = sphi 0, %s224
    %s228 = sphi 0, %s227
    %s244 = sphi 0, %s228
    %s250 = sphi 0, %s252
    %s253 = sphi 0, %s250
    %s254 = sphi 0, %s253
    %s270 = sphi 0, %s254
    %s276 = sphi 0, %s278
    %s279 = sphi 0, %s276
    %s280 = sphi 0, %s279
    %s296 = sphi 0, %s280
    %s302 = sphi 0, %s304
    %s305 = sphi 0, %s302
    %s306 = sphi 0, %s305
    %s322 = sphi 0, %s306
    %s328 = sphi 0, %s330
    %s331 = sphi 0, %s328
    %s332 = sphi 0, %s331
    %s348 = sphi 0, %s332
    %s354 = sphi 0, %s356
    %s357 = sphi 0, %s354
    %s358 = sphi 0, %s357
    %s374 = sphi 0, %s358
    %s380 = sphi 0, %s382
    %s383 = sphi 0, %s380
    %s384 = sphi 0, %s383
    %s400 = sphi 0, %s384
    %s406 = sphi 0, %s408
    %s409 = sphi 0, %s406
    %s410 = sphi 0, %s409
    %s426 = sphi 0, %s410
  $region4: #{_lambda_.3} parent=0 // loop_header_branch
    %23 = sbr.rel (%p21) target = $region8
  $region5: #{_lambda_.3} parent=0 // loop_body
    %s25 = ssub.s32 %s20, 1
    %s26 = ssub.s32 %s20, 2
    %s33 = sadd.s32 1, %s28
    %p34 = scmp.ge.s32.totalorder %s33, 2
    %s35 = scalar_select %p34, 0, %s33
    %s36 = sadd.s32 1, %s27
    %s37 = scalar_select %p34, %s36, %s27
    %p38 = scmp.ge.s32.totalorder %s37, 2
    %s39 = scalar_select %p38, 0, %s37
    %s40 = ssub.s32 %s27, %s39
    %p41 = scmp.eq.s32.totalorder %s40, 0
    %s43 = sadd.s32 %s42, 1
    %s44 = scalar_select %p41, %s42, %s43
    %p47 = pneg %p41
    %p48 = scmp.eq.s32.totalorder %s20, 3
    %p49 = por %p47, %p48
    %p50 = scmp.ne.s32.totalorder %s42, %s45
    %p51 = scmp.eq.s32.totalorder %s20, 0
    %p52 = por %p50, %p51
    %p53 = scmp.ne.s32.totalorder %s42, %s45
    %p54 = scmp.eq.s32.totalorder %s25, 3
    %p55 = por %p53, %p54
    %p56 = scmp.ne.s32.totalorder %s45, %s46
    %p57 = scmp.eq.s32.totalorder %s25, 0
    %p58 = por %p56, %p57
    %p59 = scmp.ne.s32.totalorder %s45, %s46
    %p60 = scmp.eq.s32.totalorder %s26, 3
    %p61 = por %p59, %p60
    %p63 = scmp.ne.s32.totalorder %s46, %s62
    %p64 = scmp.eq.s32.totalorder %s26, 0
    %p65 = por %p63, %p64
    %s66 = ssub.s32 %s27, %s39
    %p67 = scmp.eq.s32.totalorder %s66, 0
    %s69 = sadd.s32 %s68, 1
    %s70 = scalar_select %p67, %s68, %s69
    %p73 = pneg %p67
    %p74 = scmp.eq.s32.totalorder %s20, 3
    %p75 = por %p73, %p74
    %p76 = scmp.ne.s32.totalorder %s68, %s71
    %p77 = scmp.eq.s32.totalorder %s20, 0
    %p78 = por %p76, %p77
    %p79 = scmp.ne.s32.totalorder %s68, %s71
    %p80 = scmp.eq.s32.totalorder %s25, 3
    %p81 = por %p79, %p80
    %p82 = scmp.ne.s32.totalorder %s71, %s72
    %p83 = scmp.eq.s32.totalorder %s25, 0
    %p84 = por %p82, %p83
    %p85 = scmp.ne.s32.totalorder %s71, %s72
    %p86 = scmp.eq.s32.totalorder %s26, 3
    %p87 = por %p85, %p86
    %p89 = scmp.ne.s32.totalorder %s72, %s88
    %p90 = scmp.eq.s32.totalorder %s26, 0
    %p91 = por %p89, %p90
    %s92 = ssub.s32 %s28, %s35
    %p93 = scmp.eq.s32.totalorder %s92, 0
    %s95 = sadd.s32 %s94, 1
    %s96 = scalar_select %p93, %s94, %s95
    %p99 = pneg %p93
    %p100 = scmp.eq.s32.totalorder %s20, 3
    %p101 = por %p99, %p100
    %p102 = scmp.ne.s32.totalorder %s94, %s97
    %p103 = scmp.eq.s32.totalorder %s20, 0
    %p104 = por %p102, %p103
    %p105 = scmp.ne.s32.totalorder %s94, %s97
    %p106 = scmp.eq.s32.totalorder %s25, 3
    %p107 = por %p105, %p106
    %p108 = scmp.ne.s32.totalorder %s97, %s98
    %p109 = scmp.eq.s32.totalorder %s25, 0
    %p110 = por %p108, %p109
    %p111 = scmp.ne.s32.totalorder %s97, %s98
    %p112 = scmp.eq.s32.totalorder %s26, 3
    %p113 = por %p111, %p112
    %p115 = scmp.ne.s32.totalorder %s98, %s114
    %p116 = scmp.eq.s32.totalorder %s26, 0
    %p117 = por %p115, %p116
    %s118 = ssub.s32 %s28, %s35
    %p119 = scmp.eq.s32.totalorder %s118, 0
    %s121 = sadd.s32 %s120, 1
    %s122 = scalar_select %p119, %s120, %s121
    %p125 = pneg %p119
    %p126 = scmp.eq.s32.totalorder %s20, 3
    %p127 = por %p125, %p126
    %p128 = scmp.ne.s32.totalorder %s120, %s123
    %p129 = scmp.eq.s32.totalorder %s20, 0
    %p130 = por %p128, %p129
    %p131 = scmp.ne.s32.totalorder %s120, %s123
    %p132 = scmp.eq.s32.totalorder %s25, 3
    %p133 = por %p131, %p132
    %p134 = scmp.ne.s32.totalorder %s123, %s124
    %p135 = scmp.eq.s32.totalorder %s25, 0
    %p136 = por %p134, %p135
    %p137 = scmp.ne.s32.totalorder %s123, %s124
    %p138 = scmp.eq.s32.totalorder %s26, 3
    %p139 = por %p137, %p138
    %p141 = scmp.ne.s32.totalorder %s124, %s140
    %p142 = scmp.eq.s32.totalorder %s26, 0
    %p143 = por %p141, %p142
    %s144 = ssub.s32 %s28, %s35
    %p145 = scmp.eq.s32.totalorder %s144, 0
    %s147 = sadd.s32 %s146, 1
    %s148 = scalar_select %p145, %s146, %s147
    %p151 = pneg %p145
    %p152 = scmp.eq.s32.totalorder %s20, 3
    %p153 = por %p151, %p152
    %p154 = scmp.ne.s32.totalorder %s146, %s149
    %p155 = scmp.eq.s32.totalorder %s20, 0
    %p156 = por %p154, %p155
    %p157 = scmp.ne.s32.totalorder %s146, %s149
    %p158 = scmp.eq.s32.totalorder %s25, 3
    %p159 = por %p157, %p158
    %p160 = scmp.ne.s32.totalorder %s149, %s150
    %p161 = scmp.eq.s32.totalorder %s25, 0
    %p162 = por %p160, %p161
    %p163 = scmp.ne.s32.totalorder %s149, %s150
    %p164 = scmp.eq.s32.totalorder %s26, 3
    %p165 = por %p163, %p164
    %p167 = scmp.ne.s32.totalorder %s150, %s166
    %p168 = scmp.eq.s32.totalorder %s26, 0
    %p169 = por %p167, %p168
    %s170 = ssub.s32 %s28, %s35
    %p171 = scmp.eq.s32.totalorder %s170, 0
    %s173 = sadd.s32 %s172, 1
    %s174 = scalar_select %p171, %s172, %s173
    %p177 = pneg %p171
    %p178 = scmp.eq.s32.totalorder %s20, 3
    %p179 = por %p177, %p178
    %p180 = scmp.ne.s32.totalorder %s172, %s175
    %p181 = scmp.eq.s32.totalorder %s20, 0
    %p182 = por %p180, %p181
    %p183 = scmp.ne.s32.totalorder %s172, %s175
    %p184 = scmp.eq.s32.totalorder %s25, 3
    %p185 = por %p183, %p184
    %p186 = scmp.ne.s32.totalorder %s175, %s176
    %p187 = scmp.eq.s32.totalorder %s25, 0
    %p188 = por %p186, %p187
    %p189 = scmp.ne.s32.totalorder %s175, %s176
    %p190 = scmp.eq.s32.totalorder %s26, 3
    %p191 = por %p189, %p190
    %p193 = scmp.ne.s32.totalorder %s176, %s192
    %p194 = scmp.eq.s32.totalorder %s26, 0
    %p195 = por %p193, %p194
    %s196 = ssub.s32 %s28, %s35
    %p197 = scmp.eq.s32.totalorder %s196, 0
    %s199 = sadd.s32 %s198, 1
    %s200 = scalar_select %p197, %s198, %s199
    %p203 = pneg %p197
    %p204 = scmp.eq.s32.totalorder %s20, 3
    %p205 = por %p203, %p204
    %p206 = scmp.ne.s32.totalorder %s198, %s201
    %p207 = scmp.eq.s32.totalorder %s20, 0
    %p208 = por %p206, %p207
    %p209 = scmp.ne.s32.totalorder %s198, %s201
    %p210 = scmp.eq.s32.totalorder %s25, 3
    %p211 = por %p209, %p210
    %p212 = scmp.ne.s32.totalorder %s201, %s202
    %p213 = scmp.eq.s32.totalorder %s25, 0
    %p214 = por %p212, %p213
    %p215 = scmp.ne.s32.totalorder %s201, %s202
    %p216 = scmp.eq.s32.totalorder %s26, 3
    %p217 = por %p215, %p216
    %p219 = scmp.ne.s32.totalorder %s202, %s218
    %p220 = scmp.eq.s32.totalorder %s26, 0
    %p221 = por %p219, %p220
    %s222 = ssub.s32 %s28, %s35
    %p223 = scmp.eq.s32.totalorder %s222, 0
    %s225 = sadd.s32 %s224, 1
    %s226 = scalar_select %p223, %s224, %s225
    %p229 = pneg %p223
    %p230 = scmp.eq.s32.totalorder %s20, 3
    %p231 = por %p229, %p230
    %p232 = scmp.ne.s32.totalorder %s224, %s227
    %p233 = scmp.eq.s32.totalorder %s20, 0
    %p234 = por %p232, %p233
    %p235 = scmp.ne.s32.totalorder %s224, %s227
    %p236 = scmp.eq.s32.totalorder %s25, 3
    %p237 = por %p235, %p236
    %p238 = scmp.ne.s32.totalorder %s227, %s228
    %p239 = scmp.eq.s32.totalorder %s25, 0
    %p240 = por %p238, %p239
    %p241 = scmp.ne.s32.totalorder %s227, %s228
    %p242 = scmp.eq.s32.totalorder %s26, 3
    %p243 = por %p241, %p242
    %p245 = scmp.ne.s32.totalorder %s228, %s244
    %p246 = scmp.eq.s32.totalorder %s26, 0
    %p247 = por %p245, %p246
    %s248 = ssub.s32 %s28, %s35
    %p249 = scmp.eq.s32.totalorder %s248, 0
    %s251 = sadd.s32 %s250, 1
    %s252 = scalar_select %p249, %s250, %s251
    %p255 = pneg %p249
    %p256 = scmp.eq.s32.totalorder %s20, 3
    %p257 = por %p255, %p256
    %p258 = scmp.ne.s32.totalorder %s250, %s253
    %p259 = scmp.eq.s32.totalorder %s20, 0
    %p260 = por %p258, %p259
    %p261 = scmp.ne.s32.totalorder %s250, %s253
    %p262 = scmp.eq.s32.totalorder %s25, 3
    %p263 = por %p261, %p262
    %p264 = scmp.ne.s32.totalorder %s253, %s254
    %p265 = scmp.eq.s32.totalorder %s25, 0
    %p266 = por %p264, %p265
    %p267 = scmp.ne.s32.totalorder %s253, %s254
    %p268 = scmp.eq.s32.totalorder %s26, 3
    %p269 = por %p267, %p268
    %p271 = scmp.ne.s32.totalorder %s254, %s270
    %p272 = scmp.eq.s32.totalorder %s26, 0
    %p273 = por %p271, %p272
    %s274 = ssub.s32 %s28, %s35
    %p275 = scmp.eq.s32.totalorder %s274, 0
    %s277 = sadd.s32 %s276, 1
    %s278 = scalar_select %p275, %s276, %s277
    %p281 = pneg %p275
    %p282 = scmp.eq.s32.totalorder %s20, 3
    %p283 = por %p281, %p282
    %p284 = scmp.ne.s32.totalorder %s276, %s279
    %p285 = scmp.eq.s32.totalorder %s20, 0
    %p286 = por %p284, %p285
    %p287 = scmp.ne.s32.totalorder %s276, %s279
    %p288 = scmp.eq.s32.totalorder %s25, 3
    %p289 = por %p287, %p288
    %p290 = scmp.ne.s32.totalorder %s279, %s280
    %p291 = scmp.eq.s32.totalorder %s25, 0
    %p292 = por %p290, %p291
    %p293 = scmp.ne.s32.totalorder %s279, %s280
    %p294 = scmp.eq.s32.totalorder %s26, 3
    %p295 = por %p293, %p294
    %p297 = scmp.ne.s32.totalorder %s280, %s296
    %p298 = scmp.eq.s32.totalorder %s26, 0
    %p299 = por %p297, %p298
    %s300 = ssub.s32 %s28, %s35
    %p301 = scmp.eq.s32.totalorder %s300, 0
    %s303 = sadd.s32 %s302, 1
    %s304 = scalar_select %p301, %s302, %s303
    %p307 = pneg %p301
    %p308 = scmp.eq.s32.totalorder %s20, 3
    %p309 = por %p307, %p308
    %p310 = scmp.ne.s32.totalorder %s302, %s305
    %p311 = scmp.eq.s32.totalorder %s20, 0
    %p312 = por %p310, %p311
    %p313 = scmp.ne.s32.totalorder %s302, %s305
    %p314 = scmp.eq.s32.totalorder %s25, 3
    %p315 = por %p313, %p314
    %p316 = scmp.ne.s32.totalorder %s305, %s306
    %p317 = scmp.eq.s32.totalorder %s25, 0
    %p318 = por %p316, %p317
    %p319 = scmp.ne.s32.totalorder %s305, %s306
    %p320 = scmp.eq.s32.totalorder %s26, 3
    %p321 = por %p319, %p320
    %p323 = scmp.ne.s32.totalorder %s306, %s322
    %p324 = scmp.eq.s32.totalorder %s26, 0
    %p325 = por %p323, %p324
    %s326 = ssub.s32 %s28, %s35
    %p327 = scmp.eq.s32.totalorder %s326, 0
    %s329 = sadd.s32 %s328, 1
    %s330 = scalar_select %p327, %s328, %s329
    %p333 = pneg %p327
    %p334 = scmp.eq.s32.totalorder %s20, 3
    %p335 = por %p333, %p334
    %p336 = scmp.ne.s32.totalorder %s328, %s331
    %p337 = scmp.eq.s32.totalorder %s20, 0
    %p338 = por %p336, %p337
    %p339 = scmp.ne.s32.totalorder %s328, %s331
    %p340 = scmp.eq.s32.totalorder %s25, 3
    %p341 = por %p339, %p340
    %p342 = scmp.ne.s32.totalorder %s331, %s332
    %p343 = scmp.eq.s32.totalorder %s25, 0
    %p344 = por %p342, %p343
    %p345 = scmp.ne.s32.totalorder %s331, %s332
    %p346 = scmp.eq.s32.totalorder %s26, 3
    %p347 = por %p345, %p346
    %p349 = scmp.ne.s32.totalorder %s332, %s348
    %p350 = scmp.eq.s32.totalorder %s26, 0
    %p351 = por %p349, %p350
    %s352 = ssub.s32 %s28, %s35
    %p353 = scmp.eq.s32.totalorder %s352, 0
    %s355 = sadd.s32 %s354, 1
    %s356 = scalar_select %p353, %s354, %s355
    %p359 = pneg %p353
    %p360 = scmp.eq.s32.totalorder %s20, 3
    %p361 = por %p359, %p360
    %p362 = scmp.ne.s32.totalorder %s354, %s357
    %p363 = scmp.eq.s32.totalorder %s20, 0
    %p364 = por %p362, %p363
    %p365 = scmp.ne.s32.totalorder %s354, %s357
    %p366 = scmp.eq.s32.totalorder %s25, 3
    %p367 = por %p365, %p366
    %p368 = scmp.ne.s32.totalorder %s357, %s358
    %p369 = scmp.eq.s32.totalorder %s25, 0
    %p370 = por %p368, %p369
    %p371 = scmp.ne.s32.totalorder %s357, %s358
    %p372 = scmp.eq.s32.totalorder %s26, 3
    %p373 = por %p371, %p372
    %p375 = scmp.ne.s32.totalorder %s358, %s374
    %p376 = scmp.eq.s32.totalorder %s26, 0
    %p377 = por %p375, %p376
    %s378 = ssub.s32 %s28, %s35
    %p379 = scmp.eq.s32.totalorder %s378, 0
    %s381 = sadd.s32 %s380, 1
    %s382 = scalar_select %p379, %s380, %s381
    %p385 = pneg %p379
    %p386 = scmp.eq.s32.totalorder %s20, 3
    %p387 = por %p385, %p386
    %p388 = scmp.ne.s32.totalorder %s380, %s383
    %p389 = scmp.eq.s32.totalorder %s20, 0
    %p390 = por %p388, %p389
    %p391 = scmp.ne.s32.totalorder %s380, %s383
    %p392 = scmp.eq.s32.totalorder %s25, 3
    %p393 = por %p391, %p392
    %p394 = scmp.ne.s32.totalorder %s383, %s384
    %p395 = scmp.eq.s32.totalorder %s25, 0
    %p396 = por %p394, %p395
    %p397 = scmp.ne.s32.totalorder %s383, %s384
    %p398 = scmp.eq.s32.totalorder %s26, 3
    %p399 = por %p397, %p398
    %p401 = scmp.ne.s32.totalorder %s384, %s400
    %p402 = scmp.eq.s32.totalorder %s26, 0
    %p403 = por %p401, %p402
    %s404 = ssub.s32 %s27, %s39
    %p405 = scmp.eq.s32.totalorder %s404, 0
    %s407 = sadd.s32 %s406, 1
    %s408 = scalar_select %p405, %s406, %s407
    %p411 = pneg %p405
    %p412 = scmp.eq.s32.totalorder %s20, 3
    %p413 = por %p411, %p412
    %p414 = scmp.ne.s32.totalorder %s406, %s409
    %p415 = scmp.eq.s32.totalorder %s20, 0
    %p416 = por %p414, %p415
    %p417 = scmp.ne.s32.totalorder %s406, %s409
    %p418 = scmp.eq.s32.totalorder %s25, 3
    %p419 = por %p417, %p418
    %p420 = scmp.ne.s32.totalorder %s409, %s410
    %p421 = scmp.eq.s32.totalorder %s25, 0
    %p422 = por %p420, %p421
    %p423 = scmp.ne.s32.totalorder %s409, %s410
    %p424 = scmp.eq.s32.totalorder %s26, 3
    %p425 = por %p423, %p424
    %p427 = scmp.ne.s32.totalorder %s410, %s426
    %p428 = scmp.eq.s32.totalorder %s26, 0
    %p429 = por %p427, %p428
    %p430 = scmp.le.s32.totalorder 1, %s20
    %p431 = scmp.lt.s32.totalorder %s20, 5
    %p432 = pnand %p430, %p431
    %p433 = pneg %p432
    // Predicated region
    $region9: #{_lambda_.3} parent=5 // pred_check
      _
    $region10: #{_lambda_.3} parent=5 // pred_check_branch
      %435 = sbr.rel (%p432) target = $region12
    $region11: #{_lambda_.3} parent=5 // pred_region
      %s436 = ssub.s32 %s20, 1
    $region12: #{_lambda_.3} parent=5 // pred_fallthru
      _
    %p437 = scmp.lt.s32.totalorder %s20, 4
    // Predicated region
    $region13: #{_lambda_.3} parent=5 // pred_check
      %p438 = pneg %p437
    $region14: #{_lambda_.3} parent=5 // pred_check_branch
      %440 = sbr.rel (%p438) target = $region16
    $region15: #{_lambda_.3} parent=5 // pred_region
      // Predicated region
      $region17: #{_lambda_.3} parent=15 // pred_check
        %p441 = pneg %p52
      $region18: #{_lambda_.3} parent=15 // pred_check_branch
        %443 = sbr.rel (%p441) target = $region20
      $region19: #{_lambda_.3} parent=15 // pred_region
        %p444 = scmp.lt.s32.totalorder %s27, 1
        %s445 = scalar_select %p444, %s27, 1
        %s446 = smul.addr %s445, 8
        %s447 = scalar_lea.vmem %s0, %s446
      $region20: #{_lambda_.3} parent=15 // pred_fallthru
        _
      // Predicated region
      $region21: #{_lambda_.3} parent=15 // pred_check
        %p448 = pneg %p78
      $region22: #{_lambda_.3} parent=15 // pred_check_branch
        %450 = sbr.rel (%p448) target = $region24
      $region23: #{_lambda_.3} parent=15 // pred_region
        %p451 = scmp.lt.s32.totalorder %s27, 1
        %s452 = scalar_select %p451, %s27, 1
        %s453 = scalar_lea.vmem %s1, %s452
      $region24: #{_lambda_.3} parent=15 // pred_fallthru
        _
      // Predicated region
      $region25: #{_lambda_.3} parent=15 // pred_check
        %p454 = pneg %p104
      $region26: #{_lambda_.3} parent=15 // pred_check_branch
        %456 = sbr.rel (%p454) target = $region28
      $region27: #{_lambda_.3} parent=15 // pred_region
        %p457 = scmp.lt.s32.totalorder %s28, 1
        %s458 = scalar_select %p457, %s28, 1
        %s459 = smul.addr %s458, 4
        %s460 = smul.addr %s459, 4
        %s461 = scalar_lea.vmem %s2, %s460
      $region28: #{_lambda_.3} parent=15 // pred_fallthru
        _
      // Predicated region
      $region29: #{_lambda_.3} parent=15 // pred_check
        %p462 = pneg %p130
      $region30: #{_lambda_.3} parent=15 // pred_check_branch
        %464 = sbr.rel (%p462) target = $region32
      $region31: #{_lambda_.3} parent=15 // pred_region
        %p465 = scmp.lt.s32.totalorder %s28, 1
        %s466 = scalar_select %p465, %s28, 1
        %s467 = scalar_lea.vmem %s3, %s466
      $region32: #{_lambda_.3} parent=15 // pred_fallthru
        _
      // Predicated region
      $region33: #{_lambda_.3} parent=15 // pred_check
        %p468 = pneg %p156
      $region34: #{_lambda_.3} parent=15 // pred_check_branch
        %470 = sbr.rel (%p468) target = $region36
      $region35: #{_lambda_.3} parent=15 // pred_region
        %p471 = scmp.lt.s32.totalorder %s28, 1
        %s472 = scalar_select %p471, %s28, 1
        %s473 = smul.addr %s472, 4
        %s474 = smul.addr %s473, 4
        %s475 = scalar_lea.vmem %s4, %s474
      $region36: #{_lambda_.3} parent=15 // pred_fallthru
        _
      // Predicated region
      $region37: #{_lambda_.3} parent=15 // pred_check
        %p476 = pneg %p182
      $region38: #{_lambda_.3} parent=15 // pred_check_branch
        %478 = sbr.rel (%p476) target = $region40
      $region39: #{_lambda_.3} parent=15 // pred_region
        %p479 = scmp.lt.s32.totalorder %s28, 1
        %s480 = scalar_select %p479, %s28, 1
        %s481 = scalar_lea.vmem %s5, %s480
      $region40: #{_lambda_.3} parent=15 // pred_fallthru
        _
      // Predicated region
      $region41: #{_lambda_.3} parent=15 // pred_check
        %p482 = pneg %p208
      $region42: #{_lambda_.3} parent=15 // pred_check_branch
        %484 = sbr.rel (%p482) target = $region44
      $region43: #{_lambda_.3} parent=15 // pred_region
        %p485 = scmp.lt.s32.totalorder %s28, 1
        %s486 = scalar_select %p485, %s28, 1
        %s487 = scalar_lea.vmem %s6, %s486
      $region44: #{_lambda_.3} parent=15 // pred_fallthru
        _
      // Predicated region
      $region45: #{_lambda_.3} parent=15 // pred_check
        %p488 = pneg %p234
      $region46: #{_lambda_.3} parent=15 // pred_check_branch
        %490 = sbr.rel (%p488) target = $region48
      $region47: #{_lambda_.3} parent=15 // pred_region
        %p491 = scmp.lt.s32.totalorder %s28, 1
        %s492 = scalar_select %p491, %s28, 1
        %s493 = scalar_lea.vmem %s7, %s492
      $region48: #{_lambda_.3} parent=15 // pred_fallthru
        _
      // Predicated region
      $region49: #{_lambda_.3} parent=15 // pred_check
        %p494 = pneg %p260
      $region50: #{_lambda_.3} parent=15 // pred_check_branch
        %496 = sbr.rel (%p494) target = $region52
      $region51: #{_lambda_.3} parent=15 // pred_region
        %p497 = scmp.lt.s32.totalorder %s28, 1
        %s498 = scalar_select %p497, %s28, 1
        %s499 = smul.addr %s498, 4
        %s500 = smul.addr %s499, 4
        %s501 = scalar_lea.vmem %s8, %s500
      $region52: #{_lambda_.3} parent=15 // pred_fallthru
        _
      // Predicated region
      $region53: #{_lambda_.3} parent=15 // pred_check
        %p502 = pneg %p286
      $region54: #{_lambda_.3} parent=15 // pred_check_branch
        %504 = sbr.rel (%p502) target = $region56
      $region55: #{_lambda_.3} parent=15 // pred_region
        %p505 = scmp.lt.s32.totalorder %s28, 1
        %s506 = scalar_select %p505, %s28, 1
        %s507 = scalar_lea.vmem %s9, %s506
      $region56: #{_lambda_.3} parent=15 // pred_fallthru
        _
      // Predicated region
      $region57: #{_lambda_.3} parent=15 // pred_check
        %p508 = pneg %p312
      $region58: #{_lambda_.3} parent=15 // pred_check_branch
        %510 = sbr.rel (%p508) target = $region60
      $region59: #{_lambda_.3} parent=15 // pred_region
        %p511 = scmp.lt.s32.totalorder %s28, 1
        %s512 = scalar_select %p511, %s28, 1
        %s513 = smul.addr %s512, 8
        %s514 = smul.addr %s513, 4
        %s515 = scalar_lea.vmem %s10, %s514
      $region60: #{_lambda_.3} parent=15 // pred_fallthru
        _
      // Predicated region
      $region61: #{_lambda_.3} parent=15 // pred_check
        %p516 = pneg %p338
      $region62: #{_lambda_.3} parent=15 // pred_check_branch
        %518 = sbr.rel (%p516) target = $region64
      $region63: #{_lambda_.3} parent=15 // pred_region
        %p519 = scmp.lt.s32.totalorder %s28, 1
        %s520 = scalar_select %p519, %s28, 1
        %s521 = scalar_lea.vmem %s11, %s520
      $region64: #{_lambda_.3} parent=15 // pred_fallthru
        _
      // Predicated region
      $region65: #{_lambda_.3} parent=15 // pred_check
        %p522 = pneg %p364
      $region66: #{_lambda_.3} parent=15 // pred_check_branch
        %524 = sbr.rel (%p522) target = $region68
      $region67: #{_lambda_.3} parent=15 // pred_region
        %p525 = scmp.lt.s32.totalorder %s28, 1
        %s526 = scalar_select %p525, %s28, 1
        %s527 = scalar_lea.vmem %s12, %s526
      $region68: #{_lambda_.3} parent=15 // pred_fallthru
        _
      // Predicated region
      $region69: #{_lambda_.3} parent=15 // pred_check
        %p528 = pneg %p390
      $region70: #{_lambda_.3} parent=15 // pred_check_branch
        %530 = sbr.rel (%p528) target = $region72
      $region71: #{_lambda_.3} parent=15 // pred_region
        %p531 = scmp.lt.s32.totalorder %s28, 1
        %s532 = scalar_select %p531, %s28, 1
        %s533 = scalar_lea.vmem %s13, %s532
      $region72: #{_lambda_.3} parent=15 // pred_fallthru
        _
    $region16: #{_lambda_.3} parent=5 // pred_fallthru
      _
    %p534 = scmp.le.s32.totalorder 1, %s20
    %p535 = scmp.lt.s32.totalorder %s20, 5
    %p536 = pnand %p534, %p535
    %p537 = pneg %p536
    // Predicated region
    $region73: #{_lambda_.3} parent=5 // pred_check
      _
    $region74: #{_lambda_.3} parent=5 // pred_check_branch
      %539 = sbr.rel (%p536) target = $region76
    $region75: #{_lambda_.3} parent=5 // pred_region
      %s540 = ssub.s32 %s20, 1
      %p541 = scmp.lt.s32.totalorder %s29, 1
      %s542 = scalar_select %p541, %s29, 1
      %s543 = smul.addr %s542, 8
      %s544 = scalar_lea.vmem %s0, %s543
      %p545 = pneg %p58
      %p546 = pneg %p55
      %p547 = scmp.lt.s32.totalorder %s29, 1
      %s548 = scalar_select %p547, %s29, 1
      %s549 = scalar_lea.vmem %s1, %s548
      %p550 = pneg %p84
      %p551 = pneg %p81
      %p552 = scmp.lt.s32.totalorder %s30, 1
      %s553 = scalar_select %p552, %s30, 1
      %s554 = smul.addr %s553, 4
      %s555 = smul.addr %s554, 4
      %s556 = scalar_lea.vmem %s2, %s555
      %p557 = pneg %p110
      %p558 = pneg %p107
      %p559 = scmp.lt.s32.totalorder %s30, 1
      %s560 = scalar_select %p559, %s30, 1
      %s561 = scalar_lea.vmem %s3, %s560
      %p562 = pneg %p136
      %p563 = pneg %p133
      %p564 = scmp.lt.s32.totalorder %s30, 1
      %s565 = scalar_select %p564, %s30, 1
      %s566 = smul.addr %s565, 4
      %s567 = smul.addr %s566, 4
      %s568 = scalar_lea.vmem %s4, %s567
      %p569 = pneg %p162
      %p570 = pneg %p159
      %p571 = scmp.lt.s32.totalorder %s30, 1
      %s572 = scalar_select %p571, %s30, 1
      %s573 = scalar_lea.vmem %s5, %s572
      %p574 = pneg %p188
      %p575 = pneg %p185
      %p576 = scmp.lt.s32.totalorder %s30, 1
      %s577 = scalar_select %p576, %s30, 1
      %s578 = scalar_lea.vmem %s6, %s577
      %p579 = pneg %p214
      %p580 = pneg %p211
      %p581 = scmp.lt.s32.totalorder %s30, 1
      %s582 = scalar_select %p581, %s30, 1
      %s583 = scalar_lea.vmem %s7, %s582
      %p584 = pneg %p240
      %p585 = pneg %p237
      %p586 = scmp.lt.s32.totalorder %s30, 1
      %s587 = scalar_select %p586, %s30, 1
      %s588 = smul.addr %s587, 4
      %s589 = smul.addr %s588, 4
      %s590 = scalar_lea.vmem %s8, %s589
      %p591 = pneg %p266
      %p592 = pneg %p263
      %p593 = scmp.lt.s32.totalorder %s30, 1
      %s594 = scalar_select %p593, %s30, 1
      %s595 = scalar_lea.vmem %s9, %s594
      %p596 = pneg %p292
      %p597 = pneg %p289
      %p598 = scmp.lt.s32.totalorder %s30, 1
      %s599 = scalar_select %p598, %s30, 1
      %s600 = smul.addr %s599, 8
      %s601 = smul.addr %s600, 4
      %s602 = scalar_lea.vmem %s10, %s601
      %p603 = pneg %p318
      %p604 = pneg %p315
      %p605 = scmp.lt.s32.totalorder %s30, 1
      %s606 = scalar_select %p605, %s30, 1
      %s607 = scalar_lea.vmem %s11, %s606
      %p608 = pneg %p344
      %p609 = pneg %p341
      %p610 = scmp.lt.s32.totalorder %s30, 1
      %s611 = scalar_select %p610, %s30, 1
      %s612 = scalar_lea.vmem %s12, %s611
      %p613 = pneg %p370
      %p614 = pneg %p367
      %p615 = scmp.lt.s32.totalorder %s30, 1
      %s616 = scalar_select %p615, %s30, 1
      %s617 = scalar_lea.vmem %s13, %s616
      %p618 = pneg %p396
      %p619 = pneg %p393
      %p620 = pneg %p422
      %p621 = pneg %p419
      %p622 = scmp.lt.s32.totalorder %s29, 1
      %s623 = scalar_select %p622, %s29, 1
      %s624 = smul.addr %s623, 4
      %s625 = scalar_lea.vmem %s14, %s624
      %p626 = scmp.lt.s32.totalorder %s29, 1
      %s627 = scalar_select %p626, %s29, 1
      %s628 = smul.addr %s627, 8
      %s629 = scalar_lea.vmem %s0, %s628
      %p630 = scmp.lt.s32.totalorder %s29, 1
      %s631 = scalar_select %p630, %s29, 1
      %s632 = scalar_lea.vmem %s1, %s631
      %p633 = scmp.lt.s32.totalorder %s30, 1
      %s634 = scalar_select %p633, %s30, 1
      %s635 = smul.addr %s634, 4
      %s636 = smul.addr %s635, 4
      %s637 = scalar_lea.vmem %s2, %s636
      %p638 = scmp.lt.s32.totalorder %s30, 1
      %s639 = scalar_select %p638, %s30, 1
      %s640 = scalar_lea.vmem %s3, %s639
      %p641 = scmp.lt.s32.totalorder %s30, 1
      %s642 = scalar_select %p641, %s30, 1
      %s643 = smul.addr %s642, 4
      %s644 = smul.addr %s643, 4
      %s645 = scalar_lea.vmem %s4, %s644
      %p646 = scmp.lt.s32.totalorder %s30, 1
      %s647 = scalar_select %p646, %s30, 1
      %s648 = scalar_lea.vmem %s5, %s647
      %p649 = scmp.lt.s32.totalorder %s30, 1
      %s650 = scalar_select %p649, %s30, 1
      %s651 = scalar_lea.vmem %s6, %s650
      %p652 = scmp.lt.s32.totalorder %s30, 1
      %s653 = scalar_select %p652, %s30, 1
      %s654 = scalar_lea.vmem %s7, %s653
      %p655 = scmp.lt.s32.totalorder %s30, 1
      %s656 = scalar_select %p655, %s30, 1
      %s657 = smul.addr %s656, 4
      %s658 = smul.addr %s657, 4
      %s659 = scalar_lea.vmem %s8, %s658
      %p660 = scmp.lt.s32.totalorder %s30, 1
      %s661 = scalar_select %p660, %s30, 1
      %s662 = scalar_lea.vmem %s9, %s661
      %p663 = scmp.lt.s32.totalorder %s30, 1
      %s664 = scalar_select %p663, %s30, 1
      %s665 = smul.addr %s664, 8
      %s666 = smul.addr %s665, 4
      %s667 = scalar_lea.vmem %s10, %s666
      %p668 = scmp.lt.s32.totalorder %s30, 1
      %s669 = scalar_select %p668, %s30, 1
      %s670 = scalar_lea.vmem %s11, %s669
      %p671 = scmp.lt.s32.totalorder %s30, 1
      %s672 = scalar_select %p671, %s30, 1
      %s673 = scalar_lea.vmem %s12, %s672
      %p674 = scmp.lt.s32.totalorder %s30, 1
      %s675 = scalar_select %p674, %s30, 1
      %s676 = scalar_lea.vmem %s13, %s675
      %p677 = scmp.lt.s32.totalorder %s29, 1
      %s678 = scalar_select %p677, %s29, 1
      %s679 = smul.addr %s678, 4
      %s680 = scalar_lea.vmem %s14, %s679
      %p682 = scmp.eq.s32.totalorder %s30, 0
      // Predicated region
      $region77: #{_lambda_.3} parent=75 // pred_check
        %p683 = pneg %p682
      $region78: #{_lambda_.3} parent=75 // pred_check_branch
        %685 = sbr.rel (%p683) target = $region80
      $region79: #{_lambda_.3} parent=75 // pred_region
        %v686 = vld [vmem:[%s629] sm:$0xff]
        %vm687 = vcmask 261120
        %688 = vst.msk [vmem:[#allocation2] sm:$0xff] %vm687, %v686
      $region80: #{_lambda_.3} parent=75 // pred_fallthru
        _
      %v689 = vld [vmem:[#allocation2] sm:$0xff]
      %v690 = vld [vmem:[%s632] sm:$0x1]
      %v691 = vpack.c.bf16 %v689, %v689
      %v692 = vld [vmem:[%s637] sm:$0xf]
      %v693 = vld [vmem:[%s637 + $0x4] sm:$0xf]
      %v694 = vld [vmem:[%s637 + $0x8] sm:$0xf]
      %v695 = vld [vmem:[%s637 + $0xc] sm:$0xf]
      %v696 = vld [vmem:[%s640] sm:$0x1]
      %v698 = vlaneseq
      %v699 = vshrl.u32 %v698, 7
      %v700 = vsub.s32 0, %v699
      %v701 = vrot.slane %v696, %v700
      %v707 = vunpack.c.l.b16 %v692
      %v708 = vunpack.c.l.b16 %v693
      %v709 = vunpack.c.l.b16 %v694
      %v710 = vunpack.c.l.b16 %v695
      %v711 = vpack.c.b16 %v708, %v707
      %v712 = vpack.c.b16 %v710, %v709
      %vm715 = vcmask 261120
      %v717 = vsel %vm715, %v691, 0
      %719 = vmatprep.subr.bf16.mxu0 0
      %720 = vmatpush1.bf16.msra.mxu0 0
      %721 = vmatprep.subr.bf16.mxu0 0
      %722 = vmatpush1.bf16.msra.mxu0 0
      %723 = vmatprep.subr.bf16.mxu0 0
      %724 = vmatpush1.bf16.msra.mxu0 0
      %725 = vmatprep.subr.bf16.mxu0 0
      %726 = vmatpush1.bf16.msra.mxu0 0
      %727 = vmatprep.subr.bf16.mxu0 0
      %728 = vmatpush1.bf16.msra.mxu0 0
      %729 = vmatprep.subr.bf16.mxu0 0
      %730 = vmatpush1.bf16.msra.mxu0 0
      %731 = vmatprep.subr.bf16.mxu0 0
      %732 = vmatpush1.bf16.msra.mxu0 %v712
      %733 = vmatprep.subr.bf16.mxu0 0
      %734 = vmatpush1.bf16.msra.mxu0 %v711
      %735 = vmatprep.subr.bf16.mxu0 0
      %736 = vmatpush2.bf16.msra.mxu0 0
      %737 = vmatprep.subr.bf16.mxu0 0
      %738 = vmatpush2.bf16.msra.mxu0 0
      %739 = vmatprep.subr.bf16.mxu0 0
      %740 = vmatpush2.bf16.msra.mxu0 0
      %741 = vmatprep.subr.bf16.mxu0 0
      %742 = vmatpush2.bf16.msra.mxu0 0
      %743 = vmatprep.subr.bf16.mxu0 0
      %744 = vmatpush2.bf16.msra.mxu0 0
      %745 = vmatprep.subr.bf16.mxu0 0
      %746 = vmatpush2.bf16.msra.mxu0 0
      %747 = vmatprep.subr.bf16.mxu0 0
      %748 = vmatpush2.bf16.msra.mxu0 0
      %749 = vmatprep.subr.bf16.mxu0 0
      %750 = vmatpush2.bf16.msra.mxu0 0
      %751 = vmatprep.mubr.bf16.mxu0 0
      %752 = vmatmul.mubr.bf16.gmra.mxu0 %v717
      %v753 = vpop.f32.mrf.mxu0
      %v754 = vadd.f32 %v701, %v753
      %v755 = vpop.f32.mrf.mxu0
      %v756 = vpop.f32.mrf.mxu0
      %v757 = vpop.f32.mrf.mxu0
      %758 = vdwg.mxu0
      %v759 = vpack.c.bf16 %v754, %v754
      %761 = vrot.lane.b32.xlu0 %v759, 120
      %v762 = vpop.permute.xlu0 %761
      %763 = vrot.lane.b32.xlu0 %v759, 112
      %v764 = vpop.permute.xlu0 %763
      %765 = vrot.lane.b32.xlu0 %v759, 104
      %v766 = vpop.permute.xlu0 %765
      %v767 = vld [vmem:[%s645] sm:$0xf]
      %v768 = vld [vmem:[%s645 + $0x4] sm:$0xf]
      %v769 = vld [vmem:[%s645 + $0x8] sm:$0xf]
      %v770 = vld [vmem:[%s645 + $0xc] sm:$0xf]
      %v771 = vld [vmem:[%s648] sm:$0x1]
      %v773 = vlaneseq
      %v774 = vshrl.u32 %v773, 7
      %v775 = vsub.s32 0, %v774
      %v776 = vrot.slane %v690, %v775
      %778 = vrot.lane.b32.xlu0 %v759, 96
      %v779 = vpop.permute.xlu0 %778
      %vm780 = vcmask 64512
      %v782 = vsel %vm780, %v759, 0
      %v785 = vsel %vm780, %v779, 0
      %787 = vmatprep.subr.bf16.mxu0 0
      %788 = vmatpush1.bf16.xpose.msra.mxu0 0
      %789 = vmatprep.subr.bf16.mxu0 0
      %790 = vmatpush1.bf16.xpose.msra.mxu0 0
      %791 = vmatprep.subr.bf16.mxu0 0
      %792 = vmatpush1.bf16.xpose.msra.mxu0 0
      %793 = vmatprep.subr.bf16.mxu0 0
      %794 = vmatpush1.bf16.xpose.msra.mxu0 0
      %795 = vmatprep.subr.bf16.mxu0 0
      %796 = vmatpush1.bf16.xpose.msra.mxu0 0
      %797 = vmatprep.subr.bf16.mxu0 0
      %798 = vmatpush1.bf16.xpose.msra.mxu0 0
      %799 = vmatprep.subr.bf16.mxu0 0
      %800 = vmatpush1.bf16.xpose.msra.mxu0 0
      %801 = vmatprep.subr.bf16.mxu0 0
      %802 = vmatpush1.bf16.xpose.msra.mxu0 %v785
      %803 = vmatprep.subr.bf16.mxu0 0
      %804 = vmatpush2.bf16.xpose.msra.mxu0 0
      %805 = vmatprep.subr.bf16.mxu0 0
      %806 = vmatpush2.bf16.xpose.msra.mxu0 0
      %807 = vmatprep.subr.bf16.mxu0 0
      %808 = vmatpush2.bf16.xpose.msra.mxu0 0
      %809 = vmatprep.subr.bf16.mxu0 0
      %810 = vmatpush2.bf16.xpose.msra.mxu0 0
      %811 = vmatprep.subr.bf16.mxu0 0
      %812 = vmatpush2.bf16.xpose.msra.mxu0 0
      %813 = vmatprep.subr.bf16.mxu0 0
      %814 = vmatpush2.bf16.xpose.msra.mxu0 0
      %815 = vmatprep.subr.bf16.mxu0 0
      %816 = vmatpush2.bf16.xpose.msra.mxu0 0
      %817 = vmatprep.subr.bf16.mxu0 0
      %818 = vmatpush2.bf16.xpose.msra.mxu0 0
      %819 = vmatprep.mubr.bf16.mxu0 0
      %820 = vmatmul.mubr.bf16.gmra.mxu0 %v782
      %v821 = vpop.f32.mrf.mxu0
      %v822 = vadd.f32 %v776, %v821
      %v823 = vpop.f32.mrf.mxu0
      %v824 = vpop.f32.mrf.mxu0
      %v825 = vpop.f32.mrf.mxu0
      %826 = vdwg.mxu0
      %827 = vrot.lane.b32.xlu0 %v762, 96
      %v828 = vpop.permute.xlu0 %827
      %v830 = vsel %vm780, %v762, 0
      %v833 = vsel %vm780, %v828, 0
      %835 = vmatprep.subr.bf16.mxu0 0
      %836 = vmatpush1.bf16.xpose.msra.mxu0 0
      %837 = vmatprep.subr.bf16.mxu0 0
      %838 = vmatpush1.bf16.xpose.msra.mxu0 0
      %839 = vmatprep.subr.bf16.mxu0 0
      %840 = vmatpush1.bf16.xpose.msra.mxu0 0
      %841 = vmatprep.subr.bf16.mxu0 0
      %842 = vmatpush1.bf16.xpose.msra.mxu0 0
      %843 = vmatprep.subr.bf16.mxu0 0
      %844 = vmatpush1.bf16.xpose.msra.mxu0 0
      %845 = vmatprep.subr.bf16.mxu0 0
      %846 = vmatpush1.bf16.xpose.msra.mxu0 0
      %847 = vmatprep.subr.bf16.mxu0 0
      %848 = vmatpush1.bf16.xpose.msra.mxu0 0
      %849 = vmatprep.subr.bf16.mxu0 0
      %850 = vmatpush1.bf16.xpose.msra.mxu0 %v833
      %851 = vmatprep.subr.bf16.mxu0 0
      %852 = vmatpush2.bf16.xpose.msra.mxu0 0
      %853 = vmatprep.subr.bf16.mxu0 0
      %854 = vmatpush2.bf16.xpose.msra.mxu0 0
      %855 = vmatprep.subr.bf16.mxu0 0
      %856 = vmatpush2.bf16.xpose.msra.mxu0 0
      %857 = vmatprep.subr.bf16.mxu0 0
      %858 = vmatpush2.bf16.xpose.msra.mxu0 0
      %859 = vmatprep.subr.bf16.mxu0 0
      %860 = vmatpush2.bf16.xpose.msra.mxu0 0
      %861 = vmatprep.subr.bf16.mxu0 0
      %862 = vmatpush2.bf16.xpose.msra.mxu0 0
      %863 = vmatprep.subr.bf16.mxu0 0
      %864 = vmatpush2.bf16.xpose.msra.mxu0 0
      %865 = vmatprep.subr.bf16.mxu0 0
      %866 = vmatpush2.bf16.xpose.msra.mxu0 0
      %867 = vmatprep.mubr.bf16.mxu0 0
      %868 = vmatmul.mubr.bf16.gmra.mxu0 %v830
      %v869 = vpop.f32.mrf.mxu0
      %v870 = vadd.f32 %v776, %v869
      %v871 = vpop.f32.mrf.mxu0
      %v872 = vpop.f32.mrf.mxu0
      %v873 = vpop.f32.mrf.mxu0
      %874 = vdwg.mxu0
      %875 = vrot.lane.b32.xlu0 %v764, 96
      %v876 = vpop.permute.xlu0 %875
      %v878 = vsel %vm780, %v764, 0
      %v881 = vsel %vm780, %v876, 0
      %883 = vmatprep.subr.bf16.mxu0 0
      %884 = vmatpush1.bf16.xpose.msra.mxu0 0
      %885 = vmatprep.subr.bf16.mxu0 0
      %886 = vmatpush1.bf16.xpose.msra.mxu0 0
      %887 = vmatprep.subr.bf16.mxu0 0
      %888 = vmatpush1.bf16.xpose.msra.mxu0 0
      %889 = vmatprep.subr.bf16.mxu0 0
      %890 = vmatpush1.bf16.xpose.msra.mxu0 0
      %891 = vmatprep.subr.bf16.mxu0 0
      %892 = vmatpush1.bf16.xpose.msra.mxu0 0
      %893 = vmatprep.subr.bf16.mxu0 0
      %894 = vmatpush1.bf16.xpose.msra.mxu0 0
      %895 = vmatprep.subr.bf16.mxu0 0
      %896 = vmatpush1.bf16.xpose.msra.mxu0 0
      %897 = vmatprep.subr.bf16.mxu0 0
      %898 = vmatpush1.bf16.xpose.msra.mxu0 %v881
      %899 = vmatprep.subr.bf16.mxu0 0
      %900 = vmatpush2.bf16.xpose.msra.mxu0 0
      %901 = vmatprep.subr.bf16.mxu0 0
      %902 = vmatpush2.bf16.xpose.msra.mxu0 0
      %903 = vmatprep.subr.bf16.mxu0 0
      %904 = vmatpush2.bf16.xpose.msra.mxu0 0
      %905 = vmatprep.subr.bf16.mxu0 0
      %906 = vmatpush2.bf16.xpose.msra.mxu0 0
      %907 = vmatprep.subr.bf16.mxu0 0
      %908 = vmatpush2.bf16.xpose.msra.mxu0 0
      %909 = vmatprep.subr.bf16.mxu0 0
      %910 = vmatpush2.bf16.xpose.msra.mxu0 0
      %911 = vmatprep.subr.bf16.mxu0 0
      %912 = vmatpush2.bf16.xpose.msra.mxu0 0
      %913 = vmatprep.subr.bf16.mxu0 0
      %914 = vmatpush2.bf16.xpose.msra.mxu0 0
      %915 = vmatprep.mubr.bf16.mxu0 0
      %916 = vmatmul.mubr.bf16.gmra.mxu0 %v878
      %v917 = vpop.f32.mrf.mxu0
      %v918 = vadd.f32 %v776, %v917
      %v919 = vpop.f32.mrf.mxu0
      %v920 = vpop.f32.mrf.mxu0
      %v921 = vpop.f32.mrf.mxu0
      %922 = vdwg.mxu0
      %923 = vrot.lane.b32.xlu0 %v766, 96
      %v924 = vpop.permute.xlu0 %923
      %v926 = vsel %vm780, %v766, 0
      %v929 = vsel %vm780, %v924, 0
      %931 = vmatprep.subr.bf16.mxu0 0
      %932 = vmatpush1.bf16.xpose.msra.mxu0 0
      %933 = vmatprep.subr.bf16.mxu0 0
      %934 = vmatpush1.bf16.xpose.msra.mxu0 0
      %935 = vmatprep.subr.bf16.mxu0 0
      %936 = vmatpush1.bf16.xpose.msra.mxu0 0
      %937 = vmatprep.subr.bf16.mxu0 0
      %938 = vmatpush1.bf16.xpose.msra.mxu0 0
      %939 = vmatprep.subr.bf16.mxu0 0
      %940 = vmatpush1.bf16.xpose.msra.mxu0 0
      %941 = vmatprep.subr.bf16.mxu0 0
      %942 = vmatpush1.bf16.xpose.msra.mxu0 0
      %943 = vmatprep.subr.bf16.mxu0 0
      %944 = vmatpush1.bf16.xpose.msra.mxu0 0
      %945 = vmatprep.subr.bf16.mxu0 0
      %946 = vmatpush1.bf16.xpose.msra.mxu0 %v929
      %947 = vmatprep.subr.bf16.mxu0 0
      %948 = vmatpush2.bf16.xpose.msra.mxu0 0
      %949 = vmatprep.subr.bf16.mxu0 0
      %950 = vmatpush2.bf16.xpose.msra.mxu0 0
      %951 = vmatprep.subr.bf16.mxu0 0
      %952 = vmatpush2.bf16.xpose.msra.mxu0 0
      %953 = vmatprep.subr.bf16.mxu0 0
      %954 = vmatpush2.bf16.xpose.msra.mxu0 0
      %955 = vmatprep.subr.bf16.mxu0 0
      %956 = vmatpush2.bf16.xpose.msra.mxu0 0
      %957 = vmatprep.subr.bf16.mxu0 0
      %958 = vmatpush2.bf16.xpose.msra.mxu0 0
      %959 = vmatprep.subr.bf16.mxu0 0
      %960 = vmatpush2.bf16.xpose.msra.mxu0 0
      %961 = vmatprep.subr.bf16.mxu0 0
      %962 = vmatpush2.bf16.xpose.msra.mxu0 0
      %963 = vmatprep.mubr.bf16.mxu0 0
      %964 = vmatmul.mubr.bf16.gmra.mxu0 %v926
      %v965 = vpop.f32.mrf.mxu0
      %v966 = vadd.f32 %v776, %v965
      %v967 = vpop.f32.mrf.mxu0
      %v968 = vpop.f32.mrf.mxu0
      %v969 = vpop.f32.mrf.mxu0
      %970 = vdwg.mxu0
      %v971 = vsel %vm780, %v822, -inf
      %972 = vmax.xlane.f32.xlu0 %v971
      %v973 = vpop.xlane.xlu0 %972
      %v974 = vsel %vm780, %v870, -inf
      %975 = vmax.xlane.f32.xlu0 %v974
      %v976 = vpop.xlane.xlu0 %975
      %v977 = vsel %vm780, %v918, -inf
      %978 = vmax.xlane.f32.xlu0 %v977
      %v979 = vpop.xlane.xlu0 %978
      %v980 = vsel %vm780, %v966, -inf
      %981 = vmax.xlane.f32.xlu0 %v980
      %v982 = vpop.xlane.xlu0 %981
      %v983 = vsub.f32 %v822, %v973
      %v984 = vsub.f32 %v870, %v976
      %v985 = vsub.f32 %v918, %v979
      %v986 = vsub.f32 %v966, %v982
      %v987 = vmul.f32 %v983, 1.442695
      %v988 = vpow.pop %v987
      %v989 = vmul.f32 %v984, 1.442695
      %v990 = vpow.pop %v989
      %v991 = vmul.f32 %v985, 1.442695
      %v992 = vpow.pop %v991
      %v993 = vmul.f32 %v986, 1.442695
      %v994 = vpow.pop %v993
      %v995 = vsel %vm780, %v988, 0.0
      %996 = vadd.xlane.f32.xlu0 %v995
      %v997 = vpop.xlane.xlu0 %996
      %v998 = vsel %vm780, %v990, 0.0
      %999 = vadd.xlane.f32.xlu0 %v998
      %v1000 = vpop.xlane.xlu0 %999
      %v1001 = vsel %vm780, %v992, 0.0
      %1002 = vadd.xlane.f32.xlu0 %v1001
      %v1003 = vpop.xlane.xlu0 %1002
      %v1004 = vsel %vm780, %v994, 0.0
      %1005 = vadd.xlane.f32.xlu0 %v1004
      %v1006 = vpop.xlane.xlu0 %1005
      %v1007 = vrcp.pop %v997
      %v1008 = vrcp.pop %v1000
      %v1009 = vrcp.pop %v1003
      %v1010 = vrcp.pop %v1006
      %v1011 = vmul.f32 %v988, %v1007
      %v1012 = vmul.f32 %v990, %v1008
      %v1013 = vmul.f32 %v992, %v1009
      %v1014 = vmul.f32 %v994, %v1010
      %v1015 = vpack.c.bf16 %v1011, %v1011
      %v1016 = vpack.c.bf16 %v1012, %v1012
      %v1017 = vpack.c.bf16 %v1013, %v1013
      %v1018 = vpack.c.bf16 %v1014, %v1014
      %1019 = vrot.lane.b32.xlu0 %v759, 64
      %v1020 = vpop.permute.xlu0 %1019
      %v1022 = vsel %vm780, %v1015, 0
      %vm1024 = vcmask 1043456
      %v1026 = vsel %vm1024, %v1020, 0
      %1028 = vmatprep.subr.bf16.mxu0 0
      %1029 = vmatpush1.bf16.msra.mxu0 0
      %1030 = vmatprep.subr.bf16.mxu0 0
      %1031 = vmatpush1.bf16.msra.mxu0 0
      %1032 = vmatprep.subr.bf16.mxu0 0
      %1033 = vmatpush1.bf16.msra.mxu0 0
      %1034 = vmatprep.subr.bf16.mxu0 0
      %1035 = vmatpush1.bf16.msra.mxu0 0
      %1036 = vmatprep.subr.bf16.mxu0 0
      %1037 = vmatpush1.bf16.msra.mxu0 0
      %1038 = vmatprep.subr.bf16.mxu0 0
      %1039 = vmatpush1.bf16.msra.mxu0 0
      %1040 = vmatprep.subr.bf16.mxu0 0
      %1041 = vmatpush1.bf16.msra.mxu0 0
      %1042 = vmatprep.subr.bf16.mxu0 0
      %1043 = vmatpush1.bf16.msra.mxu0 %v1026
      %1044 = vmatprep.subr.bf16.mxu0 0
      %1045 = vmatpush2.bf16.msra.mxu0 0
      %1046 = vmatprep.subr.bf16.mxu0 0
      %1047 = vmatpush2.bf16.msra.mxu0 0
      %1048 = vmatprep.subr.bf16.mxu0 0
      %1049 = vmatpush2.bf16.msra.mxu0 0
      %1050 = vmatprep.subr.bf16.mxu0 0
      %1051 = vmatpush2.bf16.msra.mxu0 0
      %1052 = vmatprep.subr.bf16.mxu0 0
      %1053 = vmatpush2.bf16.msra.mxu0 0
      %1054 = vmatprep.subr.bf16.mxu0 0
      %1055 = vmatpush2.bf16.msra.mxu0 0
      %1056 = vmatprep.subr.bf16.mxu0 0
      %1057 = vmatpush2.bf16.msra.mxu0 0
      %1058 = vmatprep.subr.bf16.mxu0 0
      %1059 = vmatpush2.bf16.msra.mxu0 0
      %1060 = vmatprep.mubr.bf16.mxu0 0
      %1061 = vmatmul.mubr.bf16.gmra.mxu0 %v1022
      %v1062 = vpop.f32.mrf.mxu0
      %v1063 = vadd.f32 0.0, %v1062
      %v1064 = vpop.f32.mrf.mxu0
      %v1065 = vpop.f32.mrf.mxu0
      %v1066 = vpop.f32.mrf.mxu0
      %1067 = vdwg.mxu0
      %1068 = vrot.lane.b32.xlu0 %v762, 64
      %v1069 = vpop.permute.xlu0 %1068
      %v1071 = vsel %vm780, %v1016, 0
      %v1074 = vsel %vm1024, %v1069, 0
      %1076 = vmatprep.subr.bf16.mxu0 0
      %1077 = vmatpush1.bf16.msra.mxu0 0
      %1078 = vmatprep.subr.bf16.mxu0 0
      %1079 = vmatpush1.bf16.msra.mxu0 0
      %1080 = vmatprep.subr.bf16.mxu0 0
      %1081 = vmatpush1.bf16.msra.mxu0 0
      %1082 = vmatprep.subr.bf16.mxu0 0
      %1083 = vmatpush1.bf16.msra.mxu0 0
      %1084 = vmatprep.subr.bf16.mxu0 0
      %1085 = vmatpush1.bf16.msra.mxu0 0
      %1086 = vmatprep.subr.bf16.mxu0 0
      %1087 = vmatpush1.bf16.msra.mxu0 0
      %1088 = vmatprep.subr.bf16.mxu0 0
      %1089 = vmatpush1.bf16.msra.mxu0 0
      %1090 = vmatprep.subr.bf16.mxu0 0
      %1091 = vmatpush1.bf16.msra.mxu0 %v1074
      %1092 = vmatprep.subr.bf16.mxu0 0
      %1093 = vmatpush2.bf16.msra.mxu0 0
      %1094 = vmatprep.subr.bf16.mxu0 0
      %1095 = vmatpush2.bf16.msra.mxu0 0
      %1096 = vmatprep.subr.bf16.mxu0 0
      %1097 = vmatpush2.bf16.msra.mxu0 0
      %1098 = vmatprep.subr.bf16.mxu0 0
      %1099 = vmatpush2.bf16.msra.mxu0 0
      %1100 = vmatprep.subr.bf16.mxu0 0
      %1101 = vmatpush2.bf16.msra.mxu0 0
      %1102 = vmatprep.subr.bf16.mxu0 0
      %1103 = vmatpush2.bf16.msra.mxu0 0
      %1104 = vmatprep.subr.bf16.mxu0 0
      %1105 = vmatpush2.bf16.msra.mxu0 0
      %1106 = vmatprep.subr.bf16.mxu0 0
      %1107 = vmatpush2.bf16.msra.mxu0 0
      %1108 = vmatprep.mubr.bf16.mxu0 0
      %1109 = vmatmul.mubr.bf16.gmra.mxu0 %v1071
      %v1110 = vpop.f32.mrf.mxu0
      %v1111 = vadd.f32 0.0, %v1110
      %v1112 = vpop.f32.mrf.mxu0
      %v1113 = vpop.f32.mrf.mxu0
      %v1114 = vpop.f32.mrf.mxu0
      %1115 = vdwg.mxu0
      %1116 = vrot.lane.b32.xlu0 %v764, 64
      %v1117 = vpop.permute.xlu0 %1116
      %v1119 = vsel %vm780, %v1017, 0
      %v1122 = vsel %vm1024, %v1117, 0
      %1124 = vmatprep.subr.bf16.mxu0 0
      %1125 = vmatpush1.bf16.msra.mxu0 0
      %1126 = vmatprep.subr.bf16.mxu0 0
      %1127 = vmatpush1.bf16.msra.mxu0 0
      %1128 = vmatprep.subr.bf16.mxu0 0
      %1129 = vmatpush1.bf16.msra.mxu0 0
      %1130 = vmatprep.subr.bf16.mxu0 0
      %1131 = vmatpush1.bf16.msra.mxu0 0
      %1132 = vmatprep.subr.bf16.mxu0 0
      %1133 = vmatpush1.bf16.msra.mxu0 0
      %1134 = vmatprep.subr.bf16.mxu0 0
      %1135 = vmatpush1.bf16.msra.mxu0 0
      %1136 = vmatprep.subr.bf16.mxu0 0
      %1137 = vmatpush1.bf16.msra.mxu0 0
      %1138 = vmatprep.subr.bf16.mxu0 0
      %1139 = vmatpush1.bf16.msra.mxu0 %v1122
      %1140 = vmatprep.subr.bf16.mxu0 0
      %1141 = vmatpush2.bf16.msra.mxu0 0
      %1142 = vmatprep.subr.bf16.mxu0 0
      %1143 = vmatpush2.bf16.msra.mxu0 0
      %1144 = vmatprep.subr.bf16.mxu0 0
      %1145 = vmatpush2.bf16.msra.mxu0 0
      %1146 = vmatprep.subr.bf16.mxu0 0
      %1147 = vmatpush2.bf16.msra.mxu0 0
      %1148 = vmatprep.subr.bf16.mxu0 0
      %1149 = vmatpush2.bf16.msra.mxu0 0
      %1150 = vmatprep.subr.bf16.mxu0 0
      %1151 = vmatpush2.bf16.msra.mxu0 0
      %1152 = vmatprep.subr.bf16.mxu0 0
      %1153 = vmatpush2.bf16.msra.mxu0 0
      %1154 = vmatprep.subr.bf16.mxu0 0
      %1155 = vmatpush2.bf16.msra.mxu0 0
      %1156 = vmatprep.mubr.bf16.mxu0 0
      %1157 = vmatmul.mubr.bf16.gmra.mxu0 %v1119
      %v1158 = vpop.f32.mrf.mxu0
      %v1159 = vadd.f32 0.0, %v1158
      %v1160 = vpop.f32.mrf.mxu0
      %v1161 = vpop.f32.mrf.mxu0
      %v1162 = vpop.f32.mrf.mxu0
      %1163 = vdwg.mxu0
      %1164 = vrot.lane.b32.xlu0 %v766, 64
      %v1165 = vpop.permute.xlu0 %1164
      %v1167 = vsel %vm780, %v1018, 0
      %v1170 = vsel %vm1024, %v1165, 0
      %1172 = vmatprep.subr.bf16.mxu0 0
      %1173 = vmatpush1.bf16.msra.mxu0 0
      %1174 = vmatprep.subr.bf16.mxu0 0
      %1175 = vmatpush1.bf16.msra.mxu0 0
      %1176 = vmatprep.subr.bf16.mxu0 0
      %1177 = vmatpush1.bf16.msra.mxu0 0
      %1178 = vmatprep.subr.bf16.mxu0 0
      %1179 = vmatpush1.bf16.msra.mxu0 0
      %1180 = vmatprep.subr.bf16.mxu0 0
      %1181 = vmatpush1.bf16.msra.mxu0 0
      %1182 = vmatprep.subr.bf16.mxu0 0
      %1183 = vmatpush1.bf16.msra.mxu0 0
      %1184 = vmatprep.subr.bf16.mxu0 0
      %1185 = vmatpush1.bf16.msra.mxu0 0
      %1186 = vmatprep.subr.bf16.mxu0 0
      %1187 = vmatpush1.bf16.msra.mxu0 %v1170
      %1188 = vmatprep.subr.bf16.mxu0 0
      %1189 = vmatpush2.bf16.msra.mxu0 0
      %1190 = vmatprep.subr.bf16.mxu0 0
      %1191 = vmatpush2.bf16.msra.mxu0 0
      %1192 = vmatprep.subr.bf16.mxu0 0
      %1193 = vmatpush2.bf16.msra.mxu0 0
      %1194 = vmatprep.subr.bf16.mxu0 0
      %1195 = vmatpush2.bf16.msra.mxu0 0
      %1196 = vmatprep.subr.bf16.mxu0 0
      %1197 = vmatpush2.bf16.msra.mxu0 0
      %1198 = vmatprep.subr.bf16.mxu0 0
      %1199 = vmatpush2.bf16.msra.mxu0 0
      %1200 = vmatprep.subr.bf16.mxu0 0
      %1201 = vmatpush2.bf16.msra.mxu0 0
      %1202 = vmatprep.subr.bf16.mxu0 0
      %1203 = vmatpush2.bf16.msra.mxu0 0
      %1204 = vmatprep.mubr.bf16.mxu0 0
      %1205 = vmatmul.mubr.bf16.gmra.mxu0 %v1167
      %v1206 = vpop.f32.mrf.mxu0
      %v1207 = vadd.f32 0.0, %v1206
      %v1208 = vpop.f32.mrf.mxu0
      %v1209 = vpop.f32.mrf.mxu0
      %v1210 = vpop.f32.mrf.mxu0
      %1211 = vdwg.mxu0
      %1213 = vrot.lane.b32.xlu0 %v1111, 8
      %v1214 = vpop.permute.xlu0 %1213
      %1217 = vrot.lane.b32.xlu0 %v1159, 16
      %v1218 = vpop.permute.xlu0 %1217
      %1221 = vrot.lane.b32.xlu0 %v1207, 24
      %v1222 = vpop.permute.xlu0 %1221
      %v1224 = vsel %vm780, %v1063, %v1214
      %vm1225 = vcmask 130048
      %v1226 = vsel %vm1225, %v1224, %v1218
      %vm1227 = vcmask 195584
      %v1228 = vsel %vm1227, %v1226, %v1222
      %v1229 = vpack.c.bf16 %v1228, %v1228
      %v1231 = vlaneseq
      %v1232 = vshrl.u32 %v1231, 7
      %v1233 = vsub.s32 0, %v1232
      %v1234 = vrot.slane %v771, %v1233
      %v1240 = vunpack.c.l.b16 %v767
      %v1241 = vunpack.c.l.b16 %v768
      %v1242 = vunpack.c.l.b16 %v769
      %v1243 = vunpack.c.l.b16 %v770
      %v1244 = vpack.c.b16 %v1241, %v1240
      %v1245 = vpack.c.b16 %v1243, %v1242
      %v1249 = vsel %vm715, %v1229, 0
      %1251 = vmatprep.subr.bf16.mxu0 0
      %1252 = vmatpush1.bf16.msra.mxu0 0
      %1253 = vmatprep.subr.bf16.mxu0 0
      %1254 = vmatpush1.bf16.msra.mxu0 0
      %1255 = vmatprep.subr.bf16.mxu0 0
      %1256 = vmatpush1.bf16.msra.mxu0 0
      %1257 = vmatprep.subr.bf16.mxu0 0
      %1258 = vmatpush1.bf16.msra.mxu0 0
      %1259 = vmatprep.subr.bf16.mxu0 0
      %1260 = vmatpush1.bf16.msra.mxu0 0
      %1261 = vmatprep.subr.bf16.mxu0 0
      %1262 = vmatpush1.bf16.msra.mxu0 0
      %1263 = vmatprep.subr.bf16.mxu0 0
      %1264 = vmatpush1.bf16.msra.mxu0 %v1245
      %1265 = vmatprep.subr.bf16.mxu0 0
      %1266 = vmatpush1.bf16.msra.mxu0 %v1244
      %1267 = vmatprep.subr.bf16.mxu0 0
      %1268 = vmatpush2.bf16.msra.mxu0 0
      %1269 = vmatprep.subr.bf16.mxu0 0
      %1270 = vmatpush2.bf16.msra.mxu0 0
      %1271 = vmatprep.subr.bf16.mxu0 0
      %1272 = vmatpush2.bf16.msra.mxu0 0
      %1273 = vmatprep.subr.bf16.mxu0 0
      %1274 = vmatpush2.bf16.msra.mxu0 0
      %1275 = vmatprep.subr.bf16.mxu0 0
      %1276 = vmatpush2.bf16.msra.mxu0 0
      %1277 = vmatprep.subr.bf16.mxu0 0
      %1278 = vmatpush2.bf16.msra.mxu0 0
      %1279 = vmatprep.subr.bf16.mxu0 0
      %1280 = vmatpush2.bf16.msra.mxu0 0
      %1281 = vmatprep.subr.bf16.mxu0 0
      %1282 = vmatpush2.bf16.msra.mxu0 0
      %1283 = vmatprep.mubr.bf16.mxu0 0
      %1284 = vmatmul.mubr.bf16.gmra.mxu0 %v1249
      %v1285 = vpop.f32.mrf.mxu0
      %v1286 = vadd.f32 %v1234, %v1285
      %v1287 = vpop.f32.mrf.mxu0
      %v1288 = vpop.f32.mrf.mxu0
      %v1289 = vpop.f32.mrf.mxu0
      %1290 = vdwg.mxu0
      %v1291 = vadd.f32 %v689, %v1286
      %v1292 = vld [vmem:[%s651] sm:$0x1]
      %v1293 = vld [vmem:[%s654] sm:$0x1]
      %v1294 = vsel %vm715, %v1291, 0.0
      %1295 = vadd.xlane.f32.xlu0 %v1294
      %v1296 = vpop.xlane.xlu0 %1295
      %v1297 = vrcp.pop 32.0
      %v1298 = vmul.f32 %v1296, %v1297
      %v1299 = vsub.f32 %v1291, %v1298
      %v1300 = vmul.f32 %v1299, %v1299
      %v1301 = vsel %vm715, %v1300, 0.0
      %1302 = vadd.xlane.f32.xlu0 %v1301
      %v1303 = vpop.xlane.xlu0 %1302
      %v1304 = vmul.f32 %v1303, %v1297
      %v1305 = vadd.f32 %v1304, 1e-05
      %v1306 = vrsqrt.pop %v1305
      %v1307 = vmul.f32 %v1299, %v1306
      %v1309 = vlaneseq
      %v1310 = vshrl.u32 %v1309, 7
      %v1311 = vsub.s32 0, %v1310
      %v1312 = vrot.slane %v1292, %v1311
      %v1314 = vmul.f32 %v1307, %v1312
      %v1316 = vlaneseq
      %v1317 = vshrl.u32 %v1316, 7
      %v1318 = vsub.s32 0, %v1317
      %v1319 = vrot.slane %v1293, %v1318
      %v1321 = vadd.f32 %v1314, %v1319
      %v1322 = vld [vmem:[%s659] sm:$0xf]
      %v1323 = vld [vmem:[%s659 + $0x4] sm:$0xf]
      %v1324 = vld [vmem:[%s659 + $0x8] sm:$0xf]
      %v1325 = vld [vmem:[%s659 + $0xc] sm:$0xf]
      %v1326 = vld [vmem:[%s662] sm:$0x1]
      %v1327 = vld [vmem:[%s667] sm:$0xf]
      %v1328 = vld [vmem:[%s667 + $0x4] sm:$0xf]
      %v1329 = vld [vmem:[%s667 + $0x8] sm:$0xf]
      %v1330 = vld [vmem:[%s667 + $0xc] sm:$0xf]
      %v1331 = vld [vmem:[%s667 + $0x10] sm:$0xf]
      %v1332 = vld [vmem:[%s667 + $0x14] sm:$0xf]
      %v1333 = vld [vmem:[%s667 + $0x18] sm:$0xf]
      %v1334 = vld [vmem:[%s667 + $0x1c] sm:$0xf]
      %v1335 = vld [vmem:[%s670] sm:$0x1]
      %v1336 = vpack.c.bf16 %v1321, %v1321
      %v1338 = vlaneseq
      %v1339 = vshrl.u32 %v1338, 7
      %v1340 = vsub.s32 0, %v1339
      %v1341 = vrot.slane %v1326, %v1340
      %v1347 = vunpack.c.l.b16 %v1322
      %v1348 = vunpack.c.l.b16 %v1323
      %v1349 = vunpack.c.l.b16 %v1324
      %v1350 = vunpack.c.l.b16 %v1325
      %v1351 = vpack.c.b16 %v1348, %v1347
      %v1352 = vpack.c.b16 %v1350, %v1349
      %v1356 = vsel %vm715, %v1336, 0
      %1358 = vmatprep.subr.bf16.mxu0 0
      %1359 = vmatpush1.bf16.msra.mxu0 0
      %1360 = vmatprep.subr.bf16.mxu0 0
      %1361 = vmatpush1.bf16.msra.mxu0 0
      %1362 = vmatprep.subr.bf16.mxu0 0
      %1363 = vmatpush1.bf16.msra.mxu0 0
      %1364 = vmatprep.subr.bf16.mxu0 0
      %1365 = vmatpush1.bf16.msra.mxu0 0
      %1366 = vmatprep.subr.bf16.mxu0 0
      %1367 = vmatpush1.bf16.msra.mxu0 0
      %1368 = vmatprep.subr.bf16.mxu0 0
      %1369 = vmatpush1.bf16.msra.mxu0 0
      %1370 = vmatprep.subr.bf16.mxu0 0
      %1371 = vmatpush1.bf16.msra.mxu0 %v1352
      %1372 = vmatprep.subr.bf16.mxu0 0
      %1373 = vmatpush1.bf16.msra.mxu0 %v1351
      %1374 = vmatprep.subr.bf16.mxu0 0
      %1375 = vmatpush2.bf16.msra.mxu0 0
      %1376 = vmatprep.subr.bf16.mxu0 0
      %1377 = vmatpush2.bf16.msra.mxu0 0
      %1378 = vmatprep.subr.bf16.mxu0 0
      %1379 = vmatpush2.bf16.msra.mxu0 0
      %1380 = vmatprep.subr.bf16.mxu0 0
      %1381 = vmatpush2.bf16.msra.mxu0 0
      %1382 = vmatprep.subr.bf16.mxu0 0
      %1383 = vmatpush2.bf16.msra.mxu0 0
      %1384 = vmatprep.subr.bf16.mxu0 0
      %1385 = vmatpush2.bf16.msra.mxu0 0
      %1386 = vmatprep.subr.bf16.mxu0 0
      %1387 = vmatpush2.bf16.msra.mxu0 0
      %1388 = vmatprep.subr.bf16.mxu0 0
      %1389 = vmatpush2.bf16.msra.mxu0 0
      %1390 = vmatprep.mubr.bf16.mxu0 0
      %1391 = vmatmul.mubr.bf16.gmra.mxu0 %v1356
      %v1392 = vpop.f32.mrf.mxu0
      %v1393 = vadd.f32 %v1341, %v1392
      %v1394 = vpop.f32.mrf.mxu0
      %v1395 = vpop.f32.mrf.mxu0
      %v1396 = vpop.f32.mrf.mxu0
      %1397 = vdwg.mxu0
      %v1398 = vmax.f32 %v1393, 0.0
      %v1399 = vpack.c.bf16 %v1398, %v1398
      %v1401 = vlaneseq
      %v1402 = vshrl.u32 %v1401, 7
      %v1403 = vsub.s32 0, %v1402
      %v1404 = vrot.slane %v1335, %v1403
      %v1414 = vunpack.c.l.b16 %v1327
      %v1415 = vunpack.c.l.b16 %v1328
      %v1416 = vunpack.c.l.b16 %v1329
      %v1417 = vunpack.c.l.b16 %v1330
      %v1418 = vunpack.c.l.b16 %v1331
      %v1419 = vunpack.c.l.b16 %v1332
      %v1420 = vunpack.c.l.b16 %v1333
      %v1421 = vunpack.c.l.b16 %v1334
      %v1422 = vpack.c.b16 %v1415, %v1414
      %v1423 = vpack.c.b16 %v1417, %v1416
      %v1424 = vpack.c.b16 %v1419, %v1418
      %v1425 = vpack.c.b16 %v1421, %v1420
      %vm1430 = vcmask 523264
      %v1432 = vsel %vm1430, %v1399, 0
      %1434 = vmatprep.subr.bf16.mxu0 0
      %1435 = vmatpush1.bf16.msra.mxu0 0
      %1436 = vmatprep.subr.bf16.mxu0 0
      %1437 = vmatpush1.bf16.msra.mxu0 0
      %1438 = vmatprep.subr.bf16.mxu0 0
      %1439 = vmatpush1.bf16.msra.mxu0 0
      %1440 = vmatprep.subr.bf16.mxu0 0
      %1441 = vmatpush1.bf16.msra.mxu0 0
      %1442 = vmatprep.subr.bf16.mxu0 0
      %1443 = vmatpush1.bf16.msra.mxu0 %v1425
      %1444 = vmatprep.subr.bf16.mxu0 0
      %1445 = vmatpush1.bf16.msra.mxu0 %v1424
      %1446 = vmatprep.subr.bf16.mxu0 0
      %1447 = vmatpush1.bf16.msra.mxu0 %v1423
      %1448 = vmatprep.subr.bf16.mxu0 0
      %1449 = vmatpush1.bf16.msra.mxu0 %v1422
      %1450 = vmatprep.subr.bf16.mxu0 0
      %1451 = vmatpush2.bf16.msra.mxu0 0
      %1452 = vmatprep.subr.bf16.mxu0 0
      %1453 = vmatpush2.bf16.msra.mxu0 0
      %1454 = vmatprep.subr.bf16.mxu0 0
      %1455 = vmatpush2.bf16.msra.mxu0 0
      %1456 = vmatprep.subr.bf16.mxu0 0
      %1457 = vmatpush2.bf16.msra.mxu0 0
      %1458 = vmatprep.subr.bf16.mxu0 0
      %1459 = vmatpush2.bf16.msra.mxu0 0
      %1460 = vmatprep.subr.bf16.mxu0 0
      %1461 = vmatpush2.bf16.msra.mxu0 0
      %1462 = vmatprep.subr.bf16.mxu0 0
      %1463 = vmatpush2.bf16.msra.mxu0 0
      %1464 = vmatprep.subr.bf16.mxu0 0
      %1465 = vmatpush2.bf16.msra.mxu0 0
      %1466 = vmatprep.mubr.bf16.mxu0 0
      %1467 = vmatmul.mubr.bf16.gmra.mxu0 %v1432
      %v1468 = vpop.f32.mrf.mxu0
      %v1469 = vadd.f32 %v1404, %v1468
      %v1470 = vpop.f32.mrf.mxu0
      %v1471 = vpop.f32.mrf.mxu0
      %v1472 = vpop.f32.mrf.mxu0
      %1473 = vdwg.mxu0
      %v1474 = vadd.f32 %v1321, %v1469
      %v1475 = vld [vmem:[%s673] sm:$0x1]
      %v1476 = vld [vmem:[%s676] sm:$0x1]
      %v1477 = vsel %vm715, %v1474, 0.0
      %1478 = vadd.xlane.f32.xlu0 %v1477
      %v1479 = vpop.xlane.xlu0 %1478
      %v1480 = vmul.f32 %v1479, %v1297
      %v1481 = vsub.f32 %v1474, %v1480
      %v1482 = vmul.f32 %v1481, %v1481
      %v1483 = vsel %vm715, %v1482, 0.0
      %1484 = vadd.xlane.f32.xlu0 %v1483
      %v1485 = vpop.xlane.xlu0 %1484
      %v1486 = vmul.f32 %v1485, %v1297
      %v1487 = vadd.f32 %v1486, 1e-05
      %v1488 = vrsqrt.pop %v1487
      %v1489 = vmul.f32 %v1481, %v1488
      %v1491 = vlaneseq
      %v1492 = vshrl.u32 %v1491, 7
      %v1493 = vsub.s32 0, %v1492
      %v1494 = vrot.slane %v1475, %v1493
      %v1496 = vmul.f32 %v1489, %v1494
      %v1498 = vlaneseq
      %v1499 = vshrl.u32 %v1498, 7
      %v1500 = vsub.s32 0, %v1499
      %v1501 = vrot.slane %v1476, %v1500
      %v1503 = vadd.f32 %v1496, %v1501
      %1504 = vst.msk [vmem:[#allocation2] sm:$0xff] %vm715, %v1503
      %v1505 = vpack.c.bf16 %v1503, %v1503
      %vm1506 = vcmask 257024
      %1507 = vst.msk [vmem:[%s680] sm:$0xf] %vm1506, %v1505
      %p1508 = scmp.lt.s32.totalorder %s29, 1
      %s1509 = scalar_select %p1508, %s29, 1
      %s1510 = smul.addr %s1509, 4
      %s1511 = scalar_lea.vmem %s14, %s1510
      // Predicated region
      $region81: #{_lambda_.3} parent=75 // pred_check
        %p1512 = pneg %p419
      $region82: #{_lambda_.3} parent=75 // pred_check_branch
        %1514 = sbr.rel (%p1512) target = $region84
      $region83: #{_lambda_.3} parent=75 // pred_region
        _
      $region84: #{_lambda_.3} parent=75 // pred_fallthru
        _
    $region76: #{_lambda_.3} parent=5 // pred_fallthru
      _
    %p1515 = scmp.le.s32.totalorder 2, %s20
    // Predicated region
    $region85: #{_lambda_.3} parent=5 // pred_check
      %p1516 = pneg %p1515
    $region86: #{_lambda_.3} parent=5 // pred_check_branch
      %1518 = sbr.rel (%p1516) target = $region88
    $region87: #{_lambda_.3} parent=5 // pred_region
      %s1519 = ssub.s32 %s20, 2
      // Predicated region
      $region89: #{_lambda_.3} parent=87 // pred_check
        %p1520 = pneg %p425
      $region90: #{_lambda_.3} parent=87 // pred_check_branch
        %1522 = sbr.rel (%p1520) target = $region92
      $region91: #{_lambda_.3} parent=87 // pred_region
        %p1523 = scmp.lt.s32.totalorder %s31, 1
        %s1524 = scalar_select %p1523, %s31, 1
        %s1525 = smul.addr %s1524, 4
        %s1526 = scalar_lea.vmem %s14, %s1525
      $region92: #{_lambda_.3} parent=87 // pred_fallthru
        _
    $region88: #{_lambda_.3} parent=5 // pred_fallthru
      _
  $region6: #{_lambda_.3} parent=0 // loop_footer
    %s24 = sadd.s32 1, %s20
  $region7: #{_lambda_.3} parent=0 // loop_footer_branch
    %19 = sbr.rel target = $region3
  $region8: #{_lambda_.3} parent=0 // loop_exit
    _

// kernel: _lambda_.4
$region0: #{_lambda_.4}
  #allocation0 [shape = 'u32[]', space=smem, size = 0x4, offset = 0x4, fixed_abs, tag = 'smem constant byte address 0x4 - core index']
  #allocation1 [shape = 'u32[144,128]{1,0:T(1,128)}', space=vmem, size = 0x12000, scoped, tag = 'internal scratch']
  #allocation2 [shape = 'f32[8,32]{1,0:T(8,128)}', space=vmem, size = 0x1000, scoped, tag = 'scratch operand']
  %s0 = inlined_call_operand.vmem [shape: f32[2,8,32], index: 0, kind: input, shape index: {}]
  %s1 = inlined_call_operand.vmem [shape: bf16[2,8,32], index: 1, kind: input, shape index: {}]
  %s2 = inlined_call_operand.vmem [shape: f32[2,1,8], index: 2, kind: input, shape index: {}]
  %s3 = inlined_call_operand.vmem [shape: f32[2,1,8], index: 3, kind: input, shape index: {}]
  %s4 = inlined_call_operand.vmem [shape: bf16[2,32,96], index: 4, kind: input, shape index: {}]
  %s5 = inlined_call_operand.vmem [shape: f32[2,1,96], index: 5, kind: input, shape index: {}]
  %s6 = inlined_call_operand.vmem [shape: bf16[2,32,32], index: 6, kind: input, shape index: {}]
  %s7 = inlined_call_operand.vmem [shape: f32[2,1,32], index: 7, kind: input, shape index: {}]
  %s8 = inlined_call_operand.vmem [shape: f32[2,1,32], index: 8, kind: input, shape index: {}, may-alias: {8,16,22}]
  %s9 = inlined_call_operand.vmem [shape: f32[2,1,32], index: 9, kind: input, shape index: {}, may-alias: {9,17,23}]
  %s10 = inlined_call_operand.vmem [shape: bf16[2,32,32], index: 10, kind: input, shape index: {}]
  %s11 = inlined_call_operand.vmem [shape: f32[2,1,32], index: 11, kind: input, shape index: {}]
  %s12 = inlined_call_operand.vmem [shape: bf16[2,32,64], index: 12, kind: input, shape index: {}]
  %s13 = inlined_call_operand.vmem [shape: f32[2,1,64], index: 13, kind: input, shape index: {}]
  %s14 = inlined_call_operand.vmem [shape: bf16[2,32,32], index: 14, kind: input, shape index: {}]
  %s15 = inlined_call_operand.vmem [shape: f32[2,1,32], index: 15, kind: input, shape index: {}]
  %s16 = inlined_call_operand.vmem [shape: f32[2,1,32], index: 16, kind: input, shape index: {}, may-alias: {8,16,22}]
  %s17 = inlined_call_operand.vmem [shape: f32[2,1,32], index: 17, kind: input, shape index: {}, may-alias: {9,17,23}]
  %s18 = inlined_call_operand.vmem [shape: bf16[2,32,64], index: 18, kind: input, shape index: {}]
  %s19 = inlined_call_operand.vmem [shape: f32[2,1,64], index: 19, kind: input, shape index: {}]
  %s20 = inlined_call_operand.vmem [shape: bf16[2,64,32], index: 20, kind: input, shape index: {}]
  %s21 = inlined_call_operand.vmem [shape: f32[2,1,32], index: 21, kind: input, shape index: {}]
  %s22 = inlined_call_operand.vmem [shape: f32[2,1,32], index: 22, kind: input, shape index: {}, may-alias: {8,16,22}]
  %s23 = inlined_call_operand.vmem [shape: f32[2,1,32], index: 23, kind: input, shape index: {}, may-alias: {9,17,23}]
  %s24 = inlined_call_operand.vmem [shape: bf16[2,8,32], index: 24, kind: output, shape index: {0}]
  %s25 = inlined_call_operand.hbm [shape: f32[2,4,8,8], index: 25, kind: output, shape index: {1}]
  %26 = xla_tuple %s24, %s25
  %s27 = sld [smem:[#allocation0]]
  $region145: #{_lambda_.4} parent=0
    _
  %s29 = ssub.s32 1, %s27
  %s30 = scalar_select 0, %s29, %s27
  $region1: #{_lambda_.4} parent=0
    #allocation3 [shape = 'u8[32768]{0}', space=vmem, size = 0x8000, scoped, tag = 'output window, operand 1']
    #allocation4 [shape = 's32[2]{0}', space=sflag, size = 0x8, scoped, tag = 'scoped memory for _lambda_.4']
    %31 = vsyncpa [#allocation4], 0
    %s32 = scalar_lea.sflag [#allocation4], 1
    %33 = vsyncpa %s32, 0
    loop: start=0, step=1, limit=6
    $region2: #{_lambda_.4} parent=1 // loop_pre_header
      _
    $region3: #{_lambda_.4} parent=1 // loop_header
      %s35 = sphi 0, %s39
      %p36 = scmp.ge.s32.totalorder %s35, 6
      %s42 = sphi 0, %s54
      %s43 = sphi 0, %s50
      %s44 = sphi 0, %s42
      %s45 = sphi 0, %s43
      %s46 = sphi 0, %s44
      %s47 = sphi 0, %s45
      %s57 = sphi 0, %s59
      %s60 = sphi 0, %s57
      %s61 = sphi 0, %s60
      %s77 = sphi 0, %s61
      %s83 = sphi 0, %s85
      %s86 = sphi 0, %s83
      %s87 = sphi 0, %s86
      %s103 = sphi 0, %s87
      %s109 = sphi 0, %s111
      %s112 = sphi 0, %s109
      %s113 = sphi 0, %s112
      %s129 = sphi 0, %s113
      %s135 = sphi 0, %s137
      %s138 = sphi 0, %s135
      %s139 = sphi 0, %s138
      %s155 = sphi 0, %s139
      %s161 = sphi 0, %s163
      %s164 = sphi 0, %s161
      %s165 = sphi 0, %s164
      %s181 = sphi 0, %s165
      %s187 = sphi 0, %s189
      %s190 = sphi 0, %s187
      %s191 = sphi 0, %s190
      %s207 = sphi 0, %s191
      %s213 = sphi 0, %s215
      %s216 = sphi 0, %s213
      %s217 = sphi 0, %s216
      %s233 = sphi 0, %s217
      %s239 = sphi 0, %s241
      %s242 = sphi 0, %s239
      %s243 = sphi 0, %s242
      %s259 = sphi 0, %s243
      %s265 = sphi 0, %s267
      %s268 = sphi 0, %s265
      %s269 = sphi 0, %s268
      %s285 = sphi 0, %s269
      %s291 = sphi 0, %s293
      %s294 = sphi 0, %s291
      %s295 = sphi 0, %s294
      %s311 = sphi 0, %s295
      %s317 = sphi 0, %s319
      %s320 = sphi 0, %s317
      %s321 = sphi 0, %s320
      %s337 = sphi 0, %s321
      %s343 = sphi 0, %s345
      %s346 = sphi 0, %s343
      %s347 = sphi 0, %s346
      %s363 = sphi 0, %s347
      %s369 = sphi 0, %s371
      %s372 = sphi 0, %s369
      %s373 = sphi 0, %s372
      %s389 = sphi 0, %s373
      %s395 = sphi 0, %s397
      %s398 = sphi 0, %s395
      %s399 = sphi 0, %s398
      %s415 = sphi 0, %s399
      %s421 = sphi 0, %s423
      %s424 = sphi 0, %s421
      %s425 = sphi 0, %s424
      %s441 = sphi 0, %s425
      %s447 = sphi 0, %s449
      %s450 = sphi 0, %s447
      %s451 = sphi 0, %s450
      %s467 = sphi 0, %s451
      %s473 = sphi 0, %s475
      %s476 = sphi 0, %s473
      %s477 = sphi 0, %s476
      %s493 = sphi 0, %s477
      %s499 = sphi 0, %s501
      %s502 = sphi 0, %s499
      %s503 = sphi 0, %s502
      %s519 = sphi 0, %s503
      %s525 = sphi 0, %s527
      %s528 = sphi 0, %s525
      %s529 = sphi 0, %s528
      %s545 = sphi 0, %s529
      %s551 = sphi 0, %s553
      %s554 = sphi 0, %s551
      %s555 = sphi 0, %s554
      %s571 = sphi 0, %s555
      %s577 = sphi 0, %s579
      %s580 = sphi 0, %s577
      %s581 = sphi 0, %s580
      %s597 = sphi 0, %s581
      %s603 = sphi 0, %s605
      %s606 = sphi 0, %s603
      %s607 = sphi 0, %s606
      %s623 = sphi 0, %s607
      %s629 = sphi 0, %s631
      %s632 = sphi 0, %s629
      %s633 = sphi 0, %s632
      %s649 = sphi 0, %s633
      %s655 = sphi 0, %s657
      %s658 = sphi 0, %s655
      %s659 = sphi 0, %s658
      %s675 = sphi 0, %s659
      %s681 = sphi 0, %s683
      %s684 = sphi 0, %s681
      %s685 = sphi 0, %s684
      %s701 = sphi 0, %s685
      %s707 = sphi 0, %s709
      %s710 = sphi 0, %s707
      %s711 = sphi 0, %s710
      %s727 = sphi 0, %s711
    $region4: #{_lambda_.4} parent=1 // loop_header_branch
      %38 = sbr.rel (%p36) target = $region8
    $region5: #{_lambda_.4} parent=1 // loop_body
      %s40 = ssub.s32 %s35, 1
      %s41 = ssub.s32 %s35, 2
      %s48 = sadd.s32 1, %s43
      %p49 = scmp.ge.s32.totalorder %s48, 2
      %s50 = scalar_select %p49, 0, %s48
      %s51 = sadd.s32 1, %s42
      %s52 = scalar_select %p49, %s51, %s42
      %p53 = scmp.ge.s32.totalorder %s52, 2
      %s54 = scalar_select %p53, 0, %s52
      %s55 = ssub.s32 %s42, %s54
      %p56 = scmp.eq.s32.totalorder %s55, 0
      %s58 = sadd.s32 %s57, 1
      %s59 = scalar_select %p56, %s57, %s58
      %p62 = pneg %p56
      %p63 = scmp.eq.s32.totalorder %s35, 3
      %p64 = por %p62, %p63
      %p65 = scmp.ne.s32.totalorder %s57, %s60
      %p66 = scmp.eq.s32.totalorder %s35, 0
      %p67 = por %p65, %p66
      %p68 = scmp.ne.s32.totalorder %s57, %s60
      %p69 = scmp.eq.s32.totalorder %s40, 3
      %p70 = por %p68, %p69
      %p71 = scmp.ne.s32.totalorder %s60, %s61
      %p72 = scmp.eq.s32.totalorder %s40, 0
      %p73 = por %p71, %p72
      %p74 = scmp.ne.s32.totalorder %s60, %s61
      %p75 = scmp.eq.s32.totalorder %s41, 3
      %p76 = por %p74, %p75
      %p78 = scmp.ne.s32.totalorder %s61, %s77
      %p79 = scmp.eq.s32.totalorder %s41, 0
      %p80 = por %p78, %p79
      %s81 = ssub.s32 %s42, %s54
      %p82 = scmp.eq.s32.totalorder %s81, 0
      %s84 = sadd.s32 %s83, 1
      %s85 = scalar_select %p82, %s83, %s84
      %p88 = pneg %p82
      %p89 = scmp.eq.s32.totalorder %s35, 3
      %p90 = por %p88, %p89
      %p91 = scmp.ne.s32.totalorder %s83, %s86
      %p92 = scmp.eq.s32.totalorder %s35, 0
      %p93 = por %p91, %p92
      %p94 = scmp.ne.s32.totalorder %s83, %s86
      %p95 = scmp.eq.s32.totalorder %s40, 3
      %p96 = por %p94, %p95
      %p97 = scmp.ne.s32.totalorder %s86, %s87
      %p98 = scmp.eq.s32.totalorder %s40, 0
      %p99 = por %p97, %p98
      %p100 = scmp.ne.s32.totalorder %s86, %s87
      %p101 = scmp.eq.s32.totalorder %s41, 3
      %p102 = por %p100, %p101
      %p104 = scmp.ne.s32.totalorder %s87, %s103
      %p105 = scmp.eq.s32.totalorder %s41, 0
      %p106 = por %p104, %p105
      %s107 = ssub.s32 %s42, %s54
      %p108 = scmp.eq.s32.totalorder %s107, 0
      %s110 = sadd.s32 %s109, 1
      %s111 = scalar_select %p108, %s109, %s110
      %p114 = pneg %p108
      %p115 = scmp.eq.s32.totalorder %s35, 3
      %p116 = por %p114, %p115
      %p117 = scmp.ne.s32.totalorder %s109, %s112
      %p118 = scmp.eq.s32.totalorder %s35, 0
      %p119 = por %p117, %p118
      %p120 = scmp.ne.s32.totalorder %s109, %s112
      %p121 = scmp.eq.s32.totalorder %s40, 3
      %p122 = por %p120, %p121
      %p123 = scmp.ne.s32.totalorder %s112, %s113
      %p124 = scmp.eq.s32.totalorder %s40, 0
      %p125 = por %p123, %p124
      %p126 = scmp.ne.s32.totalorder %s112, %s113
      %p127 = scmp.eq.s32.totalorder %s41, 3
      %p128 = por %p126, %p127
      %p130 = scmp.ne.s32.totalorder %s113, %s129
      %p131 = scmp.eq.s32.totalorder %s41, 0
      %p132 = por %p130, %p131
      %s133 = ssub.s32 %s42, %s54
      %p134 = scmp.eq.s32.totalorder %s133, 0
      %s136 = sadd.s32 %s135, 1
      %s137 = scalar_select %p134, %s135, %s136
      %p140 = pneg %p134
      %p141 = scmp.eq.s32.totalorder %s35, 3
      %p142 = por %p140, %p141
      %p143 = scmp.ne.s32.totalorder %s135, %s138
      %p144 = scmp.eq.s32.totalorder %s35, 0
      %p145 = por %p143, %p144
      %p146 = scmp.ne.s32.totalorder %s135, %s138
      %p147 = scmp.eq.s32.totalorder %s40, 3
      %p148 = por %p146, %p147
      %p149 = scmp.ne.s32.totalorder %s138, %s139
      %p150 = scmp.eq.s32.totalorder %s40, 0
      %p151 = por %p149, %p150
      %p152 = scmp.ne.s32.totalorder %s138, %s139
      %p153 = scmp.eq.s32.totalorder %s41, 3
      %p154 = por %p152, %p153
      %p156 = scmp.ne.s32.totalorder %s139, %s155
      %p157 = scmp.eq.s32.totalorder %s41, 0
      %p158 = por %p156, %p157
      %s159 = ssub.s32 %s43, %s50
      %p160 = scmp.eq.s32.totalorder %s159, 0
      %s162 = sadd.s32 %s161, 1
      %s163 = scalar_select %p160, %s161, %s162
      %p166 = pneg %p160
      %p167 = scmp.eq.s32.totalorder %s35, 3
      %p168 = por %p166, %p167
      %p169 = scmp.ne.s32.totalorder %s161, %s164
      %p170 = scmp.eq.s32.totalorder %s35, 0
      %p171 = por %p169, %p170
      %p172 = scmp.ne.s32.totalorder %s161, %s164
      %p173 = scmp.eq.s32.totalorder %s40, 3
      %p174 = por %p172, %p173
      %p175 = scmp.ne.s32.totalorder %s164, %s165
      %p176 = scmp.eq.s32.totalorder %s40, 0
      %p177 = por %p175, %p176
      %p178 = scmp.ne.s32.totalorder %s164, %s165
      %p179 = scmp.eq.s32.totalorder %s41, 3
      %p180 = por %p178, %p179
      %p182 = scmp.ne.s32.totalorder %s165, %s181
      %p183 = scmp.eq.s32.totalorder %s41, 0
      %p184 = por %p182, %p183
      %s185 = ssub.s32 %s43, %s50
      %p186 = scmp.eq.s32.totalorder %s185, 0
      %s188 = sadd.s32 %s187, 1
      %s189 = scalar_select %p186, %s187, %s188
      %p192 = pneg %p186
      %p193 = scmp.eq.s32.totalorder %s35, 3
      %p194 = por %p192, %p193
      %p195 = scmp.ne.s32.totalorder %s187, %s190
      %p196 = scmp.eq.s32.totalorder %s35, 0
      %p197 = por %p195, %p196
      %p198 = scmp.ne.s32.totalorder %s187, %s190
      %p199 = scmp.eq.s32.totalorder %s40, 3
      %p200 = por %p198, %p199
      %p201 = scmp.ne.s32.totalorder %s190, %s191
      %p202 = scmp.eq.s32.totalorder %s40, 0
      %p203 = por %p201, %p202
      %p204 = scmp.ne.s32.totalorder %s190, %s191
      %p205 = scmp.eq.s32.totalorder %s41, 3
      %p206 = por %p204, %p205
      %p208 = scmp.ne.s32.totalorder %s191, %s207
      %p209 = scmp.eq.s32.totalorder %s41, 0
      %p210 = por %p208, %p209
      %s211 = ssub.s32 %s43, %s50
      %p212 = scmp.eq.s32.totalorder %s211, 0
      %s214 = sadd.s32 %s213, 1
      %s215 = scalar_select %p212, %s213, %s214
      %p218 = pneg %p212
      %p219 = scmp.eq.s32.totalorder %s35, 3
      %p220 = por %p218, %p219
      %p221 = scmp.ne.s32.totalorder %s213, %s216
      %p222 = scmp.eq.s32.totalorder %s35, 0
      %p223 = por %p221, %p222
      %p224 = scmp.ne.s32.totalorder %s213, %s216
      %p225 = scmp.eq.s32.totalorder %s40, 3
      %p226 = por %p224, %p225
      %p227 = scmp.ne.s32.totalorder %s216, %s217
      %p228 = scmp.eq.s32.totalorder %s40, 0
      %p229 = por %p227, %p228
      %p230 = scmp.ne.s32.totalorder %s216, %s217
      %p231 = scmp.eq.s32.totalorder %s41, 3
      %p232 = por %p230, %p231
      %p234 = scmp.ne.s32.totalorder %s217, %s233
      %p235 = scmp.eq.s32.totalorder %s41, 0
      %p236 = por %p234, %p235
      %s237 = ssub.s32 %s43, %s50
      %p238 = scmp.eq.s32.totalorder %s237, 0
      %s240 = sadd.s32 %s239, 1
      %s241 = scalar_select %p238, %s239, %s240
      %p244 = pneg %p238
      %p245 = scmp.eq.s32.totalorder %s35, 3
      %p246 = por %p244, %p245
      %p247 = scmp.ne.s32.totalorder %s239, %s242
      %p248 = scmp.eq.s32.totalorder %s35, 0
      %p249 = por %p247, %p248
      %p250 = scmp.ne.s32.totalorder %s239, %s242
      %p251 = scmp.eq.s32.totalorder %s40, 3
      %p252 = por %p250, %p251
      %p253 = scmp.ne.s32.totalorder %s242, %s243
      %p254 = scmp.eq.s32.totalorder %s40, 0
      %p255 = por %p253, %p254
      %p256 = scmp.ne.s32.totalorder %s242, %s243
      %p257 = scmp.eq.s32.totalorder %s41, 3
      %p258 = por %p256, %p257
      %p260 = scmp.ne.s32.totalorder %s243, %s259
      %p261 = scmp.eq.s32.totalorder %s41, 0
      %p262 = por %p260, %p261
      %s263 = ssub.s32 %s43, %s50
      %p264 = scmp.eq.s32.totalorder %s263, 0
      %s266 = sadd.s32 %s265, 1
      %s267 = scalar_select %p264, %s265, %s266
      %p270 = pneg %p264
      %p271 = scmp.eq.s32.totalorder %s35, 3
      %p272 = por %p270, %p271
      %p273 = scmp.ne.s32.totalorder %s265, %s268
      %p274 = scmp.eq.s32.totalorder %s35, 0
      %p275 = por %p273, %p274
      %p276 = scmp.ne.s32.totalorder %s265, %s268
      %p277 = scmp.eq.s32.totalorder %s40, 3
      %p278 = por %p276, %p277
      %p279 = scmp.ne.s32.totalorder %s268, %s269
      %p280 = scmp.eq.s32.totalorder %s40, 0
      %p281 = por %p279, %p280
      %p282 = scmp.ne.s32.totalorder %s268, %s269
      %p283 = scmp.eq.s32.totalorder %s41, 3
      %p284 = por %p282, %p283
      %p286 = scmp.ne.s32.totalorder %s269, %s285
      %p287 = scmp.eq.s32.totalorder %s41, 0
      %p288 = por %p286, %p287
      %s289 = ssub.s32 %s43, %s50
      %p290 = scmp.eq.s32.totalorder %s289, 0
      %s292 = sadd.s32 %s291, 1
      %s293 = scalar_select %p290, %s291, %s292
      %p296 = pneg %p290
      %p297 = scmp.eq.s32.totalorder %s35, 3
      %p298 = por %p296, %p297
      %p299 = scmp.ne.s32.totalorder %s291, %s294
      %p300 = scmp.eq.s32.totalorder %s35, 0
      %p301 = por %p299, %p300
      %p302 = scmp.ne.s32.totalorder %s291, %s294
      %p303 = scmp.eq.s32.totalorder %s40, 3
      %p304 = por %p302, %p303
      %p305 = scmp.ne.s32.totalorder %s294, %s295
      %p306 = scmp.eq.s32.totalorder %s40, 0
      %p307 = por %p305, %p306
      %p308 = scmp.ne.s32.totalorder %s294, %s295
      %p309 = scmp.eq.s32.totalorder %s41, 3
      %p310 = por %p308, %p309
      %p312 = scmp.ne.s32.totalorder %s295, %s311
      %p313 = scmp.eq.s32.totalorder %s41, 0
      %p314 = por %p312, %p313
      %s315 = ssub.s32 %s43, %s50
      %p316 = scmp.eq.s32.totalorder %s315, 0
      %s318 = sadd.s32 %s317, 1
      %s319 = scalar_select %p316, %s317, %s318
      %p322 = pneg %p316
      %p323 = scmp.eq.s32.totalorder %s35, 3
      %p324 = por %p322, %p323
      %p325 = scmp.ne.s32.totalorder %s317, %s320
      %p326 = scmp.eq.s32.totalorder %s35, 0
      %p327 = por %p325, %p326
      %p328 = scmp.ne.s32.totalorder %s317, %s320
      %p329 = scmp.eq.s32.totalorder %s40, 3
      %p330 = por %p328, %p329
      %p331 = scmp.ne.s32.totalorder %s320, %s321
      %p332 = scmp.eq.s32.totalorder %s40, 0
      %p333 = por %p331, %p332
      %p334 = scmp.ne.s32.totalorder %s320, %s321
      %p335 = scmp.eq.s32.totalorder %s41, 3
      %p336 = por %p334, %p335
      %p338 = scmp.ne.s32.totalorder %s321, %s337
      %p339 = scmp.eq.s32.totalorder %s41, 0
      %p340 = por %p338, %p339
      %s341 = ssub.s32 %s43, %s50
      %p342 = scmp.eq.s32.totalorder %s341, 0
      %s344 = sadd.s32 %s343, 1
      %s345 = scalar_select %p342, %s343, %s344
      %p348 = pneg %p342
      %p349 = scmp.eq.s32.totalorder %s35, 3
      %p350 = por %p348, %p349
      %p351 = scmp.ne.s32.totalorder %s343, %s346
      %p352 = scmp.eq.s32.totalorder %s35, 0
      %p353 = por %p351, %p352
      %p354 = scmp.ne.s32.totalorder %s343, %s346
      %p355 = scmp.eq.s32.totalorder %s40, 3
      %p356 = por %p354, %p355
      %p357 = scmp.ne.s32.totalorder %s346, %s347
      %p358 = scmp.eq.s32.totalorder %s40, 0
      %p359 = por %p357, %p358
      %p360 = scmp.ne.s32.totalorder %s346, %s347
      %p361 = scmp.eq.s32.totalorder %s41, 3
      %p362 = por %p360, %p361
      %p364 = scmp.ne.s32.totalorder %s347, %s363
      %p365 = scmp.eq.s32.totalorder %s41, 0
      %p366 = por %p364, %p365
      %s367 = ssub.s32 %s43, %s50
      %p368 = scmp.eq.s32.totalorder %s367, 0
      %s370 = sadd.s32 %s369, 1
      %s371 = scalar_select %p368, %s369, %s370
      %p374 = pneg %p368
      %p375 = scmp.eq.s32.totalorder %s35, 3
      %p376 = por %p374, %p375
      %p377 = scmp.ne.s32.totalorder %s369, %s372
      %p378 = scmp.eq.s32.totalorder %s35, 0
      %p379 = por %p377, %p378
      %p380 = scmp.ne.s32.totalorder %s369, %s372
      %p381 = scmp.eq.s32.totalorder %s40, 3
      %p382 = por %p380, %p381
      %p383 = scmp.ne.s32.totalorder %s372, %s373
      %p384 = scmp.eq.s32.totalorder %s40, 0
      %p385 = por %p383, %p384
      %p386 = scmp.ne.s32.totalorder %s372, %s373
      %p387 = scmp.eq.s32.totalorder %s41, 3
      %p388 = por %p386, %p387
      %p390 = scmp.ne.s32.totalorder %s373, %s389
      %p391 = scmp.eq.s32.totalorder %s41, 0
      %p392 = por %p390, %p391
      %s393 = ssub.s32 %s43, %s50
      %p394 = scmp.eq.s32.totalorder %s393, 0
      %s396 = sadd.s32 %s395, 1
      %s397 = scalar_select %p394, %s395, %s396
      %p400 = pneg %p394
      %p401 = scmp.eq.s32.totalorder %s35, 3
      %p402 = por %p400, %p401
      %p403 = scmp.ne.s32.totalorder %s395, %s398
      %p404 = scmp.eq.s32.totalorder %s35, 0
      %p405 = por %p403, %p404
      %p406 = scmp.ne.s32.totalorder %s395, %s398
      %p407 = scmp.eq.s32.totalorder %s40, 3
      %p408 = por %p406, %p407
      %p409 = scmp.ne.s32.totalorder %s398, %s399
      %p410 = scmp.eq.s32.totalorder %s40, 0
      %p411 = por %p409, %p410
      %p412 = scmp.ne.s32.totalorder %s398, %s399
      %p413 = scmp.eq.s32.totalorder %s41, 3
      %p414 = por %p412, %p413
      %p416 = scmp.ne.s32.totalorder %s399, %s415
      %p417 = scmp.eq.s32.totalorder %s41, 0
      %p418 = por %p416, %p417
      %s419 = ssub.s32 %s43, %s50
      %p420 = scmp.eq.s32.totalorder %s419, 0
      %s422 = sadd.s32 %s421, 1
      %s423 = scalar_select %p420, %s421, %s422
      %p426 = pneg %p420
      %p427 = scmp.eq.s32.totalorder %s35, 3
      %p428 = por %p426, %p427
      %p429 = scmp.ne.s32.totalorder %s421, %s424
      %p430 = scmp.eq.s32.totalorder %s35, 0
      %p431 = por %p429, %p430
      %p432 = scmp.ne.s32.totalorder %s421, %s424
      %p433 = scmp.eq.s32.totalorder %s40, 3
      %p434 = por %p432, %p433
      %p435 = scmp.ne.s32.totalorder %s424, %s425
      %p436 = scmp.eq.s32.totalorder %s40, 0
      %p437 = por %p435, %p436
      %p438 = scmp.ne.s32.totalorder %s424, %s425
      %p439 = scmp.eq.s32.totalorder %s41, 3
      %p440 = por %p438, %p439
      %p442 = scmp.ne.s32.totalorder %s425, %s441
      %p443 = scmp.eq.s32.totalorder %s41, 0
      %p444 = por %p442, %p443
      %s445 = ssub.s32 %s43, %s50
      %p446 = scmp.eq.s32.totalorder %s445, 0
      %s448 = sadd.s32 %s447, 1
      %s449 = scalar_select %p446, %s447, %s448
      %p452 = pneg %p446
      %p453 = scmp.eq.s32.totalorder %s35, 3
      %p454 = por %p452, %p453
      %p455 = scmp.ne.s32.totalorder %s447, %s450
      %p456 = scmp.eq.s32.totalorder %s35, 0
      %p457 = por %p455, %p456
      %p458 = scmp.ne.s32.totalorder %s447, %s450
      %p459 = scmp.eq.s32.totalorder %s40, 3
      %p460 = por %p458, %p459
      %p461 = scmp.ne.s32.totalorder %s450, %s451
      %p462 = scmp.eq.s32.totalorder %s40, 0
      %p463 = por %p461, %p462
      %p464 = scmp.ne.s32.totalorder %s450, %s451
      %p465 = scmp.eq.s32.totalorder %s41, 3
      %p466 = por %p464, %p465
      %p468 = scmp.ne.s32.totalorder %s451, %s467
      %p469 = scmp.eq.s32.totalorder %s41, 0
      %p470 = por %p468, %p469
      %s471 = ssub.s32 %s43, %s50
      %p472 = scmp.eq.s32.totalorder %s471, 0
      %s474 = sadd.s32 %s473, 1
      %s475 = scalar_select %p472, %s473, %s474
      %p478 = pneg %p472
      %p479 = scmp.eq.s32.totalorder %s35, 3
      %p480 = por %p478, %p479
      %p481 = scmp.ne.s32.totalorder %s473, %s476
      %p482 = scmp.eq.s32.totalorder %s35, 0
      %p483 = por %p481, %p482
      %p484 = scmp.ne.s32.totalorder %s473, %s476
      %p485 = scmp.eq.s32.totalorder %s40, 3
      %p486 = por %p484, %p485
      %p487 = scmp.ne.s32.totalorder %s476, %s477
      %p488 = scmp.eq.s32.totalorder %s40, 0
      %p489 = por %p487, %p488
      %p490 = scmp.ne.s32.totalorder %s476, %s477
      %p491 = scmp.eq.s32.totalorder %s41, 3
      %p492 = por %p490, %p491
      %p494 = scmp.ne.s32.totalorder %s477, %s493
      %p495 = scmp.eq.s32.totalorder %s41, 0
      %p496 = por %p494, %p495
      %s497 = ssub.s32 %s43, %s50
      %p498 = scmp.eq.s32.totalorder %s497, 0
      %s500 = sadd.s32 %s499, 1
      %s501 = scalar_select %p498, %s499, %s500
      %p504 = pneg %p498
      %p505 = scmp.eq.s32.totalorder %s35, 3
      %p506 = por %p504, %p505
      %p507 = scmp.ne.s32.totalorder %s499, %s502
      %p508 = scmp.eq.s32.totalorder %s35, 0
      %p509 = por %p507, %p508
      %p510 = scmp.ne.s32.totalorder %s499, %s502
      %p511 = scmp.eq.s32.totalorder %s40, 3
      %p512 = por %p510, %p511
      %p513 = scmp.ne.s32.totalorder %s502, %s503
      %p514 = scmp.eq.s32.totalorder %s40, 0
      %p515 = por %p513, %p514
      %p516 = scmp.ne.s32.totalorder %s502, %s503
      %p517 = scmp.eq.s32.totalorder %s41, 3
      %p518 = por %p516, %p517
      %p520 = scmp.ne.s32.totalorder %s503, %s519
      %p521 = scmp.eq.s32.totalorder %s41, 0
      %p522 = por %p520, %p521
      %s523 = ssub.s32 %s43, %s50
      %p524 = scmp.eq.s32.totalorder %s523, 0
      %s526 = sadd.s32 %s525, 1
      %s527 = scalar_select %p524, %s525, %s526
      %p530 = pneg %p524
      %p531 = scmp.eq.s32.totalorder %s35, 3
      %p532 = por %p530, %p531
      %p533 = scmp.ne.s32.totalorder %s525, %s528
      %p534 = scmp.eq.s32.totalorder %s35, 0
      %p535 = por %p533, %p534
      %p536 = scmp.ne.s32.totalorder %s525, %s528
      %p537 = scmp.eq.s32.totalorder %s40, 3
      %p538 = por %p536, %p537
      %p539 = scmp.ne.s32.totalorder %s528, %s529
      %p540 = scmp.eq.s32.totalorder %s40, 0
      %p541 = por %p539, %p540
      %p542 = scmp.ne.s32.totalorder %s528, %s529
      %p543 = scmp.eq.s32.totalorder %s41, 3
      %p544 = por %p542, %p543
      %p546 = scmp.ne.s32.totalorder %s529, %s545
      %p547 = scmp.eq.s32.totalorder %s41, 0
      %p548 = por %p546, %p547
      %s549 = ssub.s32 %s43, %s50
      %p550 = scmp.eq.s32.totalorder %s549, 0
      %s552 = sadd.s32 %s551, 1
      %s553 = scalar_select %p550, %s551, %s552
      %p556 = pneg %p550
      %p557 = scmp.eq.s32.totalorder %s35, 3
      %p558 = por %p556, %p557
      %p559 = scmp.ne.s32.totalorder %s551, %s554
      %p560 = scmp.eq.s32.totalorder %s35, 0
      %p561 = por %p559, %p560
      %p562 = scmp.ne.s32.totalorder %s551, %s554
      %p563 = scmp.eq.s32.totalorder %s40, 3
      %p564 = por %p562, %p563
      %p565 = scmp.ne.s32.totalorder %s554, %s555
      %p566 = scmp.eq.s32.totalorder %s40, 0
      %p567 = por %p565, %p566
      %p568 = scmp.ne.s32.totalorder %s554, %s555
      %p569 = scmp.eq.s32.totalorder %s41, 3
      %p570 = por %p568, %p569
      %p572 = scmp.ne.s32.totalorder %s555, %s571
      %p573 = scmp.eq.s32.totalorder %s41, 0
      %p574 = por %p572, %p573
      %s575 = ssub.s32 %s43, %s50
      %p576 = scmp.eq.s32.totalorder %s575, 0
      %s578 = sadd.s32 %s577, 1
      %s579 = scalar_select %p576, %s577, %s578
      %p582 = pneg %p576
      %p583 = scmp.eq.s32.totalorder %s35, 3
      %p584 = por %p582, %p583
      %p585 = scmp.ne.s32.totalorder %s577, %s580
      %p586 = scmp.eq.s32.totalorder %s35, 0
      %p587 = por %p585, %p586
      %p588 = scmp.ne.s32.totalorder %s577, %s580
      %p589 = scmp.eq.s32.totalorder %s40, 3
      %p590 = por %p588, %p589
      %p591 = scmp.ne.s32.totalorder %s580, %s581
      %p592 = scmp.eq.s32.totalorder %s40, 0
      %p593 = por %p591, %p592
      %p594 = scmp.ne.s32.totalorder %s580, %s581
      %p595 = scmp.eq.s32.totalorder %s41, 3
      %p596 = por %p594, %p595
      %p598 = scmp.ne.s32.totalorder %s581, %s597
      %p599 = scmp.eq.s32.totalorder %s41, 0
      %p600 = por %p598, %p599
      %s601 = ssub.s32 %s43, %s50
      %p602 = scmp.eq.s32.totalorder %s601, 0
      %s604 = sadd.s32 %s603, 1
      %s605 = scalar_select %p602, %s603, %s604
      %p608 = pneg %p602
      %p609 = scmp.eq.s32.totalorder %s35, 3
      %p610 = por %p608, %p609
      %p611 = scmp.ne.s32.totalorder %s603, %s606
      %p612 = scmp.eq.s32.totalorder %s35, 0
      %p613 = por %p611, %p612
      %p614 = scmp.ne.s32.totalorder %s603, %s606
      %p615 = scmp.eq.s32.totalorder %s40, 3
      %p616 = por %p614, %p615
      %p617 = scmp.ne.s32.totalorder %s606, %s607
      %p618 = scmp.eq.s32.totalorder %s40, 0
      %p619 = por %p617, %p618
      %p620 = scmp.ne.s32.totalorder %s606, %s607
      %p621 = scmp.eq.s32.totalorder %s41, 3
      %p622 = por %p620, %p621
      %p624 = scmp.ne.s32.totalorder %s607, %s623
      %p625 = scmp.eq.s32.totalorder %s41, 0
      %p626 = por %p624, %p625
      %s627 = ssub.s32 %s43, %s50
      %p628 = scmp.eq.s32.totalorder %s627, 0
      %s630 = sadd.s32 %s629, 1
      %s631 = scalar_select %p628, %s629, %s630
      %p634 = pneg %p628
      %p635 = scmp.eq.s32.totalorder %s35, 3
      %p636 = por %p634, %p635
      %p637 = scmp.ne.s32.totalorder %s629, %s632
      %p638 = scmp.eq.s32.totalorder %s35, 0
      %p639 = por %p637, %p638
      %p640 = scmp.ne.s32.totalorder %s629, %s632
      %p641 = scmp.eq.s32.totalorder %s40, 3
      %p642 = por %p640, %p641
      %p643 = scmp.ne.s32.totalorder %s632, %s633
      %p644 = scmp.eq.s32.totalorder %s40, 0
      %p645 = por %p643, %p644
      %p646 = scmp.ne.s32.totalorder %s632, %s633
      %p647 = scmp.eq.s32.totalorder %s41, 3
      %p648 = por %p646, %p647
      %p650 = scmp.ne.s32.totalorder %s633, %s649
      %p651 = scmp.eq.s32.totalorder %s41, 0
      %p652 = por %p650, %p651
      %s653 = ssub.s32 %s43, %s50
      %p654 = scmp.eq.s32.totalorder %s653, 0
      %s656 = sadd.s32 %s655, 1
      %s657 = scalar_select %p654, %s655, %s656
      %p660 = pneg %p654
      %p661 = scmp.eq.s32.totalorder %s35, 3
      %p662 = por %p660, %p661
      %p663 = scmp.ne.s32.totalorder %s655, %s658
      %p664 = scmp.eq.s32.totalorder %s35, 0
      %p665 = por %p663, %p664
      %p666 = scmp.ne.s32.totalorder %s655, %s658
      %p667 = scmp.eq.s32.totalorder %s40, 3
      %p668 = por %p666, %p667
      %p669 = scmp.ne.s32.totalorder %s658, %s659
      %p670 = scmp.eq.s32.totalorder %s40, 0
      %p671 = por %p669, %p670
      %p672 = scmp.ne.s32.totalorder %s658, %s659
      %p673 = scmp.eq.s32.totalorder %s41, 3
      %p674 = por %p672, %p673
      %p676 = scmp.ne.s32.totalorder %s659, %s675
      %p677 = scmp.eq.s32.totalorder %s41, 0
      %p678 = por %p676, %p677
      %s679 = ssub.s32 %s42, %s54
      %p680 = scmp.eq.s32.totalorder %s679, 0
      %s682 = sadd.s32 %s681, 1
      %s683 = scalar_select %p680, %s681, %s682
      %p686 = pneg %p680
      %p687 = scmp.eq.s32.totalorder %s35, 3
      %p688 = por %p686, %p687
      %p689 = scmp.ne.s32.totalorder %s681, %s684
      %p690 = scmp.eq.s32.totalorder %s35, 0
      %p691 = por %p689, %p690
      %p692 = scmp.ne.s32.totalorder %s681, %s684
      %p693 = scmp.eq.s32.totalorder %s40, 3
      %p694 = por %p692, %p693
      %p695 = scmp.ne.s32.totalorder %s684, %s685
      %p696 = scmp.eq.s32.totalorder %s40, 0
      %p697 = por %p695, %p696
      %p698 = scmp.ne.s32.totalorder %s684, %s685
      %p699 = scmp.eq.s32.totalorder %s41, 3
      %p700 = por %p698, %p699
      %p702 = scmp.ne.s32.totalorder %s685, %s701
      %p703 = scmp.eq.s32.totalorder %s41, 0
      %p704 = por %p702, %p703
      %s705 = ssub.s32 %s42, %s54
      %p706 = scmp.eq.s32.totalorder %s705, 0
      %s708 = sadd.s32 %s707, 1
      %s709 = scalar_select %p706, %s707, %s708
      %p712 = pneg %p706
      %p713 = scmp.eq.s32.totalorder %s35, 3
      %p714 = por %p712, %p713
      %p715 = scmp.ne.s32.totalorder %s707, %s710
      %p716 = scmp.eq.s32.totalorder %s35, 0
      %p717 = por %p715, %p716
      %p718 = scmp.ne.s32.totalorder %s707, %s710
      %p719 = scmp.eq.s32.totalorder %s40, 3
      %p720 = por %p718, %p719
      %p721 = scmp.ne.s32.totalorder %s710, %s711
      %p722 = scmp.eq.s32.totalorder %s40, 0
      %p723 = por %p721, %p722
      %p724 = scmp.ne.s32.totalorder %s710, %s711
      %p725 = scmp.eq.s32.totalorder %s41, 3
      %p726 = por %p724, %p725
      %p728 = scmp.ne.s32.totalorder %s711, %s727
      %p729 = scmp.eq.s32.totalorder %s41, 0
      %p730 = por %p728, %p729
      %p731 = scmp.le.s32.totalorder 1, %s35
      %p732 = scmp.lt.s32.totalorder %s35, 5
      %p733 = pnand %p731, %p732
      %p734 = pneg %p733
      // Predicated region
      $region9: #{_lambda_.4} parent=5 // pred_check
        _
      $region10: #{_lambda_.4} parent=5 // pred_check_branch
        %736 = sbr.rel (%p733) target = $region12
      $region11: #{_lambda_.4} parent=5 // pred_region
        %s737 = ssub.s32 %s35, 1
      $region12: #{_lambda_.4} parent=5 // pred_fallthru
        _
      %p738 = scmp.lt.s32.totalorder %s35, 4
      // Predicated region
      $region13: #{_lambda_.4} parent=5 // pred_check
        %p739 = pneg %p738
      $region14: #{_lambda_.4} parent=5 // pred_check_branch
        %741 = sbr.rel (%p739) target = $region16
      $region15: #{_lambda_.4} parent=5 // pred_region
        // Predicated region
        $region17: #{_lambda_.4} parent=15 // pred_check
          %p742 = pneg %p67
        $region18: #{_lambda_.4} parent=15 // pred_check_branch
          %744 = sbr.rel (%p742) target = $region20
        $region19: #{_lambda_.4} parent=15 // pred_region
          %p745 = scmp.lt.s32.totalorder %s42, 1
          %s746 = scalar_select %p745, %s42, 1
          %s747 = smul.addr %s746, 8
          %s748 = scalar_lea.vmem %s0, %s747
        $region20: #{_lambda_.4} parent=15 // pred_fallthru
          _
        // Predicated region
        $region21: #{_lambda_.4} parent=15 // pred_check
          %p749 = pneg %p93
        $region22: #{_lambda_.4} parent=15 // pred_check_branch
          %751 = sbr.rel (%p749) target = $region24
        $region23: #{_lambda_.4} parent=15 // pred_region
          %p752 = scmp.lt.s32.totalorder %s42, 1
          %s753 = scalar_select %p752, %s42, 1
          %s754 = smul.addr %s753, 4
          %s755 = scalar_lea.vmem %s1, %s754
        $region24: #{_lambda_.4} parent=15 // pred_fallthru
          _
        // Predicated region
        $region25: #{_lambda_.4} parent=15 // pred_check
          %p756 = pneg %p119
        $region26: #{_lambda_.4} parent=15 // pred_check_branch
          %758 = sbr.rel (%p756) target = $region28
        $region27: #{_lambda_.4} parent=15 // pred_region
          %p759 = scmp.lt.s32.totalorder %s42, 1
          %s760 = scalar_select %p759, %s42, 1
          %s761 = scalar_lea.vmem %s2, %s760
        $region28: #{_lambda_.4} parent=15 // pred_fallthru
          _
        // Predicated region
        $region29: #{_lambda_.4} parent=15 // pred_check
          %p762 = pneg %p145
        $region30: #{_lambda_.4} parent=15 // pred_check_branch
          %764 = sbr.rel (%p762) target = $region32
        $region31: #{_lambda_.4} parent=15 // pred_region
          %p765 = scmp.lt.s32.totalorder %s42, 1
          %s766 = scalar_select %p765, %s42, 1
          %s767 = scalar_lea.vmem %s3, %s766
        $region32: #{_lambda_.4} parent=15 // pred_fallthru
          _
        // Predicated region
        $region33: #{_lambda_.4} parent=15 // pred_check
          %p768 = pneg %p171
        $region34: #{_lambda_.4} parent=15 // pred_check_branch
          %770 = sbr.rel (%p768) target = $region36
        $region35: #{_lambda_.4} parent=15 // pred_region
          %p771 = scmp.lt.s32.totalorder %s43, 1
          %s772 = scalar_select %p771, %s43, 1
          %s773 = smul.addr %s772, 4
          %s774 = smul.addr %s773, 4
          %s775 = scalar_lea.vmem %s4, %s774
        $region36: #{_lambda_.4} parent=15 // pred_fallthru
          _
        // Predicated region
        $region37: #{_lambda_.4} parent=15 // pred_check
          %p776 = pneg %p197
        $region38: #{_lambda_.4} parent=15 // pred_check_branch
          %778 = sbr.rel (%p776) target = $region40
        $region39: #{_lambda_.4} parent=15 // pred_region
          %p779 = scmp.lt.s32.totalorder %s43, 1
          %s780 = scalar_select %p779, %s43, 1
          %s781 = scalar_lea.vmem %s5, %s780
        $region40: #{_lambda_.4} parent=15 // pred_fallthru
          _
        // Predicated region
        $region41: #{_lambda_.4} parent=15 // pred_check
          %p782 = pneg %p223
        $region42: #{_lambda_.4} parent=15 // pred_check_branch
          %784 = sbr.rel (%p782) target = $region44
        $region43: #{_lambda_.4} parent=15 // pred_region
          %p785 = scmp.lt.s32.totalorder %s43, 1
          %s786 = scalar_select %p785, %s43, 1
          %s787 = smul.addr %s786, 4
          %s788 = smul.addr %s787, 4
          %s789 = scalar_lea.vmem %s6, %s788
        $region44: #{_lambda_.4} parent=15 // pred_fallthru
          _
        // Predicated region
        $region45: #{_lambda_.4} parent=15 // pred_check
          %p790 = pneg %p249
        $region46: #{_lambda_.4} parent=15 // pred_check_branch
          %792 = sbr.rel (%p790) target = $region48
        $region47: #{_lambda_.4} parent=15 // pred_region
          %p793 = scmp.lt.s32.totalorder %s43, 1
          %s794 = scalar_select %p793, %s43, 1
          %s795 = scalar_lea.vmem %s7, %s794
        $region48: #{_lambda_.4} parent=15 // pred_fallthru
          _
        // Predicated region
        $region49: #{_lambda_.4} parent=15 // pred_check
          %p796 = pneg %p275
        $region50: #{_lambda_.4} parent=15 // pred_check_branch
          %798 = sbr.rel (%p796) target = $region52
        $region51: #{_lambda_.4} parent=15 // pred_region
          %p799 = scmp.lt.s32.totalorder %s43, 1
          %s800 = scalar_select %p799, %s43, 1
          %s801 = scalar_lea.vmem %s8, %s800
        $region52: #{_lambda_.4} parent=15 // pred_fallthru
          _
        // Predicated region
        $region53: #{_lambda_.4} parent=15 // pred_check
          %p802 = pneg %p301
        $region54: #{_lambda_.4} parent=15 // pred_check_branch
          %804 = sbr.rel (%p802) target = $region56
        $region55: #{_lambda_.4} parent=15 // pred_region
          %p805 = scmp.lt.s32.totalorder %s43, 1
          %s806 = scalar_select %p805, %s43, 1
          %s807 = scalar_lea.vmem %s9, %s806
        $region56: #{_lambda_.4} parent=15 // pred_fallthru
          _
        // Predicated region
        $region57: #{_lambda_.4} parent=15 // pred_check
          %p808 = pneg %p327
        $region58: #{_lambda_.4} parent=15 // pred_check_branch
          %810 = sbr.rel (%p808) target = $region60
        $region59: #{_lambda_.4} parent=15 // pred_region
          %p811 = scmp.lt.s32.totalorder %s43, 1
          %s812 = scalar_select %p811, %s43, 1
          %s813 = smul.addr %s812, 4
          %s814 = smul.addr %s813, 4
          %s815 = scalar_lea.vmem %s10, %s814
        $region60: #{_lambda_.4} parent=15 // pred_fallthru
          _
        // Predicated region
        $region61: #{_lambda_.4} parent=15 // pred_check
          %p816 = pneg %p353
        $region62: #{_lambda_.4} parent=15 // pred_check_branch
          %818 = sbr.rel (%p816) target = $region64
        $region63: #{_lambda_.4} parent=15 // pred_region
          %p819 = scmp.lt.s32.totalorder %s43, 1
          %s820 = scalar_select %p819, %s43, 1
          %s821 = scalar_lea.vmem %s11, %s820
        $region64: #{_lambda_.4} parent=15 // pred_fallthru
          _
        // Predicated region
        $region65: #{_lambda_.4} parent=15 // pred_check
          %p822 = pneg %p379
        $region66: #{_lambda_.4} parent=15 // pred_check_branch
          %824 = sbr.rel (%p822) target = $region68
        $region67: #{_lambda_.4} parent=15 // pred_region
          %p825 = scmp.lt.s32.totalorder %s43, 1
          %s826 = scalar_select %p825, %s43, 1
          %s827 = smul.addr %s826, 4
          %s828 = smul.addr %s827, 4
          %s829 = scalar_lea.vmem %s12, %s828
        $region68: #{_lambda_.4} parent=15 // pred_fallthru
          _
        // Predicated region
        $region69: #{_lambda_.4} parent=15 // pred_check
          %p830 = pneg %p405
        $region70: #{_lambda_.4} parent=15 // pred_check_branch
          %832 = sbr.rel (%p830) target = $region72
        $region71: #{_lambda_.4} parent=15 // pred_region
          %p833 = scmp.lt.s32.totalorder %s43, 1
          %s834 = scalar_select %p833, %s43, 1
          %s835 = scalar_lea.vmem %s13, %s834
        $region72: #{_lambda_.4} parent=15 // pred_fallthru
          _
        // Predicated region
        $region73: #{_lambda_.4} parent=15 // pred_check
          %p836 = pneg %p431
        $region74: #{_lambda_.4} parent=15 // pred_check_branch
          %838 = sbr.rel (%p836) target = $region76
        $region75: #{_lambda_.4} parent=15 // pred_region
          %p839 = scmp.lt.s32.totalorder %s43, 1
          %s840 = scalar_select %p839, %s43, 1
          %s841 = smul.addr %s840, 4
          %s842 = smul.addr %s841, 4
          %s843 = scalar_lea.vmem %s14, %s842
        $region76: #{_lambda_.4} parent=15 // pred_fallthru
          _
        // Predicated region
        $region77: #{_lambda_.4} parent=15 // pred_check
          %p844 = pneg %p457
        $region78: #{_lambda_.4} parent=15 // pred_check_branch
          %846 = sbr.rel (%p844) target = $region80
        $region79: #{_lambda_.4} parent=15 // pred_region
          %p847 = scmp.lt.s32.totalorder %s43, 1
          %s848 = scalar_select %p847, %s43, 1
          %s849 = scalar_lea.vmem %s15, %s848
        $region80: #{_lambda_.4} parent=15 // pred_fallthru
          _
        // Predicated region
        $region81: #{_lambda_.4} parent=15 // pred_check
          %p850 = pneg %p483
        $region82: #{_lambda_.4} parent=15 // pred_check_branch
          %852 = sbr.rel (%p850) target = $region84
        $region83: #{_lambda_.4} parent=15 // pred_region
          %p853 = scmp.lt.s32.totalorder %s43, 1
          %s854 = scalar_select %p853, %s43, 1
          %s855 = scalar_lea.vmem %s16, %s854
        $region84: #{_lambda_.4} parent=15 // pred_fallthru
          _
        // Predicated region
        $region85: #{_lambda_.4} parent=15 // pred_check
          %p856 = pneg %p509
        $region86: #{_lambda_.4} parent=15 // pred_check_branch
          %858 = sbr.rel (%p856) target = $region88
        $region87: #{_lambda_.4} parent=15 // pred_region
          %p859 = scmp.lt.s32.totalorder %s43, 1
          %s860 = scalar_select %p859, %s43, 1
          %s861 = scalar_lea.vmem %s17, %s860
        $region88: #{_lambda_.4} parent=15 // pred_fallthru
          _
        // Predicated region
        $region89: #{_lambda_.4} parent=15 // pred_check
          %p862 = pneg %p535
        $region90: #{_lambda_.4} parent=15 // pred_check_branch
          %864 = sbr.rel (%p862) target = $region92
        $region91: #{_lambda_.4} parent=15 // pred_region
          %p865 = scmp.lt.s32.totalorder %s43, 1
          %s866 = scalar_select %p865, %s43, 1
          %s867 = smul.addr %s866, 4
          %s868 = smul.addr %s867, 4
          %s869 = scalar_lea.vmem %s18, %s868
        $region92: #{_lambda_.4} parent=15 // pred_fallthru
          _
        // Predicated region
        $region93: #{_lambda_.4} parent=15 // pred_check
          %p870 = pneg %p561
        $region94: #{_lambda_.4} parent=15 // pred_check_branch
          %872 = sbr.rel (%p870) target = $region96
        $region95: #{_lambda_.4} parent=15 // pred_region
          %p873 = scmp.lt.s32.totalorder %s43, 1
          %s874 = scalar_select %p873, %s43, 1
          %s875 = scalar_lea.vmem %s19, %s874
        $region96: #{_lambda_.4} parent=15 // pred_fallthru
          _
        // Predicated region
        $region97: #{_lambda_.4} parent=15 // pred_check
          %p876 = pneg %p587
        $region98: #{_lambda_.4} parent=15 // pred_check_branch
          %878 = sbr.rel (%p876) target = $region100
        $region99: #{_lambda_.4} parent=15 // pred_region
          %p879 = scmp.lt.s32.totalorder %s43, 1
          %s880 = scalar_select %p879, %s43, 1
          %s881 = smul.addr %s880, 8
          %s882 = smul.addr %s881, 4
          %s883 = scalar_lea.vmem %s20, %s882
        $region100: #{_lambda_.4} parent=15 // pred_fallthru
          _
        // Predicated region
        $region101: #{_lambda_.4} parent=15 // pred_check
          %p884 = pneg %p613
        $region102: #{_lambda_.4} parent=15 // pred_check_branch
          %886 = sbr.rel (%p884) target = $region104
        $region103: #{_lambda_.4} parent=15 // pred_region
          %p887 = scmp.lt.s32.totalorder %s43, 1
          %s888 = scalar_select %p887, %s43, 1
          %s889 = scalar_lea.vmem %s21, %s888
        $region104: #{_lambda_.4} parent=15 // pred_fallthru
          _
        // Predicated region
        $region105: #{_lambda_.4} parent=15 // pred_check
          %p890 = pneg %p639
        $region106: #{_lambda_.4} parent=15 // pred_check_branch
          %892 = sbr.rel (%p890) target = $region108
        $region107: #{_lambda_.4} parent=15 // pred_region
          %p893 = scmp.lt.s32.totalorder %s43, 1
          %s894 = scalar_select %p893, %s43, 1
          %s895 = scalar_lea.vmem %s22, %s894
        $region108: #{_lambda_.4} parent=15 // pred_fallthru
          _
        // Predicated region
        $region109: #{_lambda_.4} parent=15 // pred_check
          %p896 = pneg %p665
        $region110: #{_lambda_.4} parent=15 // pred_check_branch
          %898 = sbr.rel (%p896) target = $region112
        $region111: #{_lambda_.4} parent=15 // pred_region
          %p899 = scmp.lt.s32.totalorder %s43, 1
          %s900 = scalar_select %p899, %s43, 1
          %s901 = scalar_lea.vmem %s23, %s900
        $region112: #{_lambda_.4} parent=15 // pred_fallthru
          _
      $region16: #{_lambda_.4} parent=5 // pred_fallthru
        _
      %p902 = scmp.le.s32.totalorder 1, %s35
      %p903 = scmp.lt.s32.totalorder %s35, 5
      %p904 = pnand %p902, %p903
      %p905 = pneg %p904
      // Predicated region
      $region113: #{_lambda_.4} parent=5 // pred_check
        _
      $region114: #{_lambda_.4} parent=5 // pred_check_branch
        %907 = sbr.rel (%p904) target = $region116
      $region115: #{_lambda_.4} parent=5 // pred_region
        %s908 = ssub.s32 %s35, 1
        %p909 = scmp.lt.s32.totalorder %s44, 1
        %s910 = scalar_select %p909, %s44, 1
        %s911 = smul.addr %s910, 8
        %s912 = scalar_lea.vmem %s0, %s911
        %p913 = pneg %p73
        %p914 = pneg %p70
        %p915 = scmp.lt.s32.totalorder %s44, 1
        %s916 = scalar_select %p915, %s44, 1
        %s917 = smul.addr %s916, 4
        %s918 = scalar_lea.vmem %s1, %s917
        %p919 = pneg %p99
        %p920 = pneg %p96
        %p921 = scmp.lt.s32.totalorder %s44, 1
        %s922 = scalar_select %p921, %s44, 1
        %s923 = scalar_lea.vmem %s2, %s922
        %p924 = pneg %p125
        %p925 = pneg %p122
        %p926 = scmp.lt.s32.totalorder %s44, 1
        %s927 = scalar_select %p926, %s44, 1
        %s928 = scalar_lea.vmem %s3, %s927
        %p929 = pneg %p151
        %p930 = pneg %p148
        %p931 = scmp.lt.s32.totalorder %s45, 1
        %s932 = scalar_select %p931, %s45, 1
        %s933 = smul.addr %s932, 4
        %s934 = smul.addr %s933, 4
        %s935 = scalar_lea.vmem %s4, %s934
        %p936 = pneg %p177
        %p937 = pneg %p174
        %p938 = scmp.lt.s32.totalorder %s45, 1
        %s939 = scalar_select %p938, %s45, 1
        %s940 = scalar_lea.vmem %s5, %s939
        %p941 = pneg %p203
        %p942 = pneg %p200
        %p943 = scmp.lt.s32.totalorder %s45, 1
        %s944 = scalar_select %p943, %s45, 1
        %s945 = smul.addr %s944, 4
        %s946 = smul.addr %s945, 4
        %s947 = scalar_lea.vmem %s6, %s946
        %p948 = pneg %p229
        %p949 = pneg %p226
        %p950 = scmp.lt.s32.totalorder %s45, 1
        %s951 = scalar_select %p950, %s45, 1
        %s952 = scalar_lea.vmem %s7, %s951
        %p953 = pneg %p255
        %p954 = pneg %p252
        %p955 = scmp.lt.s32.totalorder %s45, 1
        %s956 = scalar_select %p955, %s45, 1
        %s957 = scalar_lea.vmem %s8, %s956
        %p958 = pneg %p281
        %p959 = pneg %p278
        %p960 = scmp.lt.s32.totalorder %s45, 1
        %s961 = scalar_select %p960, %s45, 1
        %s962 = scalar_lea.vmem %s9, %s961
        %p963 = pneg %p307
        %p964 = pneg %p304
        %p965 = scmp.lt.s32.totalorder %s45, 1
        %s966 = scalar_select %p965, %s45, 1
        %s967 = smul.addr %s966, 4
        %s968 = smul.addr %s967, 4
        %s969 = scalar_lea.vmem %s10, %s968
        %p970 = pneg %p333
        %p971 = pneg %p330
        %p972 = scmp.lt.s32.totalorder %s45, 1
        %s973 = scalar_select %p972, %s45, 1
        %s974 = scalar_lea.vmem %s11, %s973
        %p975 = pneg %p359
        %p976 = pneg %p356
        %p977 = scmp.lt.s32.totalorder %s45, 1
        %s978 = scalar_select %p977, %s45, 1
        %s979 = smul.addr %s978, 4
        %s980 = smul.addr %s979, 4
        %s981 = scalar_lea.vmem %s12, %s980
        %p982 = pneg %p385
        %p983 = pneg %p382
        %p984 = scmp.lt.s32.totalorder %s45, 1
        %s985 = scalar_select %p984, %s45, 1
        %s986 = scalar_lea.vmem %s13, %s985
        %p987 = pneg %p411
        %p988 = pneg %p408
        %p989 = scmp.lt.s32.totalorder %s45, 1
        %s990 = scalar_select %p989, %s45, 1
        %s991 = smul.addr %s990, 4
        %s992 = smul.addr %s991, 4
        %s993 = scalar_lea.vmem %s14, %s992
        %p994 = pneg %p437
        %p995 = pneg %p434
        %p996 = scmp.lt.s32.totalorder %s45, 1
        %s997 = scalar_select %p996, %s45, 1
        %s998 = scalar_lea.vmem %s15, %s997
        %p999 = pneg %p463
        %p1000 = pneg %p460
        %p1001 = scmp.lt.s32.totalorder %s45, 1
        %s1002 = scalar_select %p1001, %s45, 1
        %s1003 = scalar_lea.vmem %s16, %s1002
        %p1004 = pneg %p489
        %p1005 = pneg %p486
        %p1006 = scmp.lt.s32.totalorder %s45, 1
        %s1007 = scalar_select %p1006, %s45, 1
        %s1008 = scalar_lea.vmem %s17, %s1007
        %p1009 = pneg %p515
        %p1010 = pneg %p512
        %p1011 = scmp.lt.s32.totalorder %s45, 1
        %s1012 = scalar_select %p1011, %s45, 1
        %s1013 = smul.addr %s1012, 4
        %s1014 = smul.addr %s1013, 4
        %s1015 = scalar_lea.vmem %s18, %s1014
        %p1016 = pneg %p541
        %p1017 = pneg %p538
        %p1018 = scmp.lt.s32.totalorder %s45, 1
        %s1019 = scalar_select %p1018, %s45, 1
        %s1020 = scalar_lea.vmem %s19, %s1019
        %p1021 = pneg %p567
        %p1022 = pneg %p564
        %p1023 = scmp.lt.s32.totalorder %s45, 1
        %s1024 = scalar_select %p1023, %s45, 1
        %s1025 = smul.addr %s1024, 8
        %s1026 = smul.addr %s1025, 4
        %s1027 = scalar_lea.vmem %s20, %s1026
        %p1028 = pneg %p593
        %p1029 = pneg %p590
        %p1030 = scmp.lt.s32.totalorder %s45, 1
        %s1031 = scalar_select %p1030, %s45, 1
        %s1032 = scalar_lea.vmem %s21, %s1031
        %p1033 = pneg %p619
        %p1034 = pneg %p616
        %p1035 = scmp.lt.s32.totalorder %s45, 1
        %s1036 = scalar_select %p1035, %s45, 1
        %s1037 = scalar_lea.vmem %s22, %s1036
        %p1038 = pneg %p645
        %p1039 = pneg %p642
        %p1040 = scmp.lt.s32.totalorder %s45, 1
        %s1041 = scalar_select %p1040, %s45, 1
        %s1042 = scalar_lea.vmem %s23, %s1041
        %p1043 = pneg %p671
        %p1044 = pneg %p668
        %p1045 = pneg %p697
        %p1046 = pneg %p694
        %p1047 = scmp.lt.s32.totalorder %s44, 1
        %s1048 = scalar_select %p1047, %s44, 1
        %s1049 = smul.addr %s1048, 4
        %s1050 = scalar_lea.vmem %s24, %s1049
        %p1051 = pneg %p723
        %p1052 = pneg %p720
        %s1053 = sand.u32 %s710, 1
        %s1054 = scalar_lea.sflag [#allocation4], %s1053
        %s1055 = sand.u32 %s710, 1
        %s1056 = smul.addr %s1055, 32
        %s1057 = scalar_lea.vmem [#allocation3], %s1056
        %p1058 = scmp.lt.s32.totalorder %s44, 1
        %s1059 = scalar_select %p1058, %s44, 1
        %s1060 = smul.addr %s1059, 8
        %s1061 = scalar_lea.vmem %s0, %s1060
        %p1062 = scmp.lt.s32.totalorder %s44, 1
        %s1063 = scalar_select %p1062, %s44, 1
        %s1064 = smul.addr %s1063, 4
        %s1065 = scalar_lea.vmem %s1, %s1064
        %p1066 = scmp.lt.s32.totalorder %s44, 1
        %s1067 = scalar_select %p1066, %s44, 1
        %s1068 = scalar_lea.vmem %s2, %s1067
        %p1069 = scmp.lt.s32.totalorder %s44, 1
        %s1070 = scalar_select %p1069, %s44, 1
        %s1071 = scalar_lea.vmem %s3, %s1070
        %p1072 = scmp.lt.s32.totalorder %s45, 1
        %s1073 = scalar_select %p1072, %s45, 1
        %s1074 = smul.addr %s1073, 4
        %s1075 = smul.addr %s1074, 4
        %s1076 = scalar_lea.vmem %s4, %s1075
        %p1077 = scmp.lt.s32.totalorder %s45, 1
        %s1078 = scalar_select %p1077, %s45, 1
        %s1079 = scalar_lea.vmem %s5, %s1078
        %p1080 = scmp.lt.s32.totalorder %s45, 1
        %s1081 = scalar_select %p1080, %s45, 1
        %s1082 = smul.addr %s1081, 4
        %s1083 = smul.addr %s1082, 4
        %s1084 = scalar_lea.vmem %s6, %s1083
        %p1085 = scmp.lt.s32.totalorder %s45, 1
        %s1086 = scalar_select %p1085, %s45, 1
        %s1087 = scalar_lea.vmem %s7, %s1086
        %p1088 = scmp.lt.s32.totalorder %s45, 1
        %s1089 = scalar_select %p1088, %s45, 1
        %s1090 = scalar_lea.vmem %s8, %s1089
        %p1091 = scmp.lt.s32.totalorder %s45, 1
        %s1092 = scalar_select %p1091, %s45, 1
        %s1093 = scalar_lea.vmem %s9, %s1092
        %p1094 = scmp.lt.s32.totalorder %s45, 1
        %s1095 = scalar_select %p1094, %s45, 1
        %s1096 = smul.addr %s1095, 4
        %s1097 = smul.addr %s1096, 4
        %s1098 = scalar_lea.vmem %s10, %s1097
        %p1099 = scmp.lt.s32.totalorder %s45, 1
        %s1100 = scalar_select %p1099, %s45, 1
        %s1101 = scalar_lea.vmem %s11, %s1100
        %p1102 = scmp.lt.s32.totalorder %s45, 1
        %s1103 = scalar_select %p1102, %s45, 1
        %s1104 = smul.addr %s1103, 4
        %s1105 = smul.addr %s1104, 4
        %s1106 = scalar_lea.vmem %s12, %s1105
        %p1107 = scmp.lt.s32.totalorder %s45, 1
        %s1108 = scalar_select %p1107, %s45, 1
        %s1109 = scalar_lea.vmem %s13, %s1108
        %p1110 = scmp.lt.s32.totalorder %s45, 1
        %s1111 = scalar_select %p1110, %s45, 1
        %s1112 = smul.addr %s1111, 4
        %s1113 = smul.addr %s1112, 4
        %s1114 = scalar_lea.vmem %s14, %s1113
        %p1115 = scmp.lt.s32.totalorder %s45, 1
        %s1116 = scalar_select %p1115, %s45, 1
        %s1117 = scalar_lea.vmem %s15, %s1116
        %p1118 = scmp.lt.s32.totalorder %s45, 1
        %s1119 = scalar_select %p1118, %s45, 1
        %s1120 = scalar_lea.vmem %s16, %s1119
        %p1121 = scmp.lt.s32.totalorder %s45, 1
        %s1122 = scalar_select %p1121, %s45, 1
        %s1123 = scalar_lea.vmem %s17, %s1122
        %p1124 = scmp.lt.s32.totalorder %s45, 1
        %s1125 = scalar_select %p1124, %s45, 1
        %s1126 = smul.addr %s1125, 4
        %s1127 = smul.addr %s1126, 4
        %s1128 = scalar_lea.vmem %s18, %s1127
        %p1129 = scmp.lt.s32.totalorder %s45, 1
        %s1130 = scalar_select %p1129, %s45, 1
        %s1131 = scalar_lea.vmem %s19, %s1130
        %p1132 = scmp.lt.s32.totalorder %s45, 1
        %s1133 = scalar_select %p1132, %s45, 1
        %s1134 = smul.addr %s1133, 8
        %s1135 = smul.addr %s1134, 4
        %s1136 = scalar_lea.vmem %s20, %s1135
        %p1137 = scmp.lt.s32.totalorder %s45, 1
        %s1138 = scalar_select %p1137, %s45, 1
        %s1139 = scalar_lea.vmem %s21, %s1138
        %p1140 = scmp.lt.s32.totalorder %s45, 1
        %s1141 = scalar_select %p1140, %s45, 1
        %s1142 = scalar_lea.vmem %s22, %s1141
        %p1143 = scmp.lt.s32.totalorder %s45, 1
        %s1144 = scalar_select %p1143, %s45, 1
        %s1145 = scalar_lea.vmem %s23, %s1144
        %p1146 = scmp.lt.s32.totalorder %s44, 1
        %s1147 = scalar_select %p1146, %s44, 1
        %s1148 = smul.addr %s1147, 4
        %s1149 = scalar_lea.vmem %s24, %s1148
        %p1151 = scmp.eq.s32.totalorder %s45, 1
        %p1152 = scmp.eq.s32.totalorder %s45, 0
        // Predicated region
        $region117: #{_lambda_.4} parent=115 // pred_check
          %p1153 = pneg %p1152
        $region118: #{_lambda_.4} parent=115 // pred_check_branch
          %1155 = sbr.rel (%p1153) target = $region120
        $region119: #{_lambda_.4} parent=115 // pred_region
          %v1156 = vld [vmem:[%s1061] sm:$0xff]
          %vm1157 = vcmask 261120
          %1158 = vst.msk [vmem:[#allocation2] sm:$0xff] %vm1157, %v1156
        $region120: #{_lambda_.4} parent=115 // pred_fallthru
          _
        %v1159 = vld [vmem:[#allocation2] sm:$0xff]
        %v1160 = vld [vmem:[%s1065] sm:$0xf]
        %v1161 = vlaneseq
        %v1162 = vshrl.u32 %v1161, 7
        %v1163 = vlaneseq
        %v1164 = vand.u32 %v1163, 127
        %vm1165 = vcmp.le.s32.totalorder %v1164, %v1162
        %v1166 = vsel %vm1165, 0.0, -1e+10
        %v1167 = vld [vmem:[%s1068] sm:$0x1]
        %v1169 = vlaneseq
        %v1170 = vshrl.u32 %v1169, 7
        %v1171 = vsub.s32 0, %v1170
        %v1172 = vrot.slane %v1167, %v1171
        %v1174 = vadd.f32 %v1166, %v1172
        %v1175 = vld [vmem:[%s1071] sm:$0x1]
        %v1176 = vpack.c.bf16 %v1159, %v1159
        %v1177 = vld [vmem:[%s1076] sm:$0xf]
        %v1178 = vld [vmem:[%s1076 + $0x4] sm:$0xf]
        %v1179 = vld [vmem:[%s1076 + $0x8] sm:$0xf]
        %v1180 = vld [vmem:[%s1076 + $0xc] sm:$0xf]
        %v1181 = vld [vmem:[%s1079] sm:$0x1]
        %v1183 = vlaneseq
        %v1184 = vshrl.u32 %v1183, 7
        %v1185 = vsub.s32 0, %v1184
        %v1186 = vrot.slane %v1181, %v1185
        %v1192 = vunpack.c.l.b16 %v1177
        %v1193 = vunpack.c.l.b16 %v1178
        %v1194 = vunpack.c.l.b16 %v1179
        %v1195 = vunpack.c.l.b16 %v1180
        %v1196 = vpack.c.b16 %v1193, %v1192
        %v1197 = vpack.c.b16 %v1195, %v1194
        %vm1200 = vcmask 261120
        %v1202 = vsel %vm1200, %v1176, 0
        %1204 = vmatprep.subr.bf16.mxu0 0
        %1205 = vmatpush1.bf16.msra.mxu0 0
        %1206 = vmatprep.subr.bf16.mxu0 0
        %1207 = vmatpush1.bf16.msra.mxu0 0
        %1208 = vmatprep.subr.bf16.mxu0 0
        %1209 = vmatpush1.bf16.msra.mxu0 0
        %1210 = vmatprep.subr.bf16.mxu0 0
        %1211 = vmatpush1.bf16.msra.mxu0 0
        %1212 = vmatprep.subr.bf16.mxu0 0
        %1213 = vmatpush1.bf16.msra.mxu0 0
        %1214 = vmatprep.subr.bf16.mxu0 0
        %1215 = vmatpush1.bf16.msra.mxu0 0
        %1216 = vmatprep.subr.bf16.mxu0 0
        %1217 = vmatpush1.bf16.msra.mxu0 %v1197
        %1218 = vmatprep.subr.bf16.mxu0 0
        %1219 = vmatpush1.bf16.msra.mxu0 %v1196
        %1220 = vmatprep.subr.bf16.mxu0 0
        %1221 = vmatpush2.bf16.msra.mxu0 0
        %1222 = vmatprep.subr.bf16.mxu0 0
        %1223 = vmatpush2.bf16.msra.mxu0 0
        %1224 = vmatprep.subr.bf16.mxu0 0
        %1225 = vmatpush2.bf16.msra.mxu0 0
        %1226 = vmatprep.subr.bf16.mxu0 0
        %1227 = vmatpush2.bf16.msra.mxu0 0
        %1228 = vmatprep.subr.bf16.mxu0 0
        %1229 = vmatpush2.bf16.msra.mxu0 0
        %1230 = vmatprep.subr.bf16.mxu0 0
        %1231 = vmatpush2.bf16.msra.mxu0 0
        %1232 = vmatprep.subr.bf16.mxu0 0
        %1233 = vmatpush2.bf16.msra.mxu0 0
        %1234 = vmatprep.subr.bf16.mxu0 0
        %1235 = vmatpush2.bf16.msra.mxu0 0
        %1236 = vmatprep.mubr.bf16.mxu0 0
        %1237 = vmatmul.mubr.bf16.gmra.mxu0 %v1202
        %v1238 = vpop.f32.mrf.mxu0
        %v1239 = vadd.f32 %v1186, %v1238
        %v1240 = vpop.f32.mrf.mxu0
        %v1241 = vpop.f32.mrf.mxu0
        %v1242 = vpop.f32.mrf.mxu0
        %1243 = vdwg.mxu0
        %v1244 = vpack.c.bf16 %v1239, %v1239
        %1246 = vrot.lane.b32.xlu0 %v1244, 120
        %v1247 = vpop.permute.xlu0 %1246
        %1248 = vrot.lane.b32.xlu0 %v1244, 112
        %v1249 = vpop.permute.xlu0 %1248
        %1250 = vrot.lane.b32.xlu0 %v1244, 104
        %v1251 = vpop.permute.xlu0 %1250
        %v1252 = vld [vmem:[%s1084] sm:$0xf]
        %v1253 = vld [vmem:[%s1084 + $0x4] sm:$0xf]
        %v1254 = vld [vmem:[%s1084 + $0x8] sm:$0xf]
        %v1255 = vld [vmem:[%s1084 + $0xc] sm:$0xf]
        %v1256 = vld [vmem:[%s1087] sm:$0x1]
        %1257 = vrot.lane.b32.xlu0 %v1244, 96
        %v1258 = vpop.permute.xlu0 %1257
        %vm1259 = vcmask 64512
        %v1261 = vsel %vm1259, %v1244, 0
        %v1264 = vsel %vm1259, %v1258, 0
        %1266 = vmatprep.subr.bf16.mxu0 0
        %1267 = vmatpush1.bf16.xpose.msra.mxu0 0
        %1268 = vmatprep.subr.bf16.mxu0 0
        %1269 = vmatpush1.bf16.xpose.msra.mxu0 0
        %1270 = vmatprep.subr.bf16.mxu0 0
        %1271 = vmatpush1.bf16.xpose.msra.mxu0 0
        %1272 = vmatprep.subr.bf16.mxu0 0
        %1273 = vmatpush1.bf16.xpose.msra.mxu0 0
        %1274 = vmatprep.subr.bf16.mxu0 0
        %1275 = vmatpush1.bf16.xpose.msra.mxu0 0
        %1276 = vmatprep.subr.bf16.mxu0 0
        %1277 = vmatpush1.bf16.xpose.msra.mxu0 0
        %1278 = vmatprep.subr.bf16.mxu0 0
        %1279 = vmatpush1.bf16.xpose.msra.mxu0 0
        %1280 = vmatprep.subr.bf16.mxu0 0
        %1281 = vmatpush1.bf16.xpose.msra.mxu0 %v1264
        %1282 = vmatprep.subr.bf16.mxu0 0
        %1283 = vmatpush2.bf16.xpose.msra.mxu0 0
        %1284 = vmatprep.subr.bf16.mxu0 0
        %1285 = vmatpush2.bf16.xpose.msra.mxu0 0
        %1286 = vmatprep.subr.bf16.mxu0 0
        %1287 = vmatpush2.bf16.xpose.msra.mxu0 0
        %1288 = vmatprep.subr.bf16.mxu0 0
        %1289 = vmatpush2.bf16.xpose.msra.mxu0 0
        %1290 = vmatprep.subr.bf16.mxu0 0
        %1291 = vmatpush2.bf16.xpose.msra.mxu0 0
        %1292 = vmatprep.subr.bf16.mxu0 0
        %1293 = vmatpush2.bf16.xpose.msra.mxu0 0
        %1294 = vmatprep.subr.bf16.mxu0 0
        %1295 = vmatpush2.bf16.xpose.msra.mxu0 0
        %1296 = vmatprep.subr.bf16.mxu0 0
        %1297 = vmatpush2.bf16.xpose.msra.mxu0 0
        %1298 = vmatprep.mubr.bf16.mxu0 0
        %1299 = vmatmul.mubr.bf16.gmra.mxu0 %v1261
        %v1300 = vpop.f32.mrf.mxu0
        %v1301 = vadd.f32 %v1174, %v1300
        %v1302 = vpop.f32.mrf.mxu0
        %v1303 = vpop.f32.mrf.mxu0
        %v1304 = vpop.f32.mrf.mxu0
        %1305 = vdwg.mxu0
        %1306 = vrot.lane.b32.xlu0 %v1247, 96
        %v1307 = vpop.permute.xlu0 %1306
        %v1309 = vsel %vm1259, %v1247, 0
        %v1312 = vsel %vm1259, %v1307, 0
        %1314 = vmatprep.subr.bf16.mxu0 0
        %1315 = vmatpush1.bf16.xpose.msra.mxu0 0
        %1316 = vmatprep.subr.bf16.mxu0 0
        %1317 = vmatpush1.bf16.xpose.msra.mxu0 0
        %1318 = vmatprep.subr.bf16.mxu0 0
        %1319 = vmatpush1.bf16.xpose.msra.mxu0 0
        %1320 = vmatprep.subr.bf16.mxu0 0
        %1321 = vmatpush1.bf16.xpose.msra.mxu0 0
        %1322 = vmatprep.subr.bf16.mxu0 0
        %1323 = vmatpush1.bf16.xpose.msra.mxu0 0
        %1324 = vmatprep.subr.bf16.mxu0 0
        %1325 = vmatpush1.bf16.xpose.msra.mxu0 0
        %1326 = vmatprep.subr.bf16.mxu0 0
        %1327 = vmatpush1.bf16.xpose.msra.mxu0 0
        %1328 = vmatprep.subr.bf16.mxu0 0
        %1329 = vmatpush1.bf16.xpose.msra.mxu0 %v1312
        %1330 = vmatprep.subr.bf16.mxu0 0
        %1331 = vmatpush2.bf16.xpose.msra.mxu0 0
        %1332 = vmatprep.subr.bf16.mxu0 0
        %1333 = vmatpush2.bf16.xpose.msra.mxu0 0
        %1334 = vmatprep.subr.bf16.mxu0 0
        %1335 = vmatpush2.bf16.xpose.msra.mxu0 0
        %1336 = vmatprep.subr.bf16.mxu0 0
        %1337 = vmatpush2.bf16.xpose.msra.mxu0 0
        %1338 = vmatprep.subr.bf16.mxu0 0
        %1339 = vmatpush2.bf16.xpose.msra.mxu0 0
        %1340 = vmatprep.subr.bf16.mxu0 0
        %1341 = vmatpush2.bf16.xpose.msra.mxu0 0
        %1342 = vmatprep.subr.bf16.mxu0 0
        %1343 = vmatpush2.bf16.xpose.msra.mxu0 0
        %1344 = vmatprep.subr.bf16.mxu0 0
        %1345 = vmatpush2.bf16.xpose.msra.mxu0 0
        %1346 = vmatprep.mubr.bf16.mxu0 0
        %1347 = vmatmul.mubr.bf16.gmra.mxu0 %v1309
        %v1348 = vpop.f32.mrf.mxu0
        %v1349 = vadd.f32 %v1174, %v1348
        %v1350 = vpop.f32.mrf.mxu0
        %v1351 = vpop.f32.mrf.mxu0
        %v1352 = vpop.f32.mrf.mxu0
        %1353 = vdwg.mxu0
        %1354 = vrot.lane.b32.xlu0 %v1249, 96
        %v1355 = vpop.permute.xlu0 %1354
        %v1357 = vsel %vm1259, %v1249, 0
        %v1360 = vsel %vm1259, %v1355, 0
        %1362 = vmatprep.subr.bf16.mxu0 0
        %1363 = vmatpush1.bf16.xpose.msra.mxu0 0
        %1364 = vmatprep.subr.bf16.mxu0 0
        %1365 = vmatpush1.bf16.xpose.msra.mxu0 0
        %1366 = vmatprep.subr.bf16.mxu0 0
        %1367 = vmatpush1.bf16.xpose.msra.mxu0 0
        %1368 = vmatprep.subr.bf16.mxu0 0
        %1369 = vmatpush1.bf16.xpose.msra.mxu0 0
        %1370 = vmatprep.subr.bf16.mxu0 0
        %1371 = vmatpush1.bf16.xpose.msra.mxu0 0
        %1372 = vmatprep.subr.bf16.mxu0 0
        %1373 = vmatpush1.bf16.xpose.msra.mxu0 0
        %1374 = vmatprep.subr.bf16.mxu0 0
        %1375 = vmatpush1.bf16.xpose.msra.mxu0 0
        %1376 = vmatprep.subr.bf16.mxu0 0
        %1377 = vmatpush1.bf16.xpose.msra.mxu0 %v1360
        %1378 = vmatprep.subr.bf16.mxu0 0
        %1379 = vmatpush2.bf16.xpose.msra.mxu0 0
        %1380 = vmatprep.subr.bf16.mxu0 0
        %1381 = vmatpush2.bf16.xpose.msra.mxu0 0
        %1382 = vmatprep.subr.bf16.mxu0 0
        %1383 = vmatpush2.bf16.xpose.msra.mxu0 0
        %1384 = vmatprep.subr.bf16.mxu0 0
        %1385 = vmatpush2.bf16.xpose.msra.mxu0 0
        %1386 = vmatprep.subr.bf16.mxu0 0
        %1387 = vmatpush2.bf16.xpose.msra.mxu0 0
        %1388 = vmatprep.subr.bf16.mxu0 0
        %1389 = vmatpush2.bf16.xpose.msra.mxu0 0
        %1390 = vmatprep.subr.bf16.mxu0 0
        %1391 = vmatpush2.bf16.xpose.msra.mxu0 0
        %1392 = vmatprep.subr.bf16.mxu0 0
        %1393 = vmatpush2.bf16.xpose.msra.mxu0 0
        %1394 = vmatprep.mubr.bf16.mxu0 0
        %1395 = vmatmul.mubr.bf16.gmra.mxu0 %v1357
        %v1396 = vpop.f32.mrf.mxu0
        %v1397 = vadd.f32 %v1174, %v1396
        %v1398 = vpop.f32.mrf.mxu0
        %v1399 = vpop.f32.mrf.mxu0
        %v1400 = vpop.f32.mrf.mxu0
        %1401 = vdwg.mxu0
        %1402 = vrot.lane.b32.xlu0 %v1251, 96
        %v1403 = vpop.permute.xlu0 %1402
        %v1405 = vsel %vm1259, %v1251, 0
        %v1408 = vsel %vm1259, %v1403, 0
        %1410 = vmatprep.subr.bf16.mxu0 0
        %1411 = vmatpush1.bf16.xpose.msra.mxu0 0
        %1412 = vmatprep.subr.bf16.mxu0 0
        %1413 = vmatpush1.bf16.xpose.msra.mxu0 0
        %1414 = vmatprep.subr.bf16.mxu0 0
        %1415 = vmatpush1.bf16.xpose.msra.mxu0 0
        %1416 = vmatprep.subr.bf16.mxu0 0
        %1417 = vmatpush1.bf16.xpose.msra.mxu0 0
        %1418 = vmatprep.subr.bf16.mxu0 0
        %1419 = vmatpush1.bf16.xpose.msra.mxu0 0
        %1420 = vmatprep.subr.bf16.mxu0 0
        %1421 = vmatpush1.bf16.xpose.msra.mxu0 0
        %1422 = vmatprep.subr.bf16.mxu0 0
        %1423 = vmatpush1.bf16.xpose.msra.mxu0 0
        %1424 = vmatprep.subr.bf16.mxu0 0
        %1425 = vmatpush1.bf16.xpose.msra.mxu0 %v1408
        %1426 = vmatprep.subr.bf16.mxu0 0
        %1427 = vmatpush2.bf16.xpose.msra.mxu0 0
        %1428 = vmatprep.subr.bf16.mxu0 0
        %1429 = vmatpush2.bf16.xpose.msra.mxu0 0
        %1430 = vmatprep.subr.bf16.mxu0 0
        %1431 = vmatpush2.bf16.xpose.msra.mxu0 0
        %1432 = vmatprep.subr.bf16.mxu0 0
        %1433 = vmatpush2.bf16.xpose.msra.mxu0 0
        %1434 = vmatprep.subr.bf16.mxu0 0
        %1435 = vmatpush2.bf16.xpose.msra.mxu0 0
        %1436 = vmatprep.subr.bf16.mxu0 0
        %1437 = vmatpush2.bf16.xpose.msra.mxu0 0
        %1438 = vmatprep.subr.bf16.mxu0 0
        %1439 = vmatpush2.bf16.xpose.msra.mxu0 0
        %1440 = vmatprep.subr.bf16.mxu0 0
        %1441 = vmatpush2.bf16.xpose.msra.mxu0 0
        %1442 = vmatprep.mubr.bf16.mxu0 0
        %1443 = vmatmul.mubr.bf16.gmra.mxu0 %v1405
        %v1444 = vpop.f32.mrf.mxu0
        %v1445 = vadd.f32 %v1174, %v1444
        %v1446 = vpop.f32.mrf.mxu0
        %v1447 = vpop.f32.mrf.mxu0
        %v1448 = vpop.f32.mrf.mxu0
        %1449 = vdwg.mxu0
        %v1450 = vsel %vm1259, %v1301, -inf
        %1451 = vmax.xlane.f32.xlu0 %v1450
        %v1452 = vpop.xlane.xlu0 %1451
        %v1453 = vsel %vm1259, %v1349, -inf
        %1454 = vmax.xlane.f32.xlu0 %v1453
        %v1455 = vpop.xlane.xlu0 %1454
        %v1456 = vsel %vm1259, %v1397, -inf
        %1457 = vmax.xlane.f32.xlu0 %v1456
        %v1458 = vpop.xlane.xlu0 %1457
        %v1459 = vsel %vm1259, %v1445, -inf
        %1460 = vmax.xlane.f32.xlu0 %v1459
        %v1461 = vpop.xlane.xlu0 %1460
        %v1462 = vsub.f32 %v1301, %v1452
        %v1463 = vsub.f32 %v1349, %v1455
        %v1464 = vsub.f32 %v1397, %v1458
        %v1465 = vsub.f32 %v1445, %v1461
        %v1466 = vmul.f32 %v1462, 1.442695
        %v1467 = vpow.pop %v1466
        %v1468 = vmul.f32 %v1463, 1.442695
        %v1469 = vpow.pop %v1468
        %v1470 = vmul.f32 %v1464, 1.442695
        %v1471 = vpow.pop %v1470
        %v1472 = vmul.f32 %v1465, 1.442695
        %v1473 = vpow.pop %v1472
        %v1474 = vsel %vm1259, %v1467, 0.0
        %1475 = vadd.xlane.f32.xlu0 %v1474
        %v1476 = vpop.xlane.xlu0 %1475
        %v1477 = vsel %vm1259, %v1469, 0.0
        %1478 = vadd.xlane.f32.xlu0 %v1477
        %v1479 = vpop.xlane.xlu0 %1478
        %v1480 = vsel %vm1259, %v1471, 0.0
        %1481 = vadd.xlane.f32.xlu0 %v1480
        %v1482 = vpop.xlane.xlu0 %1481
        %v1483 = vsel %vm1259, %v1473, 0.0
        %1484 = vadd.xlane.f32.xlu0 %v1483
        %v1485 = vpop.xlane.xlu0 %1484
        %v1486 = vrcp.pop %v1476
        %v1487 = vrcp.pop %v1479
        %v1488 = vrcp.pop %v1482
        %v1489 = vrcp.pop %v1485
        %v1490 = vmul.f32 %v1467, %v1486
        %v1491 = vmul.f32 %v1469, %v1487
        %v1492 = vmul.f32 %v1471, %v1488
        %v1493 = vmul.f32 %v1473, %v1489
        %v1494 = vpack.c.bf16 %v1490, %v1490
        %v1495 = vpack.c.bf16 %v1491, %v1491
        %v1496 = vpack.c.bf16 %v1492, %v1492
        %v1497 = vpack.c.bf16 %v1493, %v1493
        %1498 = vrot.lane.b32.xlu0 %v1244, 64
        %v1499 = vpop.permute.xlu0 %1498
        %v1501 = vsel %vm1259, %v1494, 0
        %vm1503 = vcmask 1043456
        %v1505 = vsel %vm1503, %v1499, 0
        %1507 = vmatprep.subr.bf16.mxu0 0
        %1508 = vmatpush1.bf16.msra.mxu0 0
        %1509 = vmatprep.subr.bf16.mxu0 0
        %1510 = vmatpush1.bf16.msra.mxu0 0
        %1511 = vmatprep.subr.bf16.mxu0 0
        %1512 = vmatpush1.bf16.msra.mxu0 0
        %1513 = vmatprep.subr.bf16.mxu0 0
        %1514 = vmatpush1.bf16.msra.mxu0 0
        %1515 = vmatprep.subr.bf16.mxu0 0
        %1516 = vmatpush1.bf16.msra.mxu0 0
        %1517 = vmatprep.subr.bf16.mxu0 0
        %1518 = vmatpush1.bf16.msra.mxu0 0
        %1519 = vmatprep.subr.bf16.mxu0 0
        %1520 = vmatpush1.bf16.msra.mxu0 0
        %1521 = vmatprep.subr.bf16.mxu0 0
        %1522 = vmatpush1.bf16.msra.mxu0 %v1505
        %1523 = vmatprep.subr.bf16.mxu0 0
        %1524 = vmatpush2.bf16.msra.mxu0 0
        %1525 = vmatprep.subr.bf16.mxu0 0
        %1526 = vmatpush2.bf16.msra.mxu0 0
        %1527 = vmatprep.subr.bf16.mxu0 0
        %1528 = vmatpush2.bf16.msra.mxu0 0
        %1529 = vmatprep.subr.bf16.mxu0 0
        %1530 = vmatpush2.bf16.msra.mxu0 0
        %1531 = vmatprep.subr.bf16.mxu0 0
        %1532 = vmatpush2.bf16.msra.mxu0 0
        %1533 = vmatprep.subr.bf16.mxu0 0
        %1534 = vmatpush2.bf16.msra.mxu0 0
        %1535 = vmatprep.subr.bf16.mxu0 0
        %1536 = vmatpush2.bf16.msra.mxu0 0
        %1537 = vmatprep.subr.bf16.mxu0 0
        %1538 = vmatpush2.bf16.msra.mxu0 0
        %1539 = vmatprep.mubr.bf16.mxu0 0
        %1540 = vmatmul.mubr.bf16.gmra.mxu0 %v1501
        %v1541 = vpop.f32.mrf.mxu0
        %v1542 = vadd.f32 0.0, %v1541
        %v1543 = vpop.f32.mrf.mxu0
        %v1544 = vpop.f32.mrf.mxu0
        %v1545 = vpop.f32.mrf.mxu0
        %1546 = vdwg.mxu0
        %1547 = vrot.lane.b32.xlu0 %v1247, 64
        %v1548 = vpop.permute.xlu0 %1547
        %v1550 = vsel %vm1259, %v1495, 0
        %v1553 = vsel %vm1503, %v1548, 0
        %1555 = vmatprep.subr.bf16.mxu0 0
        %1556 = vmatpush1.bf16.msra.mxu0 0
        %1557 = vmatprep.subr.bf16.mxu0 0
        %1558 = vmatpush1.bf16.msra.mxu0 0
        %1559 = vmatprep.subr.bf16.mxu0 0
        %1560 = vmatpush1.bf16.msra.mxu0 0
        %1561 = vmatprep.subr.bf16.mxu0 0
        %1562 = vmatpush1.bf16.msra.mxu0 0
        %1563 = vmatprep.subr.bf16.mxu0 0
        %1564 = vmatpush1.bf16.msra.mxu0 0
        %1565 = vmatprep.subr.bf16.mxu0 0
        %1566 = vmatpush1.bf16.msra.mxu0 0
        %1567 = vmatprep.subr.bf16.mxu0 0
        %1568 = vmatpush1.bf16.msra.mxu0 0
        %1569 = vmatprep.subr.bf16.mxu0 0
        %1570 = vmatpush1.bf16.msra.mxu0 %v1553
        %1571 = vmatprep.subr.bf16.mxu0 0
        %1572 = vmatpush2.bf16.msra.mxu0 0
        %1573 = vmatprep.subr.bf16.mxu0 0
        %1574 = vmatpush2.bf16.msra.mxu0 0
        %1575 = vmatprep.subr.bf16.mxu0 0
        %1576 = vmatpush2.bf16.msra.mxu0 0
        %1577 = vmatprep.subr.bf16.mxu0 0
        %1578 = vmatpush2.bf16.msra.mxu0 0
        %1579 = vmatprep.subr.bf16.mxu0 0
        %1580 = vmatpush2.bf16.msra.mxu0 0
        %1581 = vmatprep.subr.bf16.mxu0 0
        %1582 = vmatpush2.bf16.msra.mxu0 0
        %1583 = vmatprep.subr.bf16.mxu0 0
        %1584 = vmatpush2.bf16.msra.mxu0 0
        %1585 = vmatprep.subr.bf16.mxu0 0
        %1586 = vmatpush2.bf16.msra.mxu0 0
        %1587 = vmatprep.mubr.bf16.mxu0 0
        %1588 = vmatmul.mubr.bf16.gmra.mxu0 %v1550
        %v1589 = vpop.f32.mrf.mxu0
        %v1590 = vadd.f32 0.0, %v1589
        %v1591 = vpop.f32.mrf.mxu0
        %v1592 = vpop.f32.mrf.mxu0
        %v1593 = vpop.f32.mrf.mxu0
        %1594 = vdwg.mxu0
        %1595 = vrot.lane.b32.xlu0 %v1249, 64
        %v1596 = vpop.permute.xlu0 %1595
        %v1598 = vsel %vm1259, %v1496, 0
        %v1601 = vsel %vm1503, %v1596, 0
        %1603 = vmatprep.subr.bf16.mxu0 0
        %1604 = vmatpush1.bf16.msra.mxu0 0
        %1605 = vmatprep.subr.bf16.mxu0 0
        %1606 = vmatpush1.bf16.msra.mxu0 0
        %1607 = vmatprep.subr.bf16.mxu0 0
        %1608 = vmatpush1.bf16.msra.mxu0 0
        %1609 = vmatprep.subr.bf16.mxu0 0
        %1610 = vmatpush1.bf16.msra.mxu0 0
        %1611 = vmatprep.subr.bf16.mxu0 0
        %1612 = vmatpush1.bf16.msra.mxu0 0
        %1613 = vmatprep.subr.bf16.mxu0 0
        %1614 = vmatpush1.bf16.msra.mxu0 0
        %1615 = vmatprep.subr.bf16.mxu0 0
        %1616 = vmatpush1.bf16.msra.mxu0 0
        %1617 = vmatprep.subr.bf16.mxu0 0
        %1618 = vmatpush1.bf16.msra.mxu0 %v1601
        %1619 = vmatprep.subr.bf16.mxu0 0
        %1620 = vmatpush2.bf16.msra.mxu0 0
        %1621 = vmatprep.subr.bf16.mxu0 0
        %1622 = vmatpush2.bf16.msra.mxu0 0
        %1623 = vmatprep.subr.bf16.mxu0 0
        %1624 = vmatpush2.bf16.msra.mxu0 0
        %1625 = vmatprep.subr.bf16.mxu0 0
        %1626 = vmatpush2.bf16.msra.mxu0 0
        %1627 = vmatprep.subr.bf16.mxu0 0
        %1628 = vmatpush2.bf16.msra.mxu0 0
        %1629 = vmatprep.subr.bf16.mxu0 0
        %1630 = vmatpush2.bf16.msra.mxu0 0
        %1631 = vmatprep.subr.bf16.mxu0 0
        %1632 = vmatpush2.bf16.msra.mxu0 0
        %1633 = vmatprep.subr.bf16.mxu0 0
        %1634 = vmatpush2.bf16.msra.mxu0 0
        %1635 = vmatprep.mubr.bf16.mxu0 0
        %1636 = vmatmul.mubr.bf16.gmra.mxu0 %v1598
        %v1637 = vpop.f32.mrf.mxu0
        %v1638 = vadd.f32 0.0, %v1637
        %v1639 = vpop.f32.mrf.mxu0
        %v1640 = vpop.f32.mrf.mxu0
        %v1641 = vpop.f32.mrf.mxu0
        %1642 = vdwg.mxu0
        %1643 = vrot.lane.b32.xlu0 %v1251, 64
        %v1644 = vpop.permute.xlu0 %1643
        %v1646 = vsel %vm1259, %v1497, 0
        %v1649 = vsel %vm1503, %v1644, 0
        %1651 = vmatprep.subr.bf16.mxu0 0
        %1652 = vmatpush1.bf16.msra.mxu0 0
        %1653 = vmatprep.subr.bf16.mxu0 0
        %1654 = vmatpush1.bf16.msra.mxu0 0
        %1655 = vmatprep.subr.bf16.mxu0 0
        %1656 = vmatpush1.bf16.msra.mxu0 0
        %1657 = vmatprep.subr.bf16.mxu0 0
        %1658 = vmatpush1.bf16.msra.mxu0 0
        %1659 = vmatprep.subr.bf16.mxu0 0
        %1660 = vmatpush1.bf16.msra.mxu0 0
        %1661 = vmatprep.subr.bf16.mxu0 0
        %1662 = vmatpush1.bf16.msra.mxu0 0
        %1663 = vmatprep.subr.bf16.mxu0 0
        %1664 = vmatpush1.bf16.msra.mxu0 0
        %1665 = vmatprep.subr.bf16.mxu0 0
        %1666 = vmatpush1.bf16.msra.mxu0 %v1649
        %1667 = vmatprep.subr.bf16.mxu0 0
        %1668 = vmatpush2.bf16.msra.mxu0 0
        %1669 = vmatprep.subr.bf16.mxu0 0
        %1670 = vmatpush2.bf16.msra.mxu0 0
        %1671 = vmatprep.subr.bf16.mxu0 0
        %1672 = vmatpush2.bf16.msra.mxu0 0
        %1673 = vmatprep.subr.bf16.mxu0 0
        %1674 = vmatpush2.bf16.msra.mxu0 0
        %1675 = vmatprep.subr.bf16.mxu0 0
        %1676 = vmatpush2.bf16.msra.mxu0 0
        %1677 = vmatprep.subr.bf16.mxu0 0
        %1678 = vmatpush2.bf16.msra.mxu0 0
        %1679 = vmatprep.subr.bf16.mxu0 0
        %1680 = vmatpush2.bf16.msra.mxu0 0
        %1681 = vmatprep.subr.bf16.mxu0 0
        %1682 = vmatpush2.bf16.msra.mxu0 0
        %1683 = vmatprep.mubr.bf16.mxu0 0
        %1684 = vmatmul.mubr.bf16.gmra.mxu0 %v1646
        %v1685 = vpop.f32.mrf.mxu0
        %v1686 = vadd.f32 0.0, %v1685
        %v1687 = vpop.f32.mrf.mxu0
        %v1688 = vpop.f32.mrf.mxu0
        %v1689 = vpop.f32.mrf.mxu0
        %1690 = vdwg.mxu0
        %1692 = vrot.lane.b32.xlu0 %v1590, 8
        %v1693 = vpop.permute.xlu0 %1692
        %1696 = vrot.lane.b32.xlu0 %v1638, 16
        %v1697 = vpop.permute.xlu0 %1696
        %1700 = vrot.lane.b32.xlu0 %v1686, 24
        %v1701 = vpop.permute.xlu0 %1700
        %v1703 = vsel %vm1259, %v1542, %v1693
        %vm1704 = vcmask 130048
        %v1705 = vsel %vm1704, %v1703, %v1697
        %vm1706 = vcmask 195584
        %v1707 = vsel %vm1706, %v1705, %v1701
        %v1708 = vpack.c.bf16 %v1707, %v1707
        %v1710 = vlaneseq
        %v1711 = vshrl.u32 %v1710, 7
        %v1712 = vsub.s32 0, %v1711
        %v1713 = vrot.slane %v1256, %v1712
        %v1719 = vunpack.c.l.b16 %v1252
        %v1720 = vunpack.c.l.b16 %v1253
        %v1721 = vunpack.c.l.b16 %v1254
        %v1722 = vunpack.c.l.b16 %v1255
        %v1723 = vpack.c.b16 %v1720, %v1719
        %v1724 = vpack.c.b16 %v1722, %v1721
        %v1728 = vsel %vm1200, %v1708, 0
        %1730 = vmatprep.subr.bf16.mxu0 0
        %1731 = vmatpush1.bf16.msra.mxu0 0
        %1732 = vmatprep.subr.bf16.mxu0 0
        %1733 = vmatpush1.bf16.msra.mxu0 0
        %1734 = vmatprep.subr.bf16.mxu0 0
        %1735 = vmatpush1.bf16.msra.mxu0 0
        %1736 = vmatprep.subr.bf16.mxu0 0
        %1737 = vmatpush1.bf16.msra.mxu0 0
        %1738 = vmatprep.subr.bf16.mxu0 0
        %1739 = vmatpush1.bf16.msra.mxu0 0
        %1740 = vmatprep.subr.bf16.mxu0 0
        %1741 = vmatpush1.bf16.msra.mxu0 0
        %1742 = vmatprep.subr.bf16.mxu0 0
        %1743 = vmatpush1.bf16.msra.mxu0 %v1724
        %1744 = vmatprep.subr.bf16.mxu0 0
        %1745 = vmatpush1.bf16.msra.mxu0 %v1723
        %1746 = vmatprep.subr.bf16.mxu0 0
        %1747 = vmatpush2.bf16.msra.mxu0 0
        %1748 = vmatprep.subr.bf16.mxu0 0
        %1749 = vmatpush2.bf16.msra.mxu0 0
        %1750 = vmatprep.subr.bf16.mxu0 0
        %1751 = vmatpush2.bf16.msra.mxu0 0
        %1752 = vmatprep.subr.bf16.mxu0 0
        %1753 = vmatpush2.bf16.msra.mxu0 0
        %1754 = vmatprep.subr.bf16.mxu0 0
        %1755 = vmatpush2.bf16.msra.mxu0 0
        %1756 = vmatprep.subr.bf16.mxu0 0
        %1757 = vmatpush2.bf16.msra.mxu0 0
        %1758 = vmatprep.subr.bf16.mxu0 0
        %1759 = vmatpush2.bf16.msra.mxu0 0
        %1760 = vmatprep.subr.bf16.mxu0 0
        %1761 = vmatpush2.bf16.msra.mxu0 0
        %1762 = vmatprep.mubr.bf16.mxu0 0
        %1763 = vmatmul.mubr.bf16.gmra.mxu0 %v1728
        %v1764 = vpop.f32.mrf.mxu0
        %v1765 = vadd.f32 %v1713, %v1764
        %v1766 = vpop.f32.mrf.mxu0
        %v1767 = vpop.f32.mrf.mxu0
        %v1768 = vpop.f32.mrf.mxu0
        %1769 = vdwg.mxu0
        %v1770 = vadd.f32 %v1159, %v1765
        %v1771 = vld [vmem:[%s1090] sm:$0x1]
        %v1772 = vld [vmem:[%s1093] sm:$0x1]
        %v1773 = vsel %vm1200, %v1770, 0.0
        %1774 = vadd.xlane.f32.xlu0 %v1773
        %v1775 = vpop.xlane.xlu0 %1774
        %v1776 = vrcp.pop 32.0
        %v1777 = vmul.f32 %v1775, %v1776
        %v1778 = vsub.f32 %v1770, %v1777
        %v1779 = vmul.f32 %v1778, %v1778
        %v1780 = vsel %vm1200, %v1779, 0.0
        %1781 = vadd.xlane.f32.xlu0 %v1780
        %v1782 = vpop.xlane.xlu0 %1781
        %v1783 = vmul.f32 %v1782, %v1776
        %v1784 = vadd.f32 %v1783, 1e-05
        %v1785 = vrsqrt.pop %v1784
        %v1786 = vmul.f32 %v1778, %v1785
        %v1788 = vlaneseq
        %v1789 = vshrl.u32 %v1788, 7
        %v1790 = vsub.s32 0, %v1789
        %v1791 = vrot.slane %v1771, %v1790
        %v1793 = vmul.f32 %v1786, %v1791
        %v1795 = vlaneseq
        %v1796 = vshrl.u32 %v1795, 7
        %v1797 = vsub.s32 0, %v1796
        %v1798 = vrot.slane %v1772, %v1797
        %v1800 = vadd.f32 %v1793, %v1798
        %v1801 = vpack.c.bf16 %v1800, %v1800
        %v1802 = vld [vmem:[%s1098] sm:$0xf]
        %v1803 = vld [vmem:[%s1098 + $0x4] sm:$0xf]
        %v1804 = vld [vmem:[%s1098 + $0x8] sm:$0xf]
        %v1805 = vld [vmem:[%s1098 + $0xc] sm:$0xf]
        %v1806 = vld [vmem:[%s1101] sm:$0x1]
        %v1808 = vlaneseq
        %v1809 = vshrl.u32 %v1808, 7
        %v1810 = vsub.s32 0, %v1809
        %v1811 = vrot.slane %v1806, %v1810
        %v1817 = vunpack.c.l.b16 %v1802
        %v1818 = vunpack.c.l.b16 %v1803
        %v1819 = vunpack.c.l.b16 %v1804
        %v1820 = vunpack.c.l.b16 %v1805
        %v1821 = vpack.c.b16 %v1818, %v1817
        %v1822 = vpack.c.b16 %v1820, %v1819
        %v1826 = vsel %vm1200, %v1801, 0
        %1828 = vmatprep.subr.bf16.mxu0 0
        %1829 = vmatpush1.bf16.msra.mxu0 0
        %1830 = vmatprep.subr.bf16.mxu0 0
        %1831 = vmatpush1.bf16.msra.mxu0 0
        %1832 = vmatprep.subr.bf16.mxu0 0
        %1833 = vmatpush1.bf16.msra.mxu0 0
        %1834 = vmatprep.subr.bf16.mxu0 0
        %1835 = vmatpush1.bf16.msra.mxu0 0
        %1836 = vmatprep.subr.bf16.mxu0 0
        %1837 = vmatpush1.bf16.msra.mxu0 0
        %1838 = vmatprep.subr.bf16.mxu0 0
        %1839 = vmatpush1.bf16.msra.mxu0 0
        %1840 = vmatprep.subr.bf16.mxu0 0
        %1841 = vmatpush1.bf16.msra.mxu0 %v1822
        %1842 = vmatprep.subr.bf16.mxu0 0
        %1843 = vmatpush1.bf16.msra.mxu0 %v1821
        %1844 = vmatprep.subr.bf16.mxu0 0
        %1845 = vmatpush2.bf16.msra.mxu0 0
        %1846 = vmatprep.subr.bf16.mxu0 0
        %1847 = vmatpush2.bf16.msra.mxu0 0
        %1848 = vmatprep.subr.bf16.mxu0 0
        %1849 = vmatpush2.bf16.msra.mxu0 0
        %1850 = vmatprep.subr.bf16.mxu0 0
        %1851 = vmatpush2.bf16.msra.mxu0 0
        %1852 = vmatprep.subr.bf16.mxu0 0
        %1853 = vmatpush2.bf16.msra.mxu0 0
        %1854 = vmatprep.subr.bf16.mxu0 0
        %1855 = vmatpush2.bf16.msra.mxu0 0
        %1856 = vmatprep.subr.bf16.mxu0 0
        %1857 = vmatpush2.bf16.msra.mxu0 0
        %1858 = vmatprep.subr.bf16.mxu0 0
        %1859 = vmatpush2.bf16.msra.mxu0 0
        %1860 = vmatprep.mubr.bf16.mxu0 0
        %1861 = vmatmul.mubr.bf16.gmra.mxu0 %v1826
        %v1862 = vpop.f32.mrf.mxu0
        %v1863 = vadd.f32 %v1811, %v1862
        %v1864 = vpop.f32.mrf.mxu0
        %v1865 = vpop.f32.mrf.mxu0
        %v1866 = vpop.f32.mrf.mxu0
        %1867 = vdwg.mxu0
        %v1868 = vld [vmem:[%s1106] sm:$0xf]
        %v1869 = vld [vmem:[%s1106 + $0x4] sm:$0xf]
        %v1870 = vld [vmem:[%s1106 + $0x8] sm:$0xf]
        %v1871 = vld [vmem:[%s1106 + $0xc] sm:$0xf]
        %v1872 = vld [vmem:[%s1109] sm:$0x1]
        %v1874 = vlaneseq
        %v1875 = vshrl.u32 %v1874, 7
        %v1876 = vsub.s32 0, %v1875
        %v1877 = vrot.slane %v1872, %v1876
        %v1883 = vunpack.c.l.b16 %v1868
        %v1884 = vunpack.c.l.b16 %v1869
        %v1885 = vunpack.c.l.b16 %v1870
        %v1886 = vunpack.c.l.b16 %v1871
        %v1887 = vpack.c.b16 %v1884, %v1883
        %v1888 = vpack.c.b16 %v1886, %v1885
        %v1892 = vsel %vm1200, %v1160, 0
        %1894 = vmatprep.subr.bf16.mxu0 0
        %1895 = vmatpush1.bf16.msra.mxu0 0
        %1896 = vmatprep.subr.bf16.mxu0 0
        %1897 = vmatpush1.bf16.msra.mxu0 0
        %1898 = vmatprep.subr.bf16.mxu0 0
        %1899 = vmatpush1.bf16.msra.mxu0 0
        %1900 = vmatprep.subr.bf16.mxu0 0
        %1901 = vmatpush1.bf16.msra.mxu0 0
        %1902 = vmatprep.subr.bf16.mxu0 0
        %1903 = vmatpush1.bf16.msra.mxu0 0
        %1904 = vmatprep.subr.bf16.mxu0 0
        %1905 = vmatpush1.bf16.msra.mxu0 0
        %1906 = vmatprep.subr.bf16.mxu0 0
        %1907 = vmatpush1.bf16.msra.mxu0 %v1888
        %1908 = vmatprep.subr.bf16.mxu0 0
        %1909 = vmatpush1.bf16.msra.mxu0 %v1887
        %1910 = vmatprep.subr.bf16.mxu0 0
        %1911 = vmatpush2.bf16.msra.mxu0 0
        %1912 = vmatprep.subr.bf16.mxu0 0
        %1913 = vmatpush2.bf16.msra.mxu0 0
        %1914 = vmatprep.subr.bf16.mxu0 0
        %1915 = vmatpush2.bf16.msra.mxu0 0
        %1916 = vmatprep.subr.bf16.mxu0 0
        %1917 = vmatpush2.bf16.msra.mxu0 0
        %1918 = vmatprep.subr.bf16.mxu0 0
        %1919 = vmatpush2.bf16.msra.mxu0 0
        %1920 = vmatprep.subr.bf16.mxu0 0
        %1921 = vmatpush2.bf16.msra.mxu0 0
        %1922 = vmatprep.subr.bf16.mxu0 0
        %1923 = vmatpush2.bf16.msra.mxu0 0
        %1924 = vmatprep.subr.bf16.mxu0 0
        %1925 = vmatpush2.bf16.msra.mxu0 0
        %1926 = vmatprep.mubr.bf16.mxu0 0
        %1927 = vmatmul.mubr.bf16.gmra.mxu0 %v1892
        %v1928 = vpop.f32.mrf.mxu0
        %v1929 = vadd.f32 %v1877, %v1928
        %v1930 = vpop.f32.mrf.mxu0
        %v1931 = vpop.f32.mrf.mxu0
        %v1932 = vpop.f32.mrf.mxu0
        %1933 = vdwg.mxu0
        %v1934 = vpack.c.bf16 %v1863, %v1863
        %1936 = vrot.lane.b32.xlu0 %v1934, 120
        %v1937 = vpop.permute.xlu0 %1936
        %1938 = vrot.lane.b32.xlu0 %v1934, 112
        %v1939 = vpop.permute.xlu0 %1938
        %1940 = vrot.lane.b32.xlu0 %v1934, 104
        %v1941 = vpop.permute.xlu0 %1940
        %v1942 = vpack.c.bf16 %v1929, %v1929
        %1944 = vrot.lane.b32.xlu0 %v1942, 120
        %v1945 = vpop.permute.xlu0 %1944
        %1946 = vrot.lane.b32.xlu0 %v1942, 112
        %v1947 = vpop.permute.xlu0 %1946
        %1948 = vrot.lane.b32.xlu0 %v1942, 104
        %v1949 = vpop.permute.xlu0 %1948
        %v1950 = vld [vmem:[%s1114] sm:$0xf]
        %v1951 = vld [vmem:[%s1114 + $0x4] sm:$0xf]
        %v1952 = vld [vmem:[%s1114 + $0x8] sm:$0xf]
        %v1953 = vld [vmem:[%s1114 + $0xc] sm:$0xf]
        %v1954 = vld [vmem:[%s1117] sm:$0x1]
        %v1956 = vlaneseq
        %v1957 = vshrl.u32 %v1956, 7
        %v1958 = vsub.s32 0, %v1957
        %v1959 = vrot.slane %v1175, %v1958
        %v1962 = vsel %vm1259, %v1934, 0
        %v1965 = vsel %vm1259, %v1942, 0
        %1967 = vmatprep.subr.bf16.mxu0 0
        %1968 = vmatpush1.bf16.xpose.msra.mxu0 0
        %1969 = vmatprep.subr.bf16.mxu0 0
        %1970 = vmatpush1.bf16.xpose.msra.mxu0 0
        %1971 = vmatprep.subr.bf16.mxu0 0
        %1972 = vmatpush1.bf16.xpose.msra.mxu0 0
        %1973 = vmatprep.subr.bf16.mxu0 0
        %1974 = vmatpush1.bf16.xpose.msra.mxu0 0
        %1975 = vmatprep.subr.bf16.mxu0 0
        %1976 = vmatpush1.bf16.xpose.msra.mxu0 0
        %1977 = vmatprep.subr.bf16.mxu0 0
        %1978 = vmatpush1.bf16.xpose.msra.mxu0 0
        %1979 = vmatprep.subr.bf16.mxu0 0
        %1980 = vmatpush1.bf16.xpose.msra.mxu0 0
        %1981 = vmatprep.subr.bf16.mxu0 0
        %1982 = vmatpush1.bf16.xpose.msra.mxu0 %v1965
        %1983 = vmatprep.subr.bf16.mxu0 0
        %1984 = vmatpush2.bf16.xpose.msra.mxu0 0
        %1985 = vmatprep.subr.bf16.mxu0 0
        %1986 = vmatpush2.bf16.xpose.msra.mxu0 0
        %1987 = vmatprep.subr.bf16.mxu0 0
        %1988 = vmatpush2.bf16.xpose.msra.mxu0 0
        %1989 = vmatprep.subr.bf16.mxu0 0
        %1990 = vmatpush2.bf16.xpose.msra.mxu0 0
        %1991 = vmatprep.subr.bf16.mxu0 0
        %1992 = vmatpush2.bf16.xpose.msra.mxu0 0
        %1993 = vmatprep.subr.bf16.mxu0 0
        %1994 = vmatpush2.bf16.xpose.msra.mxu0 0
        %1995 = vmatprep.subr.bf16.mxu0 0
        %1996 = vmatpush2.bf16.xpose.msra.mxu0 0
        %1997 = vmatprep.subr.bf16.mxu0 0
        %1998 = vmatpush2.bf16.xpose.msra.mxu0 0
        %1999 = vmatprep.mubr.bf16.mxu0 0
        %2000 = vmatmul.mubr.bf16.gmra.mxu0 %v1962
        %v2001 = vpop.f32.mrf.mxu0
        %v2002 = vadd.f32 %v1959, %v2001
        %v2003 = vpop.f32.mrf.mxu0
        %v2004 = vpop.f32.mrf.mxu0
        %v2005 = vpop.f32.mrf.mxu0
        %2006 = vdwg.mxu0
        %v2008 = vsel %vm1259, %v1937, 0
        %v2011 = vsel %vm1259, %v1945, 0
        %2013 = vmatprep.subr.bf16.mxu0 0
        %2014 = vmatpush1.bf16.xpose.msra.mxu0 0
        %2015 = vmatprep.subr.bf16.mxu0 0
        %2016 = vmatpush1.bf16.xpose.msra.mxu0 0
        %2017 = vmatprep.subr.bf16.mxu0 0
        %2018 = vmatpush1.bf16.xpose.msra.mxu0 0
        %2019 = vmatprep.subr.bf16.mxu0 0
        %2020 = vmatpush1.bf16.xpose.msra.mxu0 0
        %2021 = vmatprep.subr.bf16.mxu0 0
        %2022 = vmatpush1.bf16.xpose.msra.mxu0 0
        %2023 = vmatprep.subr.bf16.mxu0 0
        %2024 = vmatpush1.bf16.xpose.msra.mxu0 0
        %2025 = vmatprep.subr.bf16.mxu0 0
        %2026 = vmatpush1.bf16.xpose.msra.mxu0 0
        %2027 = vmatprep.subr.bf16.mxu0 0
        %2028 = vmatpush1.bf16.xpose.msra.mxu0 %v2011
        %2029 = vmatprep.subr.bf16.mxu0 0
        %2030 = vmatpush2.bf16.xpose.msra.mxu0 0
        %2031 = vmatprep.subr.bf16.mxu0 0
        %2032 = vmatpush2.bf16.xpose.msra.mxu0 0
        %2033 = vmatprep.subr.bf16.mxu0 0
        %2034 = vmatpush2.bf16.xpose.msra.mxu0 0
        %2035 = vmatprep.subr.bf16.mxu0 0
        %2036 = vmatpush2.bf16.xpose.msra.mxu0 0
        %2037 = vmatprep.subr.bf16.mxu0 0
        %2038 = vmatpush2.bf16.xpose.msra.mxu0 0
        %2039 = vmatprep.subr.bf16.mxu0 0
        %2040 = vmatpush2.bf16.xpose.msra.mxu0 0
        %2041 = vmatprep.subr.bf16.mxu0 0
        %2042 = vmatpush2.bf16.xpose.msra.mxu0 0
        %2043 = vmatprep.subr.bf16.mxu0 0
        %2044 = vmatpush2.bf16.xpose.msra.mxu0 0
        %2045 = vmatprep.mubr.bf16.mxu0 0
        %2046 = vmatmul.mubr.bf16.gmra.mxu0 %v2008
        %v2047 = vpop.f32.mrf.mxu0
        %v2048 = vadd.f32 %v1959, %v2047
        %v2049 = vpop.f32.mrf.mxu0
        %v2050 = vpop.f32.mrf.mxu0
        %v2051 = vpop.f32.mrf.mxu0
        %2052 = vdwg.mxu0
        %v2054 = vsel %vm1259, %v1939, 0
        %v2057 = vsel %vm1259, %v1947, 0
        %2059 = vmatprep.subr.bf16.mxu0 0
        %2060 = vmatpush1.bf16.xpose.msra.mxu0 0
        %2061 = vmatprep.subr.bf16.mxu0 0
        %2062 = vmatpush1.bf16.xpose.msra.mxu0 0
        %2063 = vmatprep.subr.bf16.mxu0 0
        %2064 = vmatpush1.bf16.xpose.msra.mxu0 0
        %2065 = vmatprep.subr.bf16.mxu0 0
        %2066 = vmatpush1.bf16.xpose.msra.mxu0 0
        %2067 = vmatprep.subr.bf16.mxu0 0
        %2068 = vmatpush1.bf16.xpose.msra.mxu0 0
        %2069 = vmatprep.subr.bf16.mxu0 0
        %2070 = vmatpush1.bf16.xpose.msra.mxu0 0
        %2071 = vmatprep.subr.bf16.mxu0 0
        %2072 = vmatpush1.bf16.xpose.msra.mxu0 0
        %2073 = vmatprep.subr.bf16.mxu0 0
        %2074 = vmatpush1.bf16.xpose.msra.mxu0 %v2057
        %2075 = vmatprep.subr.bf16.mxu0 0
        %2076 = vmatpush2.bf16.xpose.msra.mxu0 0
        %2077 = vmatprep.subr.bf16.mxu0 0
        %2078 = vmatpush2.bf16.xpose.msra.mxu0 0
        %2079 = vmatprep.subr.bf16.mxu0 0
        %2080 = vmatpush2.bf16.xpose.msra.mxu0 0
        %2081 = vmatprep.subr.bf16.mxu0 0
        %2082 = vmatpush2.bf16.xpose.msra.mxu0 0
        %2083 = vmatprep.subr.bf16.mxu0 0
        %2084 = vmatpush2.bf16.xpose.msra.mxu0 0
        %2085 = vmatprep.subr.bf16.mxu0 0
        %2086 = vmatpush2.bf16.xpose.msra.mxu0 0
        %2087 = vmatprep.subr.bf16.mxu0 0
        %2088 = vmatpush2.bf16.xpose.msra.mxu0 0
        %2089 = vmatprep.subr.bf16.mxu0 0
        %2090 = vmatpush2.bf16.xpose.msra.mxu0 0
        %2091 = vmatprep.mubr.bf16.mxu0 0
        %2092 = vmatmul.mubr.bf16.gmra.mxu0 %v2054
        %v2093 = vpop.f32.mrf.mxu0
        %v2094 = vadd.f32 %v1959, %v2093
        %v2095 = vpop.f32.mrf.mxu0
        %v2096 = vpop.f32.mrf.mxu0
        %v2097 = vpop.f32.mrf.mxu0
        %2098 = vdwg.mxu0
        %v2100 = vsel %vm1259, %v1941, 0
        %v2103 = vsel %vm1259, %v1949, 0
        %2105 = vmatprep.subr.bf16.mxu0 0
        %2106 = vmatpush1.bf16.xpose.msra.mxu0 0
        %2107 = vmatprep.subr.bf16.mxu0 0
        %2108 = vmatpush1.bf16.xpose.msra.mxu0 0
        %2109 = vmatprep.subr.bf16.mxu0 0
        %2110 = vmatpush1.bf16.xpose.msra.mxu0 0
        %2111 = vmatprep.subr.bf16.mxu0 0
        %2112 = vmatpush1.bf16.xpose.msra.mxu0 0
        %2113 = vmatprep.subr.bf16.mxu0 0
        %2114 = vmatpush1.bf16.xpose.msra.mxu0 0
        %2115 = vmatprep.subr.bf16.mxu0 0
        %2116 = vmatpush1.bf16.xpose.msra.mxu0 0
        %2117 = vmatprep.subr.bf16.mxu0 0
        %2118 = vmatpush1.bf16.xpose.msra.mxu0 0
        %2119 = vmatprep.subr.bf16.mxu0 0
        %2120 = vmatpush1.bf16.xpose.msra.mxu0 %v2103
        %2121 = vmatprep.subr.bf16.mxu0 0
        %2122 = vmatpush2.bf16.xpose.msra.mxu0 0
        %2123 = vmatprep.subr.bf16.mxu0 0
        %2124 = vmatpush2.bf16.xpose.msra.mxu0 0
        %2125 = vmatprep.subr.bf16.mxu0 0
        %2126 = vmatpush2.bf16.xpose.msra.mxu0 0
        %2127 = vmatprep.subr.bf16.mxu0 0
        %2128 = vmatpush2.bf16.xpose.msra.mxu0 0
        %2129 = vmatprep.subr.bf16.mxu0 0
        %2130 = vmatpush2.bf16.xpose.msra.mxu0 0
        %2131 = vmatprep.subr.bf16.mxu0 0
        %2132 = vmatpush2.bf16.xpose.msra.mxu0 0
        %2133 = vmatprep.subr.bf16.mxu0 0
        %2134 = vmatpush2.bf16.xpose.msra.mxu0 0
        %2135 = vmatprep.subr.bf16.mxu0 0
        %2136 = vmatpush2.bf16.xpose.msra.mxu0 0
        %2137 = vmatprep.mubr.bf16.mxu0 0
        %2138 = vmatmul.mubr.bf16.gmra.mxu0 %v2100
        %v2139 = vpop.f32.mrf.mxu0
        %v2140 = vadd.f32 %v1959, %v2139
        %v2141 = vpop.f32.mrf.mxu0
        %v2142 = vpop.f32.mrf.mxu0
        %v2143 = vpop.f32.mrf.mxu0
        %2144 = vdwg.mxu0
        %v2145 = vsel %vm1259, %v2002, -inf
        %2146 = vmax.xlane.f32.xlu0 %v2145
        %v2147 = vpop.xlane.xlu0 %2146
        %v2148 = vsel %vm1259, %v2048, -inf
        %2149 = vmax.xlane.f32.xlu0 %v2148
        %v2150 = vpop.xlane.xlu0 %2149
        %v2151 = vsel %vm1259, %v2094, -inf
        %2152 = vmax.xlane.f32.xlu0 %v2151
        %v2153 = vpop.xlane.xlu0 %2152
        %v2154 = vsel %vm1259, %v2140, -inf
        %2155 = vmax.xlane.f32.xlu0 %v2154
        %v2156 = vpop.xlane.xlu0 %2155
        %v2157 = vsub.f32 %v2002, %v2147
        %v2158 = vsub.f32 %v2048, %v2150
        %v2159 = vsub.f32 %v2094, %v2153
        %v2160 = vsub.f32 %v2140, %v2156
        %v2161 = vmul.f32 %v2157, 1.442695
        %v2162 = vpow.pop %v2161
        %v2163 = vmul.f32 %v2158, 1.442695
        %v2164 = vpow.pop %v2163
        %v2165 = vmul.f32 %v2159, 1.442695
        %v2166 = vpow.pop %v2165
        %v2167 = vmul.f32 %v2160, 1.442695
        %v2168 = vpow.pop %v2167
        %v2169 = vsel %vm1259, %v2162, 0.0
        %2170 = vadd.xlane.f32.xlu0 %v2169
        %v2171 = vpop.xlane.xlu0 %2170
        %v2172 = vsel %vm1259, %v2164, 0.0
        %2173 = vadd.xlane.f32.xlu0 %v2172
        %v2174 = vpop.xlane.xlu0 %2173
        %v2175 = vsel %vm1259, %v2166, 0.0
        %2176 = vadd.xlane.f32.xlu0 %v2175
        %v2177 = vpop.xlane.xlu0 %2176
        %v2178 = vsel %vm1259, %v2168, 0.0
        %2179 = vadd.xlane.f32.xlu0 %v2178
        %v2180 = vpop.xlane.xlu0 %2179
        // Predicated region
        $region121: #{_lambda_.4} parent=115 // pred_check
          %p2181 = pneg %p1151
        $region122: #{_lambda_.4} parent=115 // pred_check_branch
          %2183 = sbr.rel (%p2181) target = $region124
        $region123: #{_lambda_.4} parent=115 // pred_region
          %v2184 = vrcp.pop %v2171
          %v2185 = vmul.f32 %v2162, %v2184
          %v2186 = vrcp.pop %v2174
          %v2187 = vmul.f32 %v2164, %v2186
          %v2188 = vrcp.pop %v2177
          %v2189 = vmul.f32 %v2166, %v2188
          %v2190 = vrcp.pop %v2180
          %v2191 = vmul.f32 %v2168, %v2190
          %2192 = vst.msk [vmem:[%s1057] sm:$0xff] %vm1259, %v2185
          %2193 = vst.msk [vmem:[%s1057 + $0x8] sm:$0xff] %vm1259, %v2187
          %2194 = vst.msk [vmem:[%s1057 + $0x10] sm:$0xff] %vm1259, %v2189
          %2195 = vst.msk [vmem:[%s1057 + $0x18] sm:$0xff] %vm1259, %v2191
        $region124: #{_lambda_.4} parent=115 // pred_fallthru
          _
        %v2196 = vrcp.pop %v2171
        %v2197 = vrcp.pop %v2174
        %v2198 = vrcp.pop %v2177
        %v2199 = vrcp.pop %v2180
        %v2200 = vmul.f32 %v2162, %v2196
        %v2201 = vmul.f32 %v2164, %v2197
        %v2202 = vmul.f32 %v2166, %v2198
        %v2203 = vmul.f32 %v2168, %v2199
        %v2204 = vpack.c.bf16 %v2200, %v2200
        %v2205 = vpack.c.bf16 %v2201, %v2201
        %v2206 = vpack.c.bf16 %v2202, %v2202
        %v2207 = vpack.c.bf16 %v2203, %v2203
        %2208 = vrot.lane.b32.xlu0 %v1942, 96
        %v2209 = vpop.permute.xlu0 %2208
        %v2211 = vsel %vm1259, %v2204, 0
        %v2214 = vsel %vm1503, %v2209, 0
        %2216 = vmatprep.subr.bf16.mxu0 0
        %2217 = vmatpush1.bf16.msra.mxu0 0
        %2218 = vmatprep.subr.bf16.mxu0 0
        %2219 = vmatpush1.bf16.msra.mxu0 0
        %2220 = vmatprep.subr.bf16.mxu0 0
        %2221 = vmatpush1.bf16.msra.mxu0 0
        %2222 = vmatprep.subr.bf16.mxu0 0
        %2223 = vmatpush1.bf16.msra.mxu0 0
        %2224 = vmatprep.subr.bf16.mxu0 0
        %2225 = vmatpush1.bf16.msra.mxu0 0
        %2226 = vmatprep.subr.bf16.mxu0 0
        %2227 = vmatpush1.bf16.msra.mxu0 0
        %2228 = vmatprep.subr.bf16.mxu0 0
        %2229 = vmatpush1.bf16.msra.mxu0 0
        %2230 = vmatprep.subr.bf16.mxu0 0
        %2231 = vmatpush1.bf16.msra.mxu0 %v2214
        %2232 = vmatprep.subr.bf16.mxu0 0
        %2233 = vmatpush2.bf16.msra.mxu0 0
        %2234 = vmatprep.subr.bf16.mxu0 0
        %2235 = vmatpush2.bf16.msra.mxu0 0
        %2236 = vmatprep.subr.bf16.mxu0 0
        %2237 = vmatpush2.bf16.msra.mxu0 0
        %2238 = vmatprep.subr.bf16.mxu0 0
        %2239 = vmatpush2.bf16.msra.mxu0 0
        %2240 = vmatprep.subr.bf16.mxu0 0
        %2241 = vmatpush2.bf16.msra.mxu0 0
        %2242 = vmatprep.subr.bf16.mxu0 0
        %2243 = vmatpush2.bf16.msra.mxu0 0
        %2244 = vmatprep.subr.bf16.mxu0 0
        %2245 = vmatpush2.bf16.msra.mxu0 0
        %2246 = vmatprep.subr.bf16.mxu0 0
        %2247 = vmatpush2.bf16.msra.mxu0 0
        %2248 = vmatprep.mubr.bf16.mxu0 0
        %2249 = vmatmul.mubr.bf16.gmra.mxu0 %v2211
        %v2250 = vpop.f32.mrf.mxu0
        %v2251 = vadd.f32 0.0, %v2250
        %v2252 = vpop.f32.mrf.mxu0
        %v2253 = vpop.f32.mrf.mxu0
        %v2254 = vpop.f32.mrf.mxu0
        %2255 = vdwg.mxu0
        %2256 = vrot.lane.b32.xlu0 %v1945, 96
        %v2257 = vpop.permute.xlu0 %2256
        %v2259 = vsel %vm1259, %v2205, 0
        %v2262 = vsel %vm1503, %v2257, 0
        %2264 = vmatprep.subr.bf16.mxu0 0
        %2265 = vmatpush1.bf16.msra.mxu0 0
        %2266 = vmatprep.subr.bf16.mxu0 0
        %2267 = vmatpush1.bf16.msra.mxu0 0
        %2268 = vmatprep.subr.bf16.mxu0 0
        %2269 = vmatpush1.bf16.msra.mxu0 0
        %2270 = vmatprep.subr.bf16.mxu0 0
        %2271 = vmatpush1.bf16.msra.mxu0 0
        %2272 = vmatprep.subr.bf16.mxu0 0
        %2273 = vmatpush1.bf16.msra.mxu0 0
        %2274 = vmatprep.subr.bf16.mxu0 0
        %2275 = vmatpush1.bf16.msra.mxu0 0
        %2276 = vmatprep.subr.bf16.mxu0 0
        %2277 = vmatpush1.bf16.msra.mxu0 0
        %2278 = vmatprep.subr.bf16.mxu0 0
        %2279 = vmatpush1.bf16.msra.mxu0 %v2262
        %2280 = vmatprep.subr.bf16.mxu0 0
        %2281 = vmatpush2.bf16.msra.mxu0 0
        %2282 = vmatprep.subr.bf16.mxu0 0
        %2283 = vmatpush2.bf16.msra.mxu0 0
        %2284 = vmatprep.subr.bf16.mxu0 0
        %2285 = vmatpush2.bf16.msra.mxu0 0
        %2286 = vmatprep.subr.bf16.mxu0 0
        %2287 = vmatpush2.bf16.msra.mxu0 0
        %2288 = vmatprep.subr.bf16.mxu0 0
        %2289 = vmatpush2.bf16.msra.mxu0 0
        %2290 = vmatprep.subr.bf16.mxu0 0
        %2291 = vmatpush2.bf16.msra.mxu0 0
        %2292 = vmatprep.subr.bf16.mxu0 0
        %2293 = vmatpush2.bf16.msra.mxu0 0
        %2294 = vmatprep.subr.bf16.mxu0 0
        %2295 = vmatpush2.bf16.msra.mxu0 0
        %2296 = vmatprep.mubr.bf16.mxu0 0
        %2297 = vmatmul.mubr.bf16.gmra.mxu0 %v2259
        %v2298 = vpop.f32.mrf.mxu0
        %v2299 = vadd.f32 0.0, %v2298
        %v2300 = vpop.f32.mrf.mxu0
        %v2301 = vpop.f32.mrf.mxu0
        %v2302 = vpop.f32.mrf.mxu0
        %2303 = vdwg.mxu0
        %2304 = vrot.lane.b32.xlu0 %v1947, 96
        %v2305 = vpop.permute.xlu0 %2304
        %v2307 = vsel %vm1259, %v2206, 0
        %v2310 = vsel %vm1503, %v2305, 0
        %2312 = vmatprep.subr.bf16.mxu0 0
        %2313 = vmatpush1.bf16.msra.mxu0 0
        %2314 = vmatprep.subr.bf16.mxu0 0
        %2315 = vmatpush1.bf16.msra.mxu0 0
        %2316 = vmatprep.subr.bf16.mxu0 0
        %2317 = vmatpush1.bf16.msra.mxu0 0
        %2318 = vmatprep.subr.bf16.mxu0 0
        %2319 = vmatpush1.bf16.msra.mxu0 0
        %2320 = vmatprep.subr.bf16.mxu0 0
        %2321 = vmatpush1.bf16.msra.mxu0 0
        %2322 = vmatprep.subr.bf16.mxu0 0
        %2323 = vmatpush1.bf16.msra.mxu0 0
        %2324 = vmatprep.subr.bf16.mxu0 0
        %2325 = vmatpush1.bf16.msra.mxu0 0
        %2326 = vmatprep.subr.bf16.mxu0 0
        %2327 = vmatpush1.bf16.msra.mxu0 %v2310
        %2328 = vmatprep.subr.bf16.mxu0 0
        %2329 = vmatpush2.bf16.msra.mxu0 0
        %2330 = vmatprep.subr.bf16.mxu0 0
        %2331 = vmatpush2.bf16.msra.mxu0 0
        %2332 = vmatprep.subr.bf16.mxu0 0
        %2333 = vmatpush2.bf16.msra.mxu0 0
        %2334 = vmatprep.subr.bf16.mxu0 0
        %2335 = vmatpush2.bf16.msra.mxu0 0
        %2336 = vmatprep.subr.bf16.mxu0 0
        %2337 = vmatpush2.bf16.msra.mxu0 0
        %2338 = vmatprep.subr.bf16.mxu0 0
        %2339 = vmatpush2.bf16.msra.mxu0 0
        %2340 = vmatprep.subr.bf16.mxu0 0
        %2341 = vmatpush2.bf16.msra.mxu0 0
        %2342 = vmatprep.subr.bf16.mxu0 0
        %2343 = vmatpush2.bf16.msra.mxu0 0
        %2344 = vmatprep.mubr.bf16.mxu0 0
        %2345 = vmatmul.mubr.bf16.gmra.mxu0 %v2307
        %v2346 = vpop.f32.mrf.mxu0
        %v2347 = vadd.f32 0.0, %v2346
        %v2348 = vpop.f32.mrf.mxu0
        %v2349 = vpop.f32.mrf.mxu0
        %v2350 = vpop.f32.mrf.mxu0
        %2351 = vdwg.mxu0
        %2352 = vrot.lane.b32.xlu0 %v1949, 96
        %v2353 = vpop.permute.xlu0 %2352
        %v2355 = vsel %vm1259, %v2207, 0
        %v2358 = vsel %vm1503, %v2353, 0
        %2360 = vmatprep.subr.bf16.mxu0 0
        %2361 = vmatpush1.bf16.msra.mxu0 0
        %2362 = vmatprep.subr.bf16.mxu0 0
        %2363 = vmatpush1.bf16.msra.mxu0 0
        %2364 = vmatprep.subr.bf16.mxu0 0
        %2365 = vmatpush1.bf16.msra.mxu0 0
        %2366 = vmatprep.subr.bf16.mxu0 0
        %2367 = vmatpush1.bf16.msra.mxu0 0
        %2368 = vmatprep.subr.bf16.mxu0 0
        %2369 = vmatpush1.bf16.msra.mxu0 0
        %2370 = vmatprep.subr.bf16.mxu0 0
        %2371 = vmatpush1.bf16.msra.mxu0 0
        %2372 = vmatprep.subr.bf16.mxu0 0
        %2373 = vmatpush1.bf16.msra.mxu0 0
        %2374 = vmatprep.subr.bf16.mxu0 0
        %2375 = vmatpush1.bf16.msra.mxu0 %v2358
        %2376 = vmatprep.subr.bf16.mxu0 0
        %2377 = vmatpush2.bf16.msra.mxu0 0
        %2378 = vmatprep.subr.bf16.mxu0 0
        %2379 = vmatpush2.bf16.msra.mxu0 0
        %2380 = vmatprep.subr.bf16.mxu0 0
        %2381 = vmatpush2.bf16.msra.mxu0 0
        %2382 = vmatprep.subr.bf16.mxu0 0
        %2383 = vmatpush2.bf16.msra.mxu0 0
        %2384 = vmatprep.subr.bf16.mxu0 0
        %2385 = vmatpush2.bf16.msra.mxu0 0
        %2386 = vmatprep.subr.bf16.mxu0 0
        %2387 = vmatpush2.bf16.msra.mxu0 0
        %2388 = vmatprep.subr.bf16.mxu0 0
        %2389 = vmatpush2.bf16.msra.mxu0 0
        %2390 = vmatprep.subr.bf16.mxu0 0
        %2391 = vmatpush2.bf16.msra.mxu0 0
        %2392 = vmatprep.mubr.bf16.mxu0 0
        %2393 = vmatmul.mubr.bf16.gmra.mxu0 %v2355
        %v2394 = vpop.f32.mrf.mxu0
        %v2395 = vadd.f32 0.0, %v2394
        %v2396 = vpop.f32.mrf.mxu0
        %v2397 = vpop.f32.mrf.mxu0
        %v2398 = vpop.f32.mrf.mxu0
        %2399 = vdwg.mxu0
        %2401 = vrot.lane.b32.xlu0 %v2299, 8
        %v2402 = vpop.permute.xlu0 %2401
        %2405 = vrot.lane.b32.xlu0 %v2347, 16
        %v2406 = vpop.permute.xlu0 %2405
        %2409 = vrot.lane.b32.xlu0 %v2395, 24
        %v2410 = vpop.permute.xlu0 %2409
        %v2412 = vsel %vm1259, %v2251, %v2402
        %v2413 = vsel %vm1704, %v2412, %v2406
        %v2414 = vsel %vm1706, %v2413, %v2410
        %v2415 = vpack.c.bf16 %v2414, %v2414
        %v2417 = vlaneseq
        %v2418 = vshrl.u32 %v2417, 7
        %v2419 = vsub.s32 0, %v2418
        %v2420 = vrot.slane %v1954, %v2419
        %v2426 = vunpack.c.l.b16 %v1950
        %v2427 = vunpack.c.l.b16 %v1951
        %v2428 = vunpack.c.l.b16 %v1952
        %v2429 = vunpack.c.l.b16 %v1953
        %v2430 = vpack.c.b16 %v2427, %v2426
        %v2431 = vpack.c.b16 %v2429, %v2428
        %v2435 = vsel %vm1200, %v2415, 0
        %2437 = vmatprep.subr.bf16.mxu0 0
        %2438 = vmatpush1.bf16.msra.mxu0 0
        %2439 = vmatprep.subr.bf16.mxu0 0
        %2440 = vmatpush1.bf16.msra.mxu0 0
        %2441 = vmatprep.subr.bf16.mxu0 0
        %2442 = vmatpush1.bf16.msra.mxu0 0
        %2443 = vmatprep.subr.bf16.mxu0 0
        %2444 = vmatpush1.bf16.msra.mxu0 0
        %2445 = vmatprep.subr.bf16.mxu0 0
        %2446 = vmatpush1.bf16.msra.mxu0 0
        %2447 = vmatprep.subr.bf16.mxu0 0
        %2448 = vmatpush1.bf16.msra.mxu0 0
        %2449 = vmatprep.subr.bf16.mxu0 0
        %2450 = vmatpush1.bf16.msra.mxu0 %v2431
        %2451 = vmatprep.subr.bf16.mxu0 0
        %2452 = vmatpush1.bf16.msra.mxu0 %v2430
        %2453 = vmatprep.subr.bf16.mxu0 0
        %2454 = vmatpush2.bf16.msra.mxu0 0
        %2455 = vmatprep.subr.bf16.mxu0 0
        %2456 = vmatpush2.bf16.msra.mxu0 0
        %2457 = vmatprep.subr.bf16.mxu0 0
        %2458 = vmatpush2.bf16.msra.mxu0 0
        %2459 = vmatprep.subr.bf16.mxu0 0
        %2460 = vmatpush2.bf16.msra.mxu0 0
        %2461 = vmatprep.subr.bf16.mxu0 0
        %2462 = vmatpush2.bf16.msra.mxu0 0
        %2463 = vmatprep.subr.bf16.mxu0 0
        %2464 = vmatpush2.bf16.msra.mxu0 0
        %2465 = vmatprep.subr.bf16.mxu0 0
        %2466 = vmatpush2.bf16.msra.mxu0 0
        %2467 = vmatprep.subr.bf16.mxu0 0
        %2468 = vmatpush2.bf16.msra.mxu0 0
        %2469 = vmatprep.mubr.bf16.mxu0 0
        %2470 = vmatmul.mubr.bf16.gmra.mxu0 %v2435
        %v2471 = vpop.f32.mrf.mxu0
        %v2472 = vadd.f32 %v2420, %v2471
        %v2473 = vpop.f32.mrf.mxu0
        %v2474 = vpop.f32.mrf.mxu0
        %v2475 = vpop.f32.mrf.mxu0
        %2476 = vdwg.mxu0
        %v2477 = vadd.f32 %v1800, %v2472
        %v2478 = vld [vmem:[%s1120] sm:$0x1]
        %v2479 = vld [vmem:[%s1123] sm:$0x1]
        %v2480 = vsel %vm1200, %v2477, 0.0
        %2481 = vadd.xlane.f32.xlu0 %v2480
        %v2482 = vpop.xlane.xlu0 %2481
        %v2483 = vmul.f32 %v2482, %v1776
        %v2484 = vsub.f32 %v2477, %v2483
        %v2485 = vmul.f32 %v2484, %v2484
        %v2486 = vsel %vm1200, %v2485, 0.0
        %2487 = vadd.xlane.f32.xlu0 %v2486
        %v2488 = vpop.xlane.xlu0 %2487
        %v2489 = vmul.f32 %v2488, %v1776
        %v2490 = vadd.f32 %v2489, 1e-05
        %v2491 = vrsqrt.pop %v2490
        %v2492 = vmul.f32 %v2484, %v2491
        %v2494 = vlaneseq
        %v2495 = vshrl.u32 %v2494, 7
        %v2496 = vsub.s32 0, %v2495
        %v2497 = vrot.slane %v2478, %v2496
        %v2499 = vmul.f32 %v2492, %v2497
        %v2501 = vlaneseq
        %v2502 = vshrl.u32 %v2501, 7
        %v2503 = vsub.s32 0, %v2502
        %v2504 = vrot.slane %v2479, %v2503
        %v2506 = vadd.f32 %v2499, %v2504
        %v2507 = vld [vmem:[%s1128] sm:$0xf]
        %v2508 = vld [vmem:[%s1128 + $0x4] sm:$0xf]
        %v2509 = vld [vmem:[%s1128 + $0x8] sm:$0xf]
        %v2510 = vld [vmem:[%s1128 + $0xc] sm:$0xf]
        %v2511 = vld [vmem:[%s1131] sm:$0x1]
        %v2512 = vld [vmem:[%s1136] sm:$0xf]
        %v2513 = vld [vmem:[%s1136 + $0x4] sm:$0xf]
        %v2514 = vld [vmem:[%s1136 + $0x8] sm:$0xf]
        %v2515 = vld [vmem:[%s1136 + $0xc] sm:$0xf]
        %v2516 = vld [vmem:[%s1136 + $0x10] sm:$0xf]
        %v2517 = vld [vmem:[%s1136 + $0x14] sm:$0xf]
        %v2518 = vld [vmem:[%s1136 + $0x18] sm:$0xf]
        %v2519 = vld [vmem:[%s1136 + $0x1c] sm:$0xf]
        %v2520 = vld [vmem:[%s1139] sm:$0x1]
        %v2521 = vpack.c.bf16 %v2506, %v2506
        %v2523 = vlaneseq
        %v2524 = vshrl.u32 %v2523, 7
        %v2525 = vsub.s32 0, %v2524
        %v2526 = vrot.slane %v2511, %v2525
        %v2532 = vunpack.c.l.b16 %v2507
        %v2533 = vunpack.c.l.b16 %v2508
        %v2534 = vunpack.c.l.b16 %v2509
        %v2535 = vunpack.c.l.b16 %v2510
        %v2536 = vpack.c.b16 %v2533, %v2532
        %v2537 = vpack.c.b16 %v2535, %v2534
        %v2541 = vsel %vm1200, %v2521, 0
        %2543 = vmatprep.subr.bf16.mxu0 0
        %2544 = vmatpush1.bf16.msra.mxu0 0
        %2545 = vmatprep.subr.bf16.mxu0 0
        %2546 = vmatpush1.bf16.msra.mxu0 0
        %2547 = vmatprep.subr.bf16.mxu0 0
        %2548 = vmatpush1.bf16.msra.mxu0 0
        %2549 = vmatprep.subr.bf16.mxu0 0
        %2550 = vmatpush1.bf16.msra.mxu0 0
        %2551 = vmatprep.subr.bf16.mxu0 0
        %2552 = vmatpush1.bf16.msra.mxu0 0
        %2553 = vmatprep.subr.bf16.mxu0 0
        %2554 = vmatpush1.bf16.msra.mxu0 0
        %2555 = vmatprep.subr.bf16.mxu0 0
        %2556 = vmatpush1.bf16.msra.mxu0 %v2537
        %2557 = vmatprep.subr.bf16.mxu0 0
        %2558 = vmatpush1.bf16.msra.mxu0 %v2536
        %2559 = vmatprep.subr.bf16.mxu0 0
        %2560 = vmatpush2.bf16.msra.mxu0 0
        %2561 = vmatprep.subr.bf16.mxu0 0
        %2562 = vmatpush2.bf16.msra.mxu0 0
        %2563 = vmatprep.subr.bf16.mxu0 0
        %2564 = vmatpush2.bf16.msra.mxu0 0
        %2565 = vmatprep.subr.bf16.mxu0 0
        %2566 = vmatpush2.bf16.msra.mxu0 0
        %2567 = vmatprep.subr.bf16.mxu0 0
        %2568 = vmatpush2.bf16.msra.mxu0 0
        %2569 = vmatprep.subr.bf16.mxu0 0
        %2570 = vmatpush2.bf16.msra.mxu0 0
        %2571 = vmatprep.subr.bf16.mxu0 0
        %2572 = vmatpush2.bf16.msra.mxu0 0
        %2573 = vmatprep.subr.bf16.mxu0 0
        %2574 = vmatpush2.bf16.msra.mxu0 0
        %2575 = vmatprep.mubr.bf16.mxu0 0
        %2576 = vmatmul.mubr.bf16.gmra.mxu0 %v2541
        %v2577 = vpop.f32.mrf.mxu0
        %v2578 = vadd.f32 %v2526, %v2577
        %v2579 = vpop.f32.mrf.mxu0
        %v2580 = vpop.f32.mrf.mxu0
        %v2581 = vpop.f32.mrf.mxu0
        %2582 = vdwg.mxu0
        %v2583 = vmax.f32 %v2578, 0.0
        %v2584 = vpack.c.bf16 %v2583, %v2583
        %v2586 = vlaneseq
        %v2587 = vshrl.u32 %v2586, 7
        %v2588 = vsub.s32 0, %v2587
        %v2589 = vrot.slane %v2520, %v2588
        %v2599 = vunpack.c.l.b16 %v2512
        %v2600 = vunpack.c.l.b16 %v2513
        %v2601 = vunpack.c.l.b16 %v2514
        %v2602 = vunpack.c.l.b16 %v2515
        %v2603 = vunpack.c.l.b16 %v2516
        %v2604 = vunpack.c.l.b16 %v2517
        %v2605 = vunpack.c.l.b16 %v2518
        %v2606 = vunpack.c.l.b16 %v2519
        %v2607 = vpack.c.b16 %v2600, %v2599
        %v2608 = vpack.c.b16 %v2602, %v2601
        %v2609 = vpack.c.b16 %v2604, %v2603
        %v2610 = vpack.c.b16 %v2606, %v2605
        %vm2615 = vcmask 523264
        %v2617 = vsel %vm2615, %v2584, 0
        %2619 = vmatprep.subr.bf16.mxu0 0
        %2620 = vmatpush1.bf16.msra.mxu0 0
        %2621 = vmatprep.subr.bf16.mxu0 0
        %2622 = vmatpush1.bf16.msra.mxu0 0
        %2623 = vmatprep.subr.bf16.mxu0 0
        %2624 = vmatpush1.bf16.msra.mxu0 0
        %2625 = vmatprep.subr.bf16.mxu0 0
        %2626 = vmatpush1.bf16.msra.mxu0 0
        %2627 = vmatprep.subr.bf16.mxu0 0
        %2628 = vmatpush1.bf16.msra.mxu0 %v2610
        %2629 = vmatprep.subr.bf16.mxu0 0
        %2630 = vmatpush1.bf16.msra.mxu0 %v2609
        %2631 = vmatprep.subr.bf16.mxu0 0
        %2632 = vmatpush1.bf16.msra.mxu0 %v2608
        %2633 = vmatprep.subr.bf16.mxu0 0
        %2634 = vmatpush1.bf16.msra.mxu0 %v2607
        %2635 = vmatprep.subr.bf16.mxu0 0
        %2636 = vmatpush2.bf16.msra.mxu0 0
        %2637 = vmatprep.subr.bf16.mxu0 0
        %2638 = vmatpush2.bf16.msra.mxu0 0
        %2639 = vmatprep.subr.bf16.mxu0 0
        %2640 = vmatpush2.bf16.msra.mxu0 0
        %2641 = vmatprep.subr.bf16.mxu0 0
        %2642 = vmatpush2.bf16.msra.mxu0 0
        %2643 = vmatprep.subr.bf16.mxu0 0
        %2644 = vmatpush2.bf16.msra.mxu0 0
        %2645 = vmatprep.subr.bf16.mxu0 0
        %2646 = vmatpush2.bf16.msra.mxu0 0
        %2647 = vmatprep.subr.bf16.mxu0 0
        %2648 = vmatpush2.bf16.msra.mxu0 0
        %2649 = vmatprep.subr.bf16.mxu0 0
        %2650 = vmatpush2.bf16.msra.mxu0 0
        %2651 = vmatprep.mubr.bf16.mxu0 0
        %2652 = vmatmul.mubr.bf16.gmra.mxu0 %v2617
        %v2653 = vpop.f32.mrf.mxu0
        %v2654 = vadd.f32 %v2589, %v2653
        %v2655 = vpop.f32.mrf.mxu0
        %v2656 = vpop.f32.mrf.mxu0
        %v2657 = vpop.f32.mrf.mxu0
        %2658 = vdwg.mxu0
        %v2659 = vadd.f32 %v2506, %v2654
        %v2660 = vld [vmem:[%s1142] sm:$0x1]
        %v2661 = vld [vmem:[%s1145] sm:$0x1]
        %v2662 = vsel %vm1200, %v2659, 0.0
        %2663 = vadd.xlane.f32.xlu0 %v2662
        %v2664 = vpop.xlane.xlu0 %2663
        %v2665 = vmul.f32 %v2664, %v1776
        %v2666 = vsub.f32 %v2659, %v2665
        %v2667 = vmul.f32 %v2666, %v2666
        %v2668 = vsel %vm1200, %v2667, 0.0
        %2669 = vadd.xlane.f32.xlu0 %v2668
        %v2670 = vpop.xlane.xlu0 %2669
        %v2671 = vmul.f32 %v2670, %v1776
        %v2672 = vadd.f32 %v2671, 1e-05
        %v2673 = vrsqrt.pop %v2672
        %v2674 = vmul.f32 %v2666, %v2673
        %v2676 = vlaneseq
        %v2677 = vshrl.u32 %v2676, 7
        %v2678 = vsub.s32 0, %v2677
        %v2679 = vrot.slane %v2660, %v2678
        %v2681 = vmul.f32 %v2674, %v2679
        %v2683 = vlaneseq
        %v2684 = vshrl.u32 %v2683, 7
        %v2685 = vsub.s32 0, %v2684
        %v2686 = vrot.slane %v2661, %v2685
        %v2688 = vadd.f32 %v2681, %v2686
        %2689 = vst.msk [vmem:[#allocation2] sm:$0xff] %vm1200, %v2688
        %v2690 = vpack.c.bf16 %v2688, %v2688
        %vm2691 = vcmask 257024
        %2692 = vst.msk [vmem:[%s1149] sm:$0xf] %vm2691, %v2690
        %p2693 = scmp.lt.s32.totalorder %s44, 1
        %s2694 = scalar_select %p2693, %s44, 1
        %s2695 = smul.addr %s2694, 4
        %s2696 = scalar_lea.vmem %s24, %s2695
        %s2697 = sand.u32 %s710, 1
        %s2698 = scalar_lea.sflag [#allocation4], %s2697
        %s2699 = sand.u32 %s710, 1
        %s2700 = smul.addr %s2699, 32
        %s2701 = scalar_lea.vmem [#allocation3], %s2700
        // Predicated region
        $region125: #{_lambda_.4} parent=115 // pred_check
          %p2702 = pneg %p694
        $region126: #{_lambda_.4} parent=115 // pred_check_branch
          %2704 = sbr.rel (%p2702) target = $region128
        $region127: #{_lambda_.4} parent=115 // pred_region
          _
        $region128: #{_lambda_.4} parent=115 // pred_fallthru
          _
        // Predicated region
        $region129: #{_lambda_.4} parent=115 // pred_check
          %p2705 = pneg %p720
        $region130: #{_lambda_.4} parent=115 // pred_check_branch
          %2707 = sbr.rel (%p2705) target = $region132
        $region131: #{_lambda_.4} parent=115 // pred_region
          %s2709 = ssub.s32 512, 512
          %2710 = vsyncadd %s2698, %s2709
          %s2711 = smul.addr %s44, 4
          %s2712 = smul.addr %s2711, 128
          %s2713 = scalar_lea.hbm %s25, %s2712
          %s2714 = sshll.u32 %s2701, 4
          %s2715 = int_to_ptr.vmem [resolvable:$true] %s2714
          %2720 = dma.vmem_to_hbm [thread:$0]  %s2715, 512, %s2713, %s2698, 128, 128, 8
        $region132: #{_lambda_.4} parent=115 // pred_fallthru
          _
      $region116: #{_lambda_.4} parent=5 // pred_fallthru
        _
      %p2721 = scmp.le.s32.totalorder 2, %s35
      // Predicated region
      $region133: #{_lambda_.4} parent=5 // pred_check
        %p2722 = pneg %p2721
      $region134: #{_lambda_.4} parent=5 // pred_check_branch
        %2724 = sbr.rel (%p2722) target = $region136
      $region135: #{_lambda_.4} parent=5 // pred_region
        %s2725 = ssub.s32 %s35, 2
        // Predicated region
        $region137: #{_lambda_.4} parent=135 // pred_check
          %p2726 = pneg %p700
        $region138: #{_lambda_.4} parent=135 // pred_check_branch
          %2728 = sbr.rel (%p2726) target = $region140
        $region139: #{_lambda_.4} parent=135 // pred_region
          %p2729 = scmp.lt.s32.totalorder %s46, 1
          %s2730 = scalar_select %p2729, %s46, 1
          %s2731 = smul.addr %s2730, 4
          %s2732 = scalar_lea.vmem %s24, %s2731
        $region140: #{_lambda_.4} parent=135 // pred_fallthru
          _
        // Predicated region
        $region141: #{_lambda_.4} parent=135 // pred_check
          %p2733 = pneg %p726
        $region142: #{_lambda_.4} parent=135 // pred_check_branch
          %2735 = sbr.rel (%p2733) target = $region144
        $region143: #{_lambda_.4} parent=135 // pred_region
          %s2736 = sand.u32 %s711, 1
          %s2737 = scalar_lea.sflag [#allocation4], %s2736
          %s2738 = sand.u32 %s711, 1
          %s2739 = smul.addr %s2738, 32
          %s2740 = scalar_lea.vmem [#allocation3], %s2739
          %2741 = dma.done %s2737, 512
        $region144: #{_lambda_.4} parent=135 // pred_fallthru
          _
      $region136: #{_lambda_.4} parent=5 // pred_fallthru
        _
    $region6: #{_lambda_.4} parent=1 // loop_footer
      %s39 = sadd.s32 1, %s35
    $region7: #{_lambda_.4} parent=1 // loop_footer_branch
      %34 = sbr.rel target = $region3
    $region8: #{_lambda_.4} parent=1 // loop_exit
      _
    %2742 = vsyncpa [#allocation4], 1
    %s2743 = scalar_lea.sflag [#allocation4], 1
    %2744 = vsyncpa %s2743, 1

</llo_original>
